<compile_context>
chip_gen: v6e
topology: v6e:2x2x1
jax: 0.10.0
libtpu: 0.0.40
codegen_flags: <defaults>
</compile_context>

<pallas_src>
import functools

import jax
import jax.numpy as jnp
from jax import lax
from jax.experimental import pallas as pl
from jax.experimental.pallas import tpu as pltpu  # noqa: F401  (TPU backend)

# ----------------------------- model configuration -----------------------------
D_MODEL = 32
D_K = 8
D_V = 8
H = 4
D_FF = 64
LN_EPS = 1e-5

HDK = H * D_K          # 32
HDV = H * D_V          # 32
VECW = 3 * HDK         # width of the packed bias/LN buffer (96)


# ----------------------------- in-kernel helpers -------------------------------
def _layer_norm(y, gamma, beta):
    # y: (N, D); gamma/beta: (1, D)
    mu = jnp.mean(y, axis=-1, keepdims=True)
    var = jnp.mean((y - mu) * (y - mu), axis=-1, keepdims=True)
    return (y - mu) * lax.rsqrt(var + LN_EPS) * gamma + beta


def _attend(q, k, v, wo, bo, bias, B, Sq, Skv):
    """Multi-head attention core.

    q: (B*Sq, H*D_K)   (scale already folded into q)
    k: (B*Skv, H*D_K)
    v: (B*Skv, H*D_V)
    wo: (H*D_V, D_MODEL), bo: (1, D_MODEL)
    bias: optional (Sq, Skv) additive mask (e.g. causal), shared across batch/heads.

    Per-head outputs are accumulated straight into the output projection using
    sublane slices of wo -- no lane-axis concatenate.
    """
    wo_h = [wo[h * D_V:(h + 1) * D_V, :] for h in range(H)]   # sublane slices, hoisted
    outs = []
    for b in range(B):
        qb = q[b * Sq:(b + 1) * Sq, :]
        kb = k[b * Skv:(b + 1) * Skv, :]
        vb = v[b * Skv:(b + 1) * Skv, :]
        acc = jnp.zeros((Sq, D_MODEL), jnp.float32)
        for h in range(H):
            qh = qb[:, h * D_K:(h + 1) * D_K]
            kh = kb[:, h * D_K:(h + 1) * D_K]
            vh = vb[:, h * D_V:(h + 1) * D_V]
            s = jnp.dot(qh, kh.T, preferred_element_type=jnp.float32)     # (Sq, Skv)
            if bias is not None:
                s = s + bias
            s = s - jnp.max(s, axis=-1, keepdims=True)
            p = jnp.exp(s)
            p = p * pl.reciprocal(jnp.sum(p, axis=-1, keepdims=True), approx=True)
            oh = jnp.dot(p, vh, preferred_element_type=jnp.float32)       # (Sq, D_V)
            acc = acc + jnp.dot(oh, wo_h[h], preferred_element_type=jnp.float32)
        outs.append(acc)
    out = outs[0] if B == 1 else jnp.concatenate(outs, axis=0)            # sublane concat
    return out + bo


# --------------------------------- the kernel ----------------------------------
def decoder_kernel(x_ref, enc_ref,
                   w_qkv1_ref, w_o1_ref, w_q2_ref, w_kv2_ref, w_o2_ref,
                   w_f1_ref, w_f2_ref, vec_ref, o_ref, *, B, S, S_enc):
    x = x_ref[...]        # (B*S, D)
    enc = enc_ref[...]    # (B*S_enc, D)

    # ---- packed bias / LayerNorm vectors (one row each, static slices) ----
    b_qkv1 = vec_ref[0:1, 0:3 * HDK]
    b_o1 = vec_ref[1:2, 0:D_MODEL]
    b_q2 = vec_ref[2:3, 0:HDK]
    b_kv2 = vec_ref[3:4, 0:HDK + HDV]
    b_o2 = vec_ref[4:5, 0:D_MODEL]
    b_f1 = vec_ref[5:6, 0:D_FF]
    b_f2 = vec_ref[6:7, 0:D_MODEL]
    g1 = vec_ref[7:8, 0:D_MODEL]
    be1 = vec_ref[8:9, 0:D_MODEL]
    g2 = vec_ref[9:10, 0:D_MODEL]
    be2 = vec_ref[10:11, 0:D_MODEL]
    g3 = vec_ref[11:12, 0:D_MODEL]
    be3 = vec_ref[12:13, 0:D_MODEL]

    # ---- causal additive mask, built once ----
    row = lax.broadcasted_iota(jnp.int32, (S, S), 0)
    col = lax.broadcasted_iota(jnp.int32, (S, S), 1)
    causal = jnp.where(col > row, jnp.float32(-1e30), jnp.float32(0.0))

    # 1) masked self-attention (fused QKV) + residual + LN   (dropout = identity)
    qkv1 = jnp.dot(x, w_qkv1_ref[...], preferred_element_type=jnp.float32) + b_qkv1
    q1 = qkv1[:, 0:HDK]
    k1 = qkv1[:, HDK:2 * HDK]
    v1 = qkv1[:, 2 * HDK:2 * HDK + HDV]
    sa = _attend(q1, k1, v1, w_o1_ref[...], b_o1, causal, B, S, S)
    h1 = _layer_norm(sa + x, g1, be1)

    # 2) cross attention (Q from decoder state, fused KV from encoder) + residual + LN
    q2 = jnp.dot(h1, w_q2_ref[...], preferred_element_type=jnp.float32) + b_q2
    kv2 = jnp.dot(enc, w_kv2_ref[...], preferred_element_type=jnp.float32) + b_kv2
    k2 = kv2[:, 0:HDK]
    v2 = kv2[:, HDK:HDK + HDV]
    ca = _attend(q2, k2, v2, w_o2_ref[...], b_o2, None, B, S, S_enc)
    h2 = _layer_norm(ca + h1, g2, be2)

    # 3) position-wise feed-forward + residual + LN
    f = jnp.dot(h2, w_f1_ref[...], preferred_element_type=jnp.float32) + b_f1
    f = jnp.maximum(f, 0.0)
    f = jnp.dot(f, w_f2_ref[...], preferred_element_type=jnp.float32) + b_f2
    o_ref[...] = _layer_norm(f + h2, g3, be3)


# --------------------------- parameter packing (host-side) ---------------------------
def pack_params(params):
    """26 'natural' PyTorch-layout params -> 8 packed buffers for the kernel."""
    (wq1, bq1, wk1, bk1, wv1, bv1, wo1, bo1,
     wq2, bq2, wk2, bk2, wv2, bv2, wo2, bo2,
     wf1, bf1, wf2, bf2,
     g1, be1, g2, be2, g3, be3) = params
    scale = jnp.float32(1.0 / (D_K ** 0.5))

    # fold 1/sqrt(d_k) into the Q projections; fuse QKV (self) and KV (cross)
    w_qkv1 = jnp.concatenate([wq1 * scale, wk1, wv1], axis=1)     # (D, 3*HDK)
    b_qkv1 = jnp.concatenate([bq1 * scale, bk1, bv1], axis=1)     # (1, 3*HDK)
    w_q2s = wq2 * scale
    b_q2s = bq2 * scale
    w_kv2 = jnp.concatenate([wk2, wv2], axis=1)                   # (D, HDK+HDV)
    b_kv2 = jnp.concatenate([bk2, bv2], axis=1)                   # (1, HDK+HDV)

    def row(v):
        v = v.reshape(1, -1).astype(jnp.float32)
        return jnp.pad(v, ((0, 0), (0, VECW - v.shape[1])))

    vecs = jnp.concatenate(
        [row(b_qkv1), row(bo1), row(b_q2s), row(b_kv2), row(bo2),
         row(bf1), row(bf2),
         row(g1), row(be1), row(g2), row(be2), row(g3), row(be3)],
        axis=0)                                                   # (13, VECW)

    return [w_qkv1, wo1, w_q2s, w_kv2, wo2, wf1, wf2, vecs]


# --------------------------------- the wrapper ----------------------------------
def transformer_decoder(x, out_encoder, params):
    """x: (B, S, D_MODEL), out_encoder: (B, S_enc, D_MODEL) -> (B, S, D_MODEL)."""
    B, S, D = x.shape
    _, S_enc, _ = out_encoder.shape
    assert D == D_MODEL

    packed = pack_params(params)
    x2 = x.reshape(B * S, D).astype(jnp.float32)
    enc2 = out_encoder.reshape(B * S_enc, D).astype(jnp.float32)

    kernel = functools.partial(decoder_kernel, B=B, S=S, S_enc=S_enc)

    # Single invocation, everything resident in VMEM (total footprint < 100 KiB):
    # no grid, full-array blocks.
    out = pl.pallas_call(
        kernel,
        out_shape=jax.ShapeDtypeStruct((B * S, D_MODEL), jnp.float32),
    )(x2, enc2, *packed)
    return out.reshape(B, S, D_MODEL)


# ------------------------- deterministic parameter init -------------------------
def init_params(key):
    keys = jax.random.split(key, 12)
    scale = 0.05

    def w(k, shape):
        return (scale * jax.random.normal(k, shape)).astype(jnp.float32)

    def zeros(shape):
        return jnp.zeros(shape, jnp.float32)

    def ones(shape):
        return jnp.ones(shape, jnp.float32)

    def mha_params(k4):
        ka, kb, kc, kd = k4
        return [
            w(ka, (D_MODEL, H * D_K)), zeros((1, H * D_K)),   # Wq, bq
            w(kb, (D_MODEL, H * D_K)), zeros((1, H * D_K)),   # Wk, bk
            w(kc, (D_MODEL, H * D_V)), zeros((1, H * D_V)),   # Wv, bv
            w(kd, (H * D_V, D_MODEL)), zeros((1, D_MODEL)),   # Wo, bo
        ]

    params = []
    params += mha_params(keys[0:4])     # masked self-attention
    params += mha_params(keys[4:8])     # cross-attention
    params += [w(keys[8], (D_MODEL, D_FF)), zeros((1, D_FF)),     # FF layer 1
               w(keys[9], (D_FF, D_MODEL)), zeros((1, D_MODEL))]  # FF layer 2
    params += [ones((1, D_MODEL)), zeros((1, D_MODEL)),   # LN after masked attn
               ones((1, D_MODEL)), zeros((1, D_MODEL)),   # LN after cross attn
               ones((1, D_MODEL)), zeros((1, D_MODEL))]   # LN after FF
    return params


# ------------------------------ pure-JAX reference ------------------------------
def _ref_ln(y, gamma, beta):
    mu = jnp.mean(y, axis=-1, keepdims=True)
    var = jnp.mean((y - mu) ** 2, axis=-1, keepdims=True)
    return (y - mu) / jnp.sqrt(var + LN_EPS) * gamma + beta


def _ref_mha(q_in, kv_in, wq, bq, wk, bk, wv, bv, wo, bo, causal):
    B, Sq, _ = q_in.shape
    Skv = kv_in.shape[1]
    q = (q_in @ wq + bq).reshape(B, Sq, H, D_K).transpose(0, 2, 1, 3)
    k = (kv_in @ wk + bk).reshape(B, Skv, H, D_K).transpose(0, 2, 1, 3)
    v = (kv_in @ wv + bv).reshape(B, Skv, H, D_V).transpose(0, 2, 1, 3)
    s = jnp.einsum("bhqd,bhkd->bhqk", q, k) / (D_K ** 0.5)
    if causal:
        mask = jnp.triu(jnp.ones((Sq, Skv), bool), k=1)
        s = jnp.where(mask[None, None], -1e30, s)
    p = jax.nn.softmax(s, axis=-1)
    o = jnp.einsum("bhqk,bhkd->bhqd", p, v).transpose(0, 2, 1, 3).reshape(B, Sq, H * D_V)
    return o @ wo + bo


def transformer_decoder_ref(x, enc, params):
    (wq1, bq1, wk1, bk1, wv1, bv1, wo1, bo1,
     wq2, bq2, wk2, bk2, wv2, bv2, wo2, bo2,
     wf1, bf1, wf2, bf2,
     g1, be1, g2, be2, g3, be3) = params
    sa = _ref_mha(x, x, wq1, bq1, wk1, bk1, wv1, bv1, wo1, bo1, True)
    h1 = _ref_ln(sa + x, g1, be1)
    ca = _ref_mha(h1, enc, wq2, bq2, wk2, bk2, wv2, bv2, wo2, bo2, False)
    h2 = _ref_ln(ca + h1, g2, be2)
    ff = jax.nn.relu(h2 @ wf1 + bf1) @ wf2 + bf2
    return _ref_ln(ff + h2, g3, be3)


# ------------------------------------ main ---------------------------------------
if __name__ == "__main__":
    key = jax.random.PRNGKey(0)
    k_x, k_enc, k_p = jax.random.split(key, 3)

    B, S, S_ENC = 2, 8, 8
    x = jax.random.normal(k_x, (B, S, D_MODEL), dtype=jnp.float32)
    out_encoder = jax.random.normal(k_enc, (B, S_ENC, D_MODEL), dtype=jnp.float32)
    params = init_params(k_p)

    out = transformer_decoder(x, out_encoder, params)
    out = jax.block_until_ready(out)

    ref = jax.block_until_ready(transformer_decoder_ref(x, out_encoder, params))
    assert out.shape == (B, S, D_MODEL)
    err = float(jnp.max(jnp.abs(out - ref)))
    assert jnp.allclose(out, ref, rtol=5e-3, atol=5e-3), err

    print("KERNEL_OK")
</pallas_src>

<mosaic_0001>
module attributes {stable_mosaic.version = 11 : i64} {
  func.func @decoder_kernel(%arg0: memref<16x32xf32, #tpu.memory_space<vmem>>, %arg1: memref<16x32xf32, #tpu.memory_space<vmem>>, %arg2: memref<32x96xf32, #tpu.memory_space<vmem>>, %arg3: memref<32x32xf32, #tpu.memory_space<vmem>>, %arg4: memref<32x32xf32, #tpu.memory_space<vmem>>, %arg5: memref<32x64xf32, #tpu.memory_space<vmem>>, %arg6: memref<32x32xf32, #tpu.memory_space<vmem>>, %arg7: memref<32x64xf32, #tpu.memory_space<vmem>>, %arg8: memref<64x32xf32, #tpu.memory_space<vmem>>, %arg9: memref<13x96xf32, #tpu.memory_space<vmem>>, %arg10: memref<16x32xf32, #tpu.memory_space<vmem>>) attributes {dimension_semantics = [], scalar_prefetch = 0 : i64, scratch_operands = 0 : i64, tpu.core_type = #tpu.core_type<tc>} {
    %c0 = arith.constant 0 : index
    %c0_0 = arith.constant 0 : index
    %0 = vector.load %arg0[%c0, %c0_0] : memref<16x32xf32, #tpu.memory_space<vmem>>, vector<16x32xf32>
    %c0_1 = arith.constant 0 : index
    %c0_2 = arith.constant 0 : index
    %1 = vector.load %arg1[%c0_1, %c0_2] : memref<16x32xf32, #tpu.memory_space<vmem>>, vector<16x32xf32>
    %c0_3 = arith.constant 0 : index
    %c0_4 = arith.constant 0 : index
    %2 = vector.load %arg9[%c0_3, %c0_4] : memref<13x96xf32, #tpu.memory_space<vmem>>, vector<1x96xf32>
    %c1 = arith.constant 1 : index
    %c0_5 = arith.constant 0 : index
    %3 = vector.load %arg9[%c1, %c0_5] : memref<13x96xf32, #tpu.memory_space<vmem>>, vector<1x32xf32>
    %c2 = arith.constant 2 : index
    %c0_6 = arith.constant 0 : index
    %4 = vector.load %arg9[%c2, %c0_6] : memref<13x96xf32, #tpu.memory_space<vmem>>, vector<1x32xf32>
    %c3 = arith.constant 3 : index
    %c0_7 = arith.constant 0 : index
    %5 = vector.load %arg9[%c3, %c0_7] : memref<13x96xf32, #tpu.memory_space<vmem>>, vector<1x64xf32>
    %c4 = arith.constant 4 : index
    %c0_8 = arith.constant 0 : index
    %6 = vector.load %arg9[%c4, %c0_8] : memref<13x96xf32, #tpu.memory_space<vmem>>, vector<1x32xf32>
    %c5 = arith.constant 5 : index
    %c0_9 = arith.constant 0 : index
    %7 = vector.load %arg9[%c5, %c0_9] : memref<13x96xf32, #tpu.memory_space<vmem>>, vector<1x64xf32>
    %c6 = arith.constant 6 : index
    %c0_10 = arith.constant 0 : index
    %8 = vector.load %arg9[%c6, %c0_10] : memref<13x96xf32, #tpu.memory_space<vmem>>, vector<1x32xf32>
    %c7 = arith.constant 7 : index
    %c0_11 = arith.constant 0 : index
    %9 = vector.load %arg9[%c7, %c0_11] : memref<13x96xf32, #tpu.memory_space<vmem>>, vector<1x32xf32>
    %c8 = arith.constant 8 : index
    %c0_12 = arith.constant 0 : index
    %10 = vector.load %arg9[%c8, %c0_12] : memref<13x96xf32, #tpu.memory_space<vmem>>, vector<1x32xf32>
    %c9 = arith.constant 9 : index
    %c0_13 = arith.constant 0 : index
    %11 = vector.load %arg9[%c9, %c0_13] : memref<13x96xf32, #tpu.memory_space<vmem>>, vector<1x32xf32>
    %c10 = arith.constant 10 : index
    %c0_14 = arith.constant 0 : index
    %12 = vector.load %arg9[%c10, %c0_14] : memref<13x96xf32, #tpu.memory_space<vmem>>, vector<1x32xf32>
    %c11 = arith.constant 11 : index
    %c0_15 = arith.constant 0 : index
    %13 = vector.load %arg9[%c11, %c0_15] : memref<13x96xf32, #tpu.memory_space<vmem>>, vector<1x32xf32>
    %c12 = arith.constant 12 : index
    %c0_16 = arith.constant 0 : index
    %14 = vector.load %arg9[%c12, %c0_16] : memref<13x96xf32, #tpu.memory_space<vmem>>, vector<1x32xf32>
    %15 = tpu.iota {dimensions = array<i32: 0>} : vector<8x8xi32>
    %16 = tpu.iota {dimensions = array<i32: 1>} : vector<8x8xi32>
    %17 = arith.cmpi sgt, %16, %15 : vector<8x8xi32>
    %cst = arith.constant -1.000000e+30 : f32
    %cst_17 = arith.constant 0.000000e+00 : f32
    %18 = vector.broadcast %cst : f32 to vector<8x8xf32>
    %19 = vector.broadcast %cst_17 : f32 to vector<8x8xf32>
    %20 = arith.select %17, %18, %19 : vector<8x8xi1>, vector<8x8xf32>
    %c0_18 = arith.constant 0 : index
    %c0_19 = arith.constant 0 : index
    %21 = vector.load %arg2[%c0_18, %c0_19] : memref<32x96xf32, #tpu.memory_space<vmem>>, vector<32x96xf32>
    %cst_20 = arith.constant dense<0.000000e+00> : vector<16x96xf32>
    %22 = tpu.matmul %0, %21, %cst_20 {dimension_numbers = #tpu.dot_dimension_numbers<[1], [0], [0], [1], [0, 0, 1, 1], [], []>} : vector<16x32xf32>, vector<32x96xf32>, vector<16x96xf32> -> vector<16x96xf32>
    %23 = vector.broadcast %2 : vector<1x96xf32> to vector<16x96xf32>
    %24 = arith.addf %22, %23 : vector<16x96xf32>
    %25 = vector.extract_strided_slice %24 {offsets = [0, 0], sizes = [16, 32], strides = [1, 1]} : vector<16x96xf32> to vector<16x32xf32>
    %26 = vector.extract_strided_slice %24 {offsets = [0, 32], sizes = [16, 32], strides = [1, 1]} : vector<16x96xf32> to vector<16x32xf32>
    %27 = vector.extract_strided_slice %24 {offsets = [0, 64], sizes = [16, 32], strides = [1, 1]} : vector<16x96xf32> to vector<16x32xf32>
    %c0_21 = arith.constant 0 : index
    %c0_22 = arith.constant 0 : index
    %28 = vector.load %arg3[%c0_21, %c0_22] : memref<32x32xf32, #tpu.memory_space<vmem>>, vector<32x32xf32>
    %29 = vector.extract_strided_slice %28 {offsets = [0, 0], sizes = [8, 32], strides = [1, 1]} : vector<32x32xf32> to vector<8x32xf32>
    %30 = vector.extract_strided_slice %28 {offsets = [8, 0], sizes = [8, 32], strides = [1, 1]} : vector<32x32xf32> to vector<8x32xf32>
    %31 = vector.extract_strided_slice %28 {offsets = [16, 0], sizes = [8, 32], strides = [1, 1]} : vector<32x32xf32> to vector<8x32xf32>
    %32 = vector.extract_strided_slice %28 {offsets = [24, 0], sizes = [8, 32], strides = [1, 1]} : vector<32x32xf32> to vector<8x32xf32>
    %33 = vector.extract_strided_slice %25 {offsets = [0, 0], sizes = [8, 32], strides = [1, 1]} : vector<16x32xf32> to vector<8x32xf32>
    %34 = vector.extract_strided_slice %26 {offsets = [0, 0], sizes = [8, 32], strides = [1, 1]} : vector<16x32xf32> to vector<8x32xf32>
    %35 = vector.extract_strided_slice %27 {offsets = [0, 0], sizes = [8, 32], strides = [1, 1]} : vector<16x32xf32> to vector<8x32xf32>
    %cst_23 = arith.constant 0.000000e+00 : f32
    %36 = vector.broadcast %cst_23 : f32 to vector<8x32xf32>
    %37 = vector.extract_strided_slice %33 {offsets = [0, 0], sizes = [8, 8], strides = [1, 1]} : vector<8x32xf32> to vector<8x8xf32>
    %38 = vector.extract_strided_slice %34 {offsets = [0, 0], sizes = [8, 8], strides = [1, 1]} : vector<8x32xf32> to vector<8x8xf32>
    %39 = vector.extract_strided_slice %35 {offsets = [0, 0], sizes = [8, 8], strides = [1, 1]} : vector<8x32xf32> to vector<8x8xf32>
    %40 = tpu.transpose %38, [1, 0] : vector<8x8xf32> -> vector<8x8xf32>
    %cst_24 = arith.constant dense<0.000000e+00> : vector<8x8xf32>
    %41 = tpu.matmul %37, %40, %cst_24 {dimension_numbers = #tpu.dot_dimension_numbers<[1], [0], [0], [1], [0, 0, 1, 1], [], []>} : vector<8x8xf32>, vector<8x8xf32>, vector<8x8xf32> -> vector<8x8xf32>
    %42 = arith.addf %41, %20 : vector<8x8xf32>
    %cst_25 = arith.constant dense<0xFF800000> : vector<8xf32>
    %43 = vector.multi_reduction <maximumf>, %42, %cst_25 [1] : vector<8x8xf32> to vector<8xf32>
    %44 = vector.shape_cast %43 : vector<8xf32> to vector<8x1xf32>
    %45 = vector.broadcast %44 : vector<8x1xf32> to vector<8x8xf32>
    %46 = arith.subf %42, %45 : vector<8x8xf32>
    %47 = math.exp %46 : vector<8x8xf32>
    %cst_26 = arith.constant dense<0.000000e+00> : vector<8xf32>
    %48 = vector.multi_reduction <add>, %47, %cst_26 [1] : vector<8x8xf32> to vector<8xf32>
    %49 = vector.shape_cast %48 : vector<8xf32> to vector<8x1xf32>
    %50 = tpu.reciprocal %49 {approx = true} : vector<8x1xf32> -> vector<8x1xf32>
    %51 = vector.broadcast %50 : vector<8x1xf32> to vector<8x8xf32>
    %52 = arith.mulf %47, %51 : vector<8x8xf32>
    %cst_27 = arith.constant dense<0.000000e+00> : vector<8x8xf32>
    %53 = tpu.matmul %52, %39, %cst_27 {dimension_numbers = #tpu.dot_dimension_numbers<[1], [0], [0], [1], [0, 0, 1, 1], [], []>} : vector<8x8xf32>, vector<8x8xf32>, vector<8x8xf32> -> vector<8x8xf32>
    %cst_28 = arith.constant dense<0.000000e+00> : vector<8x32xf32>
    %54 = tpu.matmul %53, %29, %cst_28 {dimension_numbers = #tpu.dot_dimension_numbers<[1], [0], [0], [1], [0, 0, 1, 1], [], []>} : vector<8x8xf32>, vector<8x32xf32>, vector<8x32xf32> -> vector<8x32xf32>
    %55 = arith.addf %36, %54 : vector<8x32xf32>
    %56 = vector.extract_strided_slice %33 {offsets = [0, 8], sizes = [8, 8], strides = [1, 1]} : vector<8x32xf32> to vector<8x8xf32>
    %57 = vector.extract_strided_slice %34 {offsets = [0, 8], sizes = [8, 8], strides = [1, 1]} : vector<8x32xf32> to vector<8x8xf32>
    %58 = vector.extract_strided_slice %35 {offsets = [0, 8], sizes = [8, 8], strides = [1, 1]} : vector<8x32xf32> to vector<8x8xf32>
    %59 = tpu.transpose %57, [1, 0] : vector<8x8xf32> -> vector<8x8xf32>
    %cst_29 = arith.constant dense<0.000000e+00> : vector<8x8xf32>
    %60 = tpu.matmul %56, %59, %cst_29 {dimension_numbers = #tpu.dot_dimension_numbers<[1], [0], [0], [1], [0, 0, 1, 1], [], []>} : vector<8x8xf32>, vector<8x8xf32>, vector<8x8xf32> -> vector<8x8xf32>
    %61 = arith.addf %60, %20 : vector<8x8xf32>
    %cst_30 = arith.constant dense<0xFF800000> : vector<8xf32>
    %62 = vector.multi_reduction <maximumf>, %61, %cst_30 [1] : vector<8x8xf32> to vector<8xf32>
    %63 = vector.shape_cast %62 : vector<8xf32> to vector<8x1xf32>
    %64 = vector.broadcast %63 : vector<8x1xf32> to vector<8x8xf32>
    %65 = arith.subf %61, %64 : vector<8x8xf32>
    %66 = math.exp %65 : vector<8x8xf32>
    %cst_31 = arith.constant dense<0.000000e+00> : vector<8xf32>
    %67 = vector.multi_reduction <add>, %66, %cst_31 [1] : vector<8x8xf32> to vector<8xf32>
    %68 = vector.shape_cast %67 : vector<8xf32> to vector<8x1xf32>
    %69 = tpu.reciprocal %68 {approx = true} : vector<8x1xf32> -> vector<8x1xf32>
    %70 = vector.broadcast %69 : vector<8x1xf32> to vector<8x8xf32>
    %71 = arith.mulf %66, %70 : vector<8x8xf32>
    %cst_32 = arith.constant dense<0.000000e+00> : vector<8x8xf32>
    %72 = tpu.matmul %71, %58, %cst_32 {dimension_numbers = #tpu.dot_dimension_numbers<[1], [0], [0], [1], [0, 0, 1, 1], [], []>} : vector<8x8xf32>, vector<8x8xf32>, vector<8x8xf32> -> vector<8x8xf32>
    %cst_33 = arith.constant dense<0.000000e+00> : vector<8x32xf32>
    %73 = tpu.matmul %72, %30, %cst_33 {dimension_numbers = #tpu.dot_dimension_numbers<[1], [0], [0], [1], [0, 0, 1, 1], [], []>} : vector<8x8xf32>, vector<8x32xf32>, vector<8x32xf32> -> vector<8x32xf32>
    %74 = arith.addf %55, %73 : vector<8x32xf32>
    %75 = vector.extract_strided_slice %33 {offsets = [0, 16], sizes = [8, 8], strides = [1, 1]} : vector<8x32xf32> to vector<8x8xf32>
    %76 = vector.extract_strided_slice %34 {offsets = [0, 16], sizes = [8, 8], strides = [1, 1]} : vector<8x32xf32> to vector<8x8xf32>
    %77 = vector.extract_strided_slice %35 {offsets = [0, 16], sizes = [8, 8], strides = [1, 1]} : vector<8x32xf32> to vector<8x8xf32>
    %78 = tpu.transpose %76, [1, 0] : vector<8x8xf32> -> vector<8x8xf32>
    %cst_34 = arith.constant dense<0.000000e+00> : vector<8x8xf32>
    %79 = tpu.matmul %75, %78, %cst_34 {dimension_numbers = #tpu.dot_dimension_numbers<[1], [0], [0], [1], [0, 0, 1, 1], [], []>} : vector<8x8xf32>, vector<8x8xf32>, vector<8x8xf32> -> vector<8x8xf32>
    %80 = arith.addf %79, %20 : vector<8x8xf32>
    %cst_35 = arith.constant dense<0xFF800000> : vector<8xf32>
    %81 = vector.multi_reduction <maximumf>, %80, %cst_35 [1] : vector<8x8xf32> to vector<8xf32>
    %82 = vector.shape_cast %81 : vector<8xf32> to vector<8x1xf32>
    %83 = vector.broadcast %82 : vector<8x1xf32> to vector<8x8xf32>
    %84 = arith.subf %80, %83 : vector<8x8xf32>
    %85 = math.exp %84 : vector<8x8xf32>
    %cst_36 = arith.constant dense<0.000000e+00> : vector<8xf32>
    %86 = vector.multi_reduction <add>, %85, %cst_36 [1] : vector<8x8xf32> to vector<8xf32>
    %87 = vector.shape_cast %86 : vector<8xf32> to vector<8x1xf32>
    %88 = tpu.reciprocal %87 {approx = true} : vector<8x1xf32> -> vector<8x1xf32>
    %89 = vector.broadcast %88 : vector<8x1xf32> to vector<8x8xf32>
    %90 = arith.mulf %85, %89 : vector<8x8xf32>
    %cst_37 = arith.constant dense<0.000000e+00> : vector<8x8xf32>
    %91 = tpu.matmul %90, %77, %cst_37 {dimension_numbers = #tpu.dot_dimension_numbers<[1], [0], [0], [1], [0, 0, 1, 1], [], []>} : vector<8x8xf32>, vector<8x8xf32>, vector<8x8xf32> -> vector<8x8xf32>
    %cst_38 = arith.constant dense<0.000000e+00> : vector<8x32xf32>
    %92 = tpu.matmul %91, %31, %cst_38 {dimension_numbers = #tpu.dot_dimension_numbers<[1], [0], [0], [1], [0, 0, 1, 1], [], []>} : vector<8x8xf32>, vector<8x32xf32>, vector<8x32xf32> -> vector<8x32xf32>
    %93 = arith.addf %74, %92 : vector<8x32xf32>
    %94 = vector.extract_strided_slice %33 {offsets = [0, 24], sizes = [8, 8], strides = [1, 1]} : vector<8x32xf32> to vector<8x8xf32>
    %95 = vector.extract_strided_slice %34 {offsets = [0, 24], sizes = [8, 8], strides = [1, 1]} : vector<8x32xf32> to vector<8x8xf32>
    %96 = vector.extract_strided_slice %35 {offsets = [0, 24], sizes = [8, 8], strides = [1, 1]} : vector<8x32xf32> to vector<8x8xf32>
    %97 = tpu.transpose %95, [1, 0] : vector<8x8xf32> -> vector<8x8xf32>
    %cst_39 = arith.constant dense<0.000000e+00> : vector<8x8xf32>
    %98 = tpu.matmul %94, %97, %cst_39 {dimension_numbers = #tpu.dot_dimension_numbers<[1], [0], [0], [1], [0, 0, 1, 1], [], []>} : vector<8x8xf32>, vector<8x8xf32>, vector<8x8xf32> -> vector<8x8xf32>
    %99 = arith.addf %98, %20 : vector<8x8xf32>
    %cst_40 = arith.constant dense<0xFF800000> : vector<8xf32>
    %100 = vector.multi_reduction <maximumf>, %99, %cst_40 [1] : vector<8x8xf32> to vector<8xf32>
    %101 = vector.shape_cast %100 : vector<8xf32> to vector<8x1xf32>
    %102 = vector.broadcast %101 : vector<8x1xf32> to vector<8x8xf32>
    %103 = arith.subf %99, %102 : vector<8x8xf32>
    %104 = math.exp %103 : vector<8x8xf32>
    %cst_41 = arith.constant dense<0.000000e+00> : vector<8xf32>
    %105 = vector.multi_reduction <add>, %104, %cst_41 [1] : vector<8x8xf32> to vector<8xf32>
    %106 = vector.shape_cast %105 : vector<8xf32> to vector<8x1xf32>
    %107 = tpu.reciprocal %106 {approx = true} : vector<8x1xf32> -> vector<8x1xf32>
    %108 = vector.broadcast %107 : vector<8x1xf32> to vector<8x8xf32>
    %109 = arith.mulf %104, %108 : vector<8x8xf32>
    %cst_42 = arith.constant dense<0.000000e+00> : vector<8x8xf32>
    %110 = tpu.matmul %109, %96, %cst_42 {dimension_numbers = #tpu.dot_dimension_numbers<[1], [0], [0], [1], [0, 0, 1, 1], [], []>} : vector<8x8xf32>, vector<8x8xf32>, vector<8x8xf32> -> vector<8x8xf32>
    %cst_43 = arith.constant dense<0.000000e+00> : vector<8x32xf32>
    %111 = tpu.matmul %110, %32, %cst_43 {dimension_numbers = #tpu.dot_dimension_numbers<[1], [0], [0], [1], [0, 0, 1, 1], [], []>} : vector<8x8xf32>, vector<8x32xf32>, vector<8x32xf32> -> vector<8x32xf32>
    %112 = arith.addf %93, %111 : vector<8x32xf32>
    %113 = vector.extract_strided_slice %25 {offsets = [8, 0], sizes = [8, 32], strides = [1, 1]} : vector<16x32xf32> to vector<8x32xf32>
    %114 = vector.extract_strided_slice %26 {offsets = [8, 0], sizes = [8, 32], strides = [1, 1]} : vector<16x32xf32> to vector<8x32xf32>
    %115 = vector.extract_strided_slice %27 {offsets = [8, 0], sizes = [8, 32], strides = [1, 1]} : vector<16x32xf32> to vector<8x32xf32>
    %cst_44 = arith.constant 0.000000e+00 : f32
    %116 = vector.broadcast %cst_44 : f32 to vector<8x32xf32>
    %117 = vector.extract_strided_slice %113 {offsets = [0, 0], sizes = [8, 8], strides = [1, 1]} : vector<8x32xf32> to vector<8x8xf32>
    %118 = vector.extract_strided_slice %114 {offsets = [0, 0], sizes = [8, 8], strides = [1, 1]} : vector<8x32xf32> to vector<8x8xf32>
    %119 = vector.extract_strided_slice %115 {offsets = [0, 0], sizes = [8, 8], strides = [1, 1]} : vector<8x32xf32> to vector<8x8xf32>
    %120 = tpu.transpose %118, [1, 0] : vector<8x8xf32> -> vector<8x8xf32>
    %cst_45 = arith.constant dense<0.000000e+00> : vector<8x8xf32>
    %121 = tpu.matmul %117, %120, %cst_45 {dimension_numbers = #tpu.dot_dimension_numbers<[1], [0], [0], [1], [0, 0, 1, 1], [], []>} : vector<8x8xf32>, vector<8x8xf32>, vector<8x8xf32> -> vector<8x8xf32>
    %122 = arith.addf %121, %20 : vector<8x8xf32>
    %cst_46 = arith.constant dense<0xFF800000> : vector<8xf32>
    %123 = vector.multi_reduction <maximumf>, %122, %cst_46 [1] : vector<8x8xf32> to vector<8xf32>
    %124 = vector.shape_cast %123 : vector<8xf32> to vector<8x1xf32>
    %125 = vector.broadcast %124 : vector<8x1xf32> to vector<8x8xf32>
    %126 = arith.subf %122, %125 : vector<8x8xf32>
    %127 = math.exp %126 : vector<8x8xf32>
    %cst_47 = arith.constant dense<0.000000e+00> : vector<8xf32>
    %128 = vector.multi_reduction <add>, %127, %cst_47 [1] : vector<8x8xf32> to vector<8xf32>
    %129 = vector.shape_cast %128 : vector<8xf32> to vector<8x1xf32>
    %130 = tpu.reciprocal %129 {approx = true} : vector<8x1xf32> -> vector<8x1xf32>
    %131 = vector.broadcast %130 : vector<8x1xf32> to vector<8x8xf32>
    %132 = arith.mulf %127, %131 : vector<8x8xf32>
    %cst_48 = arith.constant dense<0.000000e+00> : vector<8x8xf32>
    %133 = tpu.matmul %132, %119, %cst_48 {dimension_numbers = #tpu.dot_dimension_numbers<[1], [0], [0], [1], [0, 0, 1, 1], [], []>} : vector<8x8xf32>, vector<8x8xf32>, vector<8x8xf32> -> vector<8x8xf32>
    %cst_49 = arith.constant dense<0.000000e+00> : vector<8x32xf32>
    %134 = tpu.matmul %133, %29, %cst_49 {dimension_numbers = #tpu.dot_dimension_numbers<[1], [0], [0], [1], [0, 0, 1, 1], [], []>} : vector<8x8xf32>, vector<8x32xf32>, vector<8x32xf32> -> vector<8x32xf32>
    %135 = arith.addf %116, %134 : vector<8x32xf32>
    %136 = vector.extract_strided_slice %113 {offsets = [0, 8], sizes = [8, 8], strides = [1, 1]} : vector<8x32xf32> to vector<8x8xf32>
    %137 = vector.extract_strided_slice %114 {offsets = [0, 8], sizes = [8, 8], strides = [1, 1]} : vector<8x32xf32> to vector<8x8xf32>
    %138 = vector.extract_strided_slice %115 {offsets = [0, 8], sizes = [8, 8], strides = [1, 1]} : vector<8x32xf32> to vector<8x8xf32>
    %139 = tpu.transpose %137, [1, 0] : vector<8x8xf32> -> vector<8x8xf32>
    %cst_50 = arith.constant dense<0.000000e+00> : vector<8x8xf32>
    %140 = tpu.matmul %136, %139, %cst_50 {dimension_numbers = #tpu.dot_dimension_numbers<[1], [0], [0], [1], [0, 0, 1, 1], [], []>} : vector<8x8xf32>, vector<8x8xf32>, vector<8x8xf32> -> vector<8x8xf32>
    %141 = arith.addf %140, %20 : vector<8x8xf32>
    %cst_51 = arith.constant dense<0xFF800000> : vector<8xf32>
    %142 = vector.multi_reduction <maximumf>, %141, %cst_51 [1] : vector<8x8xf32> to vector<8xf32>
    %143 = vector.shape_cast %142 : vector<8xf32> to vector<8x1xf32>
    %144 = vector.broadcast %143 : vector<8x1xf32> to vector<8x8xf32>
    %145 = arith.subf %141, %144 : vector<8x8xf32>
    %146 = math.exp %145 : vector<8x8xf32>
    %cst_52 = arith.constant dense<0.000000e+00> : vector<8xf32>
    %147 = vector.multi_reduction <add>, %146, %cst_52 [1] : vector<8x8xf32> to vector<8xf32>
    %148 = vector.shape_cast %147 : vector<8xf32> to vector<8x1xf32>
    %149 = tpu.reciprocal %148 {approx = true} : vector<8x1xf32> -> vector<8x1xf32>
    %150 = vector.broadcast %149 : vector<8x1xf32> to vector<8x8xf32>
    %151 = arith.mulf %146, %150 : vector<8x8xf32>
    %cst_53 = arith.constant dense<0.000000e+00> : vector<8x8xf32>
    %152 = tpu.matmul %151, %138, %cst_53 {dimension_numbers = #tpu.dot_dimension_numbers<[1], [0], [0], [1], [0, 0, 1, 1], [], []>} : vector<8x8xf32>, vector<8x8xf32>, vector<8x8xf32> -> vector<8x8xf32>
    %cst_54 = arith.constant dense<0.000000e+00> : vector<8x32xf32>
    %153 = tpu.matmul %152, %30, %cst_54 {dimension_numbers = #tpu.dot_dimension_numbers<[1], [0], [0], [1], [0, 0, 1, 1], [], []>} : vector<8x8xf32>, vector<8x32xf32>, vector<8x32xf32> -> vector<8x32xf32>
    %154 = arith.addf %135, %153 : vector<8x32xf32>
    %155 = vector.extract_strided_slice %113 {offsets = [0, 16], sizes = [8, 8], strides = [1, 1]} : vector<8x32xf32> to vector<8x8xf32>
    %156 = vector.extract_strided_slice %114 {offsets = [0, 16], sizes = [8, 8], strides = [1, 1]} : vector<8x32xf32> to vector<8x8xf32>
    %157 = vector.extract_strided_slice %115 {offsets = [0, 16], sizes = [8, 8], strides = [1, 1]} : vector<8x32xf32> to vector<8x8xf32>
    %158 = tpu.transpose %156, [1, 0] : vector<8x8xf32> -> vector<8x8xf32>
    %cst_55 = arith.constant dense<0.000000e+00> : vector<8x8xf32>
    %159 = tpu.matmul %155, %158, %cst_55 {dimension_numbers = #tpu.dot_dimension_numbers<[1], [0], [0], [1], [0, 0, 1, 1], [], []>} : vector<8x8xf32>, vector<8x8xf32>, vector<8x8xf32> -> vector<8x8xf32>
    %160 = arith.addf %159, %20 : vector<8x8xf32>
    %cst_56 = arith.constant dense<0xFF800000> : vector<8xf32>
    %161 = vector.multi_reduction <maximumf>, %160, %cst_56 [1] : vector<8x8xf32> to vector<8xf32>
    %162 = vector.shape_cast %161 : vector<8xf32> to vector<8x1xf32>
    %163 = vector.broadcast %162 : vector<8x1xf32> to vector<8x8xf32>
    %164 = arith.subf %160, %163 : vector<8x8xf32>
    %165 = math.exp %164 : vector<8x8xf32>
    %cst_57 = arith.constant dense<0.000000e+00> : vector<8xf32>
    %166 = vector.multi_reduction <add>, %165, %cst_57 [1] : vector<8x8xf32> to vector<8xf32>
    %167 = vector.shape_cast %166 : vector<8xf32> to vector<8x1xf32>
    %168 = tpu.reciprocal %167 {approx = true} : vector<8x1xf32> -> vector<8x1xf32>
    %169 = vector.broadcast %168 : vector<8x1xf32> to vector<8x8xf32>
    %170 = arith.mulf %165, %169 : vector<8x8xf32>
    %cst_58 = arith.constant dense<0.000000e+00> : vector<8x8xf32>
    %171 = tpu.matmul %170, %157, %cst_58 {dimension_numbers = #tpu.dot_dimension_numbers<[1], [0], [0], [1], [0, 0, 1, 1], [], []>} : vector<8x8xf32>, vector<8x8xf32>, vector<8x8xf32> -> vector<8x8xf32>
    %cst_59 = arith.constant dense<0.000000e+00> : vector<8x32xf32>
    %172 = tpu.matmul %171, %31, %cst_59 {dimension_numbers = #tpu.dot_dimension_numbers<[1], [0], [0], [1], [0, 0, 1, 1], [], []>} : vector<8x8xf32>, vector<8x32xf32>, vector<8x32xf32> -> vector<8x32xf32>
    %173 = arith.addf %154, %172 : vector<8x32xf32>
    %174 = vector.extract_strided_slice %113 {offsets = [0, 24], sizes = [8, 8], strides = [1, 1]} : vector<8x32xf32> to vector<8x8xf32>
    %175 = vector.extract_strided_slice %114 {offsets = [0, 24], sizes = [8, 8], strides = [1, 1]} : vector<8x32xf32> to vector<8x8xf32>
    %176 = vector.extract_strided_slice %115 {offsets = [0, 24], sizes = [8, 8], strides = [1, 1]} : vector<8x32xf32> to vector<8x8xf32>
    %177 = tpu.transpose %175, [1, 0] : vector<8x8xf32> -> vector<8x8xf32>
    %cst_60 = arith.constant dense<0.000000e+00> : vector<8x8xf32>
    %178 = tpu.matmul %174, %177, %cst_60 {dimension_numbers = #tpu.dot_dimension_numbers<[1], [0], [0], [1], [0, 0, 1, 1], [], []>} : vector<8x8xf32>, vector<8x8xf32>, vector<8x8xf32> -> vector<8x8xf32>
    %179 = arith.addf %178, %20 : vector<8x8xf32>
    %cst_61 = arith.constant dense<0xFF800000> : vector<8xf32>
    %180 = vector.multi_reduction <maximumf>, %179, %cst_61 [1] : vector<8x8xf32> to vector<8xf32>
    %181 = vector.shape_cast %180 : vector<8xf32> to vector<8x1xf32>
    %182 = vector.broadcast %181 : vector<8x1xf32> to vector<8x8xf32>
    %183 = arith.subf %179, %182 : vector<8x8xf32>
    %184 = math.exp %183 : vector<8x8xf32>
    %cst_62 = arith.constant dense<0.000000e+00> : vector<8xf32>
    %185 = vector.multi_reduction <add>, %184, %cst_62 [1] : vector<8x8xf32> to vector<8xf32>
    %186 = vector.shape_cast %185 : vector<8xf32> to vector<8x1xf32>
    %187 = tpu.reciprocal %186 {approx = true} : vector<8x1xf32> -> vector<8x1xf32>
    %188 = vector.broadcast %187 : vector<8x1xf32> to vector<8x8xf32>
    %189 = arith.mulf %184, %188 : vector<8x8xf32>
    %cst_63 = arith.constant dense<0.000000e+00> : vector<8x8xf32>
    %190 = tpu.matmul %189, %176, %cst_63 {dimension_numbers = #tpu.dot_dimension_numbers<[1], [0], [0], [1], [0, 0, 1, 1], [], []>} : vector<8x8xf32>, vector<8x8xf32>, vector<8x8xf32> -> vector<8x8xf32>
    %cst_64 = arith.constant dense<0.000000e+00> : vector<8x32xf32>
    %191 = tpu.matmul %190, %32, %cst_64 {dimension_numbers = #tpu.dot_dimension_numbers<[1], [0], [0], [1], [0, 0, 1, 1], [], []>} : vector<8x8xf32>, vector<8x32xf32>, vector<8x32xf32> -> vector<8x32xf32>
    %192 = arith.addf %173, %191 : vector<8x32xf32>
    %193 = tpu.concatenate %112, %192 in 0 : vector<8x32xf32>, vector<8x32xf32> -> vector<16x32xf32>
    %194 = vector.broadcast %3 : vector<1x32xf32> to vector<16x32xf32>
    %195 = arith.addf %193, %194 : vector<16x32xf32>
    %196 = arith.addf %195, %0 : vector<16x32xf32>
    %cst_65 = arith.constant dense<0.000000e+00> : vector<16xf32>
    %197 = vector.multi_reduction <add>, %196, %cst_65 [1] : vector<16x32xf32> to vector<16xf32>
    %198 = vector.shape_cast %197 : vector<16xf32> to vector<16x1xf32>
    %cst_66 = arith.constant 3.200000e+01 : f32
    %199 = vector.broadcast %cst_66 : f32 to vector<16x1xf32>
    %200 = arith.divf %198, %199 : vector<16x1xf32>
    %201 = vector.broadcast %200 : vector<16x1xf32> to vector<16x32xf32>
    %202 = arith.subf %196, %201 : vector<16x32xf32>
    %203 = vector.broadcast %200 : vector<16x1xf32> to vector<16x32xf32>
    %204 = arith.subf %196, %203 : vector<16x32xf32>
    %205 = arith.mulf %202, %204 : vector<16x32xf32>
    %cst_67 = arith.constant dense<0.000000e+00> : vector<16xf32>
    %206 = vector.multi_reduction <add>, %205, %cst_67 [1] : vector<16x32xf32> to vector<16xf32>
    %207 = vector.shape_cast %206 : vector<16xf32> to vector<16x1xf32>
    %cst_68 = arith.constant 3.200000e+01 : f32
    %208 = vector.broadcast %cst_68 : f32 to vector<16x1xf32>
    %209 = arith.divf %207, %208 : vector<16x1xf32>
    %210 = vector.broadcast %200 : vector<16x1xf32> to vector<16x32xf32>
    %211 = arith.subf %196, %210 : vector<16x32xf32>
    %cst_69 = arith.constant 9.99999974E-6 : f32
    %212 = vector.broadcast %cst_69 : f32 to vector<16x1xf32>
    %213 = arith.addf %209, %212 : vector<16x1xf32>
    %214 = math.rsqrt %213 : vector<16x1xf32>
    %215 = vector.broadcast %214 : vector<16x1xf32> to vector<16x32xf32>
    %216 = arith.mulf %211, %215 : vector<16x32xf32>
    %217 = vector.broadcast %9 : vector<1x32xf32> to vector<16x32xf32>
    %218 = arith.mulf %216, %217 : vector<16x32xf32>
    %219 = vector.broadcast %10 : vector<1x32xf32> to vector<16x32xf32>
    %220 = arith.addf %218, %219 : vector<16x32xf32>
    %c0_70 = arith.constant 0 : index
    %c0_71 = arith.constant 0 : index
    %221 = vector.load %arg4[%c0_70, %c0_71] : memref<32x32xf32, #tpu.memory_space<vmem>>, vector<32x32xf32>
    %cst_72 = arith.constant dense<0.000000e+00> : vector<16x32xf32>
    %222 = tpu.matmul %220, %221, %cst_72 {dimension_numbers = #tpu.dot_dimension_numbers<[1], [0], [0], [1], [0, 0, 1, 1], [], []>} : vector<16x32xf32>, vector<32x32xf32>, vector<16x32xf32> -> vector<16x32xf32>
    %223 = vector.broadcast %4 : vector<1x32xf32> to vector<16x32xf32>
    %224 = arith.addf %222, %223 : vector<16x32xf32>
    %c0_73 = arith.constant 0 : index
    %c0_74 = arith.constant 0 : index
    %225 = vector.load %arg5[%c0_73, %c0_74] : memref<32x64xf32, #tpu.memory_space<vmem>>, vector<32x64xf32>
    %cst_75 = arith.constant dense<0.000000e+00> : vector<16x64xf32>
    %226 = tpu.matmul %1, %225, %cst_75 {dimension_numbers = #tpu.dot_dimension_numbers<[1], [0], [0], [1], [0, 0, 1, 1], [], []>} : vector<16x32xf32>, vector<32x64xf32>, vector<16x64xf32> -> vector<16x64xf32>
    %227 = vector.broadcast %5 : vector<1x64xf32> to vector<16x64xf32>
    %228 = arith.addf %226, %227 : vector<16x64xf32>
    %229 = vector.extract_strided_slice %228 {offsets = [0, 0], sizes = [16, 32], strides = [1, 1]} : vector<16x64xf32> to vector<16x32xf32>
    %230 = vector.extract_strided_slice %228 {offsets = [0, 32], sizes = [16, 32], strides = [1, 1]} : vector<16x64xf32> to vector<16x32xf32>
    %c0_76 = arith.constant 0 : index
    %c0_77 = arith.constant 0 : index
    %231 = vector.load %arg6[%c0_76, %c0_77] : memref<32x32xf32, #tpu.memory_space<vmem>>, vector<32x32xf32>
    %232 = vector.extract_strided_slice %231 {offsets = [0, 0], sizes = [8, 32], strides = [1, 1]} : vector<32x32xf32> to vector<8x32xf32>
    %233 = vector.extract_strided_slice %231 {offsets = [8, 0], sizes = [8, 32], strides = [1, 1]} : vector<32x32xf32> to vector<8x32xf32>
    %234 = vector.extract_strided_slice %231 {offsets = [16, 0], sizes = [8, 32], strides = [1, 1]} : vector<32x32xf32> to vector<8x32xf32>
    %235 = vector.extract_strided_slice %231 {offsets = [24, 0], sizes = [8, 32], strides = [1, 1]} : vector<32x32xf32> to vector<8x32xf32>
    %236 = vector.extract_strided_slice %224 {offsets = [0, 0], sizes = [8, 32], strides = [1, 1]} : vector<16x32xf32> to vector<8x32xf32>
    %237 = vector.extract_strided_slice %229 {offsets = [0, 0], sizes = [8, 32], strides = [1, 1]} : vector<16x32xf32> to vector<8x32xf32>
    %238 = vector.extract_strided_slice %230 {offsets = [0, 0], sizes = [8, 32], strides = [1, 1]} : vector<16x32xf32> to vector<8x32xf32>
    %cst_78 = arith.constant 0.000000e+00 : f32
    %239 = vector.broadcast %cst_78 : f32 to vector<8x32xf32>
    %240 = vector.extract_strided_slice %236 {offsets = [0, 0], sizes = [8, 8], strides = [1, 1]} : vector<8x32xf32> to vector<8x8xf32>
    %241 = vector.extract_strided_slice %237 {offsets = [0, 0], sizes = [8, 8], strides = [1, 1]} : vector<8x32xf32> to vector<8x8xf32>
    %242 = vector.extract_strided_slice %238 {offsets = [0, 0], sizes = [8, 8], strides = [1, 1]} : vector<8x32xf32> to vector<8x8xf32>
    %243 = tpu.transpose %241, [1, 0] : vector<8x8xf32> -> vector<8x8xf32>
    %cst_79 = arith.constant dense<0.000000e+00> : vector<8x8xf32>
    %244 = tpu.matmul %240, %243, %cst_79 {dimension_numbers = #tpu.dot_dimension_numbers<[1], [0], [0], [1], [0, 0, 1, 1], [], []>} : vector<8x8xf32>, vector<8x8xf32>, vector<8x8xf32> -> vector<8x8xf32>
    %cst_80 = arith.constant dense<0xFF800000> : vector<8xf32>
    %245 = vector.multi_reduction <maximumf>, %244, %cst_80 [1] : vector<8x8xf32> to vector<8xf32>
    %246 = vector.shape_cast %245 : vector<8xf32> to vector<8x1xf32>
    %247 = vector.broadcast %246 : vector<8x1xf32> to vector<8x8xf32>
    %248 = arith.subf %244, %247 : vector<8x8xf32>
    %249 = math.exp %248 : vector<8x8xf32>
    %cst_81 = arith.constant dense<0.000000e+00> : vector<8xf32>
    %250 = vector.multi_reduction <add>, %249, %cst_81 [1] : vector<8x8xf32> to vector<8xf32>
    %251 = vector.shape_cast %250 : vector<8xf32> to vector<8x1xf32>
    %252 = tpu.reciprocal %251 {approx = true} : vector<8x1xf32> -> vector<8x1xf32>
    %253 = vector.broadcast %252 : vector<8x1xf32> to vector<8x8xf32>
    %254 = arith.mulf %249, %253 : vector<8x8xf32>
    %cst_82 = arith.constant dense<0.000000e+00> : vector<8x8xf32>
    %255 = tpu.matmul %254, %242, %cst_82 {dimension_numbers = #tpu.dot_dimension_numbers<[1], [0], [0], [1], [0, 0, 1, 1], [], []>} : vector<8x8xf32>, vector<8x8xf32>, vector<8x8xf32> -> vector<8x8xf32>
    %cst_83 = arith.constant dense<0.000000e+00> : vector<8x32xf32>
    %256 = tpu.matmul %255, %232, %cst_83 {dimension_numbers = #tpu.dot_dimension_numbers<[1], [0], [0], [1], [0, 0, 1, 1], [], []>} : vector<8x8xf32>, vector<8x32xf32>, vector<8x32xf32> -> vector<8x32xf32>
    %257 = arith.addf %239, %256 : vector<8x32xf32>
    %258 = vector.extract_strided_slice %236 {offsets = [0, 8], sizes = [8, 8], strides = [1, 1]} : vector<8x32xf32> to vector<8x8xf32>
    %259 = vector.extract_strided_slice %237 {offsets = [0, 8], sizes = [8, 8], strides = [1, 1]} : vector<8x32xf32> to vector<8x8xf32>
    %260 = vector.extract_strided_slice %238 {offsets = [0, 8], sizes = [8, 8], strides = [1, 1]} : vector<8x32xf32> to vector<8x8xf32>
    %261 = tpu.transpose %259, [1, 0] : vector<8x8xf32> -> vector<8x8xf32>
    %cst_84 = arith.constant dense<0.000000e+00> : vector<8x8xf32>
    %262 = tpu.matmul %258, %261, %cst_84 {dimension_numbers = #tpu.dot_dimension_numbers<[1], [0], [0], [1], [0, 0, 1, 1], [], []>} : vector<8x8xf32>, vector<8x8xf32>, vector<8x8xf32> -> vector<8x8xf32>
    %cst_85 = arith.constant dense<0xFF800000> : vector<8xf32>
    %263 = vector.multi_reduction <maximumf>, %262, %cst_85 [1] : vector<8x8xf32> to vector<8xf32>
    %264 = vector.shape_cast %263 : vector<8xf32> to vector<8x1xf32>
    %265 = vector.broadcast %264 : vector<8x1xf32> to vector<8x8xf32>
    %266 = arith.subf %262, %265 : vector<8x8xf32>
    %267 = math.exp %266 : vector<8x8xf32>
    %cst_86 = arith.constant dense<0.000000e+00> : vector<8xf32>
    %268 = vector.multi_reduction <add>, %267, %cst_86 [1] : vector<8x8xf32> to vector<8xf32>
    %269 = vector.shape_cast %268 : vector<8xf32> to vector<8x1xf32>
    %270 = tpu.reciprocal %269 {approx = true} : vector<8x1xf32> -> vector<8x1xf32>
    %271 = vector.broadcast %270 : vector<8x1xf32> to vector<8x8xf32>
    %272 = arith.mulf %267, %271 : vector<8x8xf32>
    %cst_87 = arith.constant dense<0.000000e+00> : vector<8x8xf32>
    %273 = tpu.matmul %272, %260, %cst_87 {dimension_numbers = #tpu.dot_dimension_numbers<[1], [0], [0], [1], [0, 0, 1, 1], [], []>} : vector<8x8xf32>, vector<8x8xf32>, vector<8x8xf32> -> vector<8x8xf32>
    %cst_88 = arith.constant dense<0.000000e+00> : vector<8x32xf32>
    %274 = tpu.matmul %273, %233, %cst_88 {dimension_numbers = #tpu.dot_dimension_numbers<[1], [0], [0], [1], [0, 0, 1, 1], [], []>} : vector<8x8xf32>, vector<8x32xf32>, vector<8x32xf32> -> vector<8x32xf32>
    %275 = arith.addf %257, %274 : vector<8x32xf32>
    %276 = vector.extract_strided_slice %236 {offsets = [0, 16], sizes = [8, 8], strides = [1, 1]} : vector<8x32xf32> to vector<8x8xf32>
    %277 = vector.extract_strided_slice %237 {offsets = [0, 16], sizes = [8, 8], strides = [1, 1]} : vector<8x32xf32> to vector<8x8xf32>
    %278 = vector.extract_strided_slice %238 {offsets = [0, 16], sizes = [8, 8], strides = [1, 1]} : vector<8x32xf32> to vector<8x8xf32>
    %279 = tpu.transpose %277, [1, 0] : vector<8x8xf32> -> vector<8x8xf32>
    %cst_89 = arith.constant dense<0.000000e+00> : vector<8x8xf32>
    %280 = tpu.matmul %276, %279, %cst_89 {dimension_numbers = #tpu.dot_dimension_numbers<[1], [0], [0], [1], [0, 0, 1, 1], [], []>} : vector<8x8xf32>, vector<8x8xf32>, vector<8x8xf32> -> vector<8x8xf32>
    %cst_90 = arith.constant dense<0xFF800000> : vector<8xf32>
    %281 = vector.multi_reduction <maximumf>, %280, %cst_90 [1] : vector<8x8xf32> to vector<8xf32>
    %282 = vector.shape_cast %281 : vector<8xf32> to vector<8x1xf32>
    %283 = vector.broadcast %282 : vector<8x1xf32> to vector<8x8xf32>
    %284 = arith.subf %280, %283 : vector<8x8xf32>
    %285 = math.exp %284 : vector<8x8xf32>
    %cst_91 = arith.constant dense<0.000000e+00> : vector<8xf32>
    %286 = vector.multi_reduction <add>, %285, %cst_91 [1] : vector<8x8xf32> to vector<8xf32>
    %287 = vector.shape_cast %286 : vector<8xf32> to vector<8x1xf32>
    %288 = tpu.reciprocal %287 {approx = true} : vector<8x1xf32> -> vector<8x1xf32>
    %289 = vector.broadcast %288 : vector<8x1xf32> to vector<8x8xf32>
    %290 = arith.mulf %285, %289 : vector<8x8xf32>
    %cst_92 = arith.constant dense<0.000000e+00> : vector<8x8xf32>
    %291 = tpu.matmul %290, %278, %cst_92 {dimension_numbers = #tpu.dot_dimension_numbers<[1], [0], [0], [1], [0, 0, 1, 1], [], []>} : vector<8x8xf32>, vector<8x8xf32>, vector<8x8xf32> -> vector<8x8xf32>
    %cst_93 = arith.constant dense<0.000000e+00> : vector<8x32xf32>
    %292 = tpu.matmul %291, %234, %cst_93 {dimension_numbers = #tpu.dot_dimension_numbers<[1], [0], [0], [1], [0, 0, 1, 1], [], []>} : vector<8x8xf32>, vector<8x32xf32>, vector<8x32xf32> -> vector<8x32xf32>
    %293 = arith.addf %275, %292 : vector<8x32xf32>
    %294 = vector.extract_strided_slice %236 {offsets = [0, 24], sizes = [8, 8], strides = [1, 1]} : vector<8x32xf32> to vector<8x8xf32>
    %295 = vector.extract_strided_slice %237 {offsets = [0, 24], sizes = [8, 8], strides = [1, 1]} : vector<8x32xf32> to vector<8x8xf32>
    %296 = vector.extract_strided_slice %238 {offsets = [0, 24], sizes = [8, 8], strides = [1, 1]} : vector<8x32xf32> to vector<8x8xf32>
    %297 = tpu.transpose %295, [1, 0] : vector<8x8xf32> -> vector<8x8xf32>
    %cst_94 = arith.constant dense<0.000000e+00> : vector<8x8xf32>
    %298 = tpu.matmul %294, %297, %cst_94 {dimension_numbers = #tpu.dot_dimension_numbers<[1], [0], [0], [1], [0, 0, 1, 1], [], []>} : vector<8x8xf32>, vector<8x8xf32>, vector<8x8xf32> -> vector<8x8xf32>
    %cst_95 = arith.constant dense<0xFF800000> : vector<8xf32>
    %299 = vector.multi_reduction <maximumf>, %298, %cst_95 [1] : vector<8x8xf32> to vector<8xf32>
    %300 = vector.shape_cast %299 : vector<8xf32> to vector<8x1xf32>
    %301 = vector.broadcast %300 : vector<8x1xf32> to vector<8x8xf32>
    %302 = arith.subf %298, %301 : vector<8x8xf32>
    %303 = math.exp %302 : vector<8x8xf32>
    %cst_96 = arith.constant dense<0.000000e+00> : vector<8xf32>
    %304 = vector.multi_reduction <add>, %303, %cst_96 [1] : vector<8x8xf32> to vector<8xf32>
    %305 = vector.shape_cast %304 : vector<8xf32> to vector<8x1xf32>
    %306 = tpu.reciprocal %305 {approx = true} : vector<8x1xf32> -> vector<8x1xf32>
    %307 = vector.broadcast %306 : vector<8x1xf32> to vector<8x8xf32>
    %308 = arith.mulf %303, %307 : vector<8x8xf32>
    %cst_97 = arith.constant dense<0.000000e+00> : vector<8x8xf32>
    %309 = tpu.matmul %308, %296, %cst_97 {dimension_numbers = #tpu.dot_dimension_numbers<[1], [0], [0], [1], [0, 0, 1, 1], [], []>} : vector<8x8xf32>, vector<8x8xf32>, vector<8x8xf32> -> vector<8x8xf32>
    %cst_98 = arith.constant dense<0.000000e+00> : vector<8x32xf32>
    %310 = tpu.matmul %309, %235, %cst_98 {dimension_numbers = #tpu.dot_dimension_numbers<[1], [0], [0], [1], [0, 0, 1, 1], [], []>} : vector<8x8xf32>, vector<8x32xf32>, vector<8x32xf32> -> vector<8x32xf32>
    %311 = arith.addf %293, %310 : vector<8x32xf32>
    %312 = vector.extract_strided_slice %224 {offsets = [8, 0], sizes = [8, 32], strides = [1, 1]} : vector<16x32xf32> to vector<8x32xf32>
    %313 = vector.extract_strided_slice %229 {offsets = [8, 0], sizes = [8, 32], strides = [1, 1]} : vector<16x32xf32> to vector<8x32xf32>
    %314 = vector.extract_strided_slice %230 {offsets = [8, 0], sizes = [8, 32], strides = [1, 1]} : vector<16x32xf32> to vector<8x32xf32>
    %cst_99 = arith.constant 0.000000e+00 : f32
    %315 = vector.broadcast %cst_99 : f32 to vector<8x32xf32>
    %316 = vector.extract_strided_slice %312 {offsets = [0, 0], sizes = [8, 8], strides = [1, 1]} : vector<8x32xf32> to vector<8x8xf32>
    %317 = vector.extract_strided_slice %313 {offsets = [0, 0], sizes = [8, 8], strides = [1, 1]} : vector<8x32xf32> to vector<8x8xf32>
    %318 = vector.extract_strided_slice %314 {offsets = [0, 0], sizes = [8, 8], strides = [1, 1]} : vector<8x32xf32> to vector<8x8xf32>
    %319 = tpu.transpose %317, [1, 0] : vector<8x8xf32> -> vector<8x8xf32>
    %cst_100 = arith.constant dense<0.000000e+00> : vector<8x8xf32>
    %320 = tpu.matmul %316, %319, %cst_100 {dimension_numbers = #tpu.dot_dimension_numbers<[1], [0], [0], [1], [0, 0, 1, 1], [], []>} : vector<8x8xf32>, vector<8x8xf32>, vector<8x8xf32> -> vector<8x8xf32>
    %cst_101 = arith.constant dense<0xFF800000> : vector<8xf32>
    %321 = vector.multi_reduction <maximumf>, %320, %cst_101 [1] : vector<8x8xf32> to vector<8xf32>
    %322 = vector.shape_cast %321 : vector<8xf32> to vector<8x1xf32>
    %323 = vector.broadcast %322 : vector<8x1xf32> to vector<8x8xf32>
    %324 = arith.subf %320, %323 : vector<8x8xf32>
    %325 = math.exp %324 : vector<8x8xf32>
    %cst_102 = arith.constant dense<0.000000e+00> : vector<8xf32>
    %326 = vector.multi_reduction <add>, %325, %cst_102 [1] : vector<8x8xf32> to vector<8xf32>
    %327 = vector.shape_cast %326 : vector<8xf32> to vector<8x1xf32>
    %328 = tpu.reciprocal %327 {approx = true} : vector<8x1xf32> -> vector<8x1xf32>
    %329 = vector.broadcast %328 : vector<8x1xf32> to vector<8x8xf32>
    %330 = arith.mulf %325, %329 : vector<8x8xf32>
    %cst_103 = arith.constant dense<0.000000e+00> : vector<8x8xf32>
    %331 = tpu.matmul %330, %318, %cst_103 {dimension_numbers = #tpu.dot_dimension_numbers<[1], [0], [0], [1], [0, 0, 1, 1], [], []>} : vector<8x8xf32>, vector<8x8xf32>, vector<8x8xf32> -> vector<8x8xf32>
    %cst_104 = arith.constant dense<0.000000e+00> : vector<8x32xf32>
    %332 = tpu.matmul %331, %232, %cst_104 {dimension_numbers = #tpu.dot_dimension_numbers<[1], [0], [0], [1], [0, 0, 1, 1], [], []>} : vector<8x8xf32>, vector<8x32xf32>, vector<8x32xf32> -> vector<8x32xf32>
    %333 = arith.addf %315, %332 : vector<8x32xf32>
    %334 = vector.extract_strided_slice %312 {offsets = [0, 8], sizes = [8, 8], strides = [1, 1]} : vector<8x32xf32> to vector<8x8xf32>
    %335 = vector.extract_strided_slice %313 {offsets = [0, 8], sizes = [8, 8], strides = [1, 1]} : vector<8x32xf32> to vector<8x8xf32>
    %336 = vector.extract_strided_slice %314 {offsets = [0, 8], sizes = [8, 8], strides = [1, 1]} : vector<8x32xf32> to vector<8x8xf32>
    %337 = tpu.transpose %335, [1, 0] : vector<8x8xf32> -> vector<8x8xf32>
    %cst_105 = arith.constant dense<0.000000e+00> : vector<8x8xf32>
    %338 = tpu.matmul %334, %337, %cst_105 {dimension_numbers = #tpu.dot_dimension_numbers<[1], [0], [0], [1], [0, 0, 1, 1], [], []>} : vector<8x8xf32>, vector<8x8xf32>, vector<8x8xf32> -> vector<8x8xf32>
    %cst_106 = arith.constant dense<0xFF800000> : vector<8xf32>
    %339 = vector.multi_reduction <maximumf>, %338, %cst_106 [1] : vector<8x8xf32> to vector<8xf32>
    %340 = vector.shape_cast %339 : vector<8xf32> to vector<8x1xf32>
    %341 = vector.broadcast %340 : vector<8x1xf32> to vector<8x8xf32>
    %342 = arith.subf %338, %341 : vector<8x8xf32>
    %343 = math.exp %342 : vector<8x8xf32>
    %cst_107 = arith.constant dense<0.000000e+00> : vector<8xf32>
    %344 = vector.multi_reduction <add>, %343, %cst_107 [1] : vector<8x8xf32> to vector<8xf32>
    %345 = vector.shape_cast %344 : vector<8xf32> to vector<8x1xf32>
    %346 = tpu.reciprocal %345 {approx = true} : vector<8x1xf32> -> vector<8x1xf32>
    %347 = vector.broadcast %346 : vector<8x1xf32> to vector<8x8xf32>
    %348 = arith.mulf %343, %347 : vector<8x8xf32>
    %cst_108 = arith.constant dense<0.000000e+00> : vector<8x8xf32>
    %349 = tpu.matmul %348, %336, %cst_108 {dimension_numbers = #tpu.dot_dimension_numbers<[1], [0], [0], [1], [0, 0, 1, 1], [], []>} : vector<8x8xf32>, vector<8x8xf32>, vector<8x8xf32> -> vector<8x8xf32>
    %cst_109 = arith.constant dense<0.000000e+00> : vector<8x32xf32>
    %350 = tpu.matmul %349, %233, %cst_109 {dimension_numbers = #tpu.dot_dimension_numbers<[1], [0], [0], [1], [0, 0, 1, 1], [], []>} : vector<8x8xf32>, vector<8x32xf32>, vector<8x32xf32> -> vector<8x32xf32>
    %351 = arith.addf %333, %350 : vector<8x32xf32>
    %352 = vector.extract_strided_slice %312 {offsets = [0, 16], sizes = [8, 8], strides = [1, 1]} : vector<8x32xf32> to vector<8x8xf32>
    %353 = vector.extract_strided_slice %313 {offsets = [0, 16], sizes = [8, 8], strides = [1, 1]} : vector<8x32xf32> to vector<8x8xf32>
    %354 = vector.extract_strided_slice %314 {offsets = [0, 16], sizes = [8, 8], strides = [1, 1]} : vector<8x32xf32> to vector<8x8xf32>
    %355 = tpu.transpose %353, [1, 0] : vector<8x8xf32> -> vector<8x8xf32>
    %cst_110 = arith.constant dense<0.000000e+00> : vector<8x8xf32>
    %356 = tpu.matmul %352, %355, %cst_110 {dimension_numbers = #tpu.dot_dimension_numbers<[1], [0], [0], [1], [0, 0, 1, 1], [], []>} : vector<8x8xf32>, vector<8x8xf32>, vector<8x8xf32> -> vector<8x8xf32>
    %cst_111 = arith.constant dense<0xFF800000> : vector<8xf32>
    %357 = vector.multi_reduction <maximumf>, %356, %cst_111 [1] : vector<8x8xf32> to vector<8xf32>
    %358 = vector.shape_cast %357 : vector<8xf32> to vector<8x1xf32>
    %359 = vector.broadcast %358 : vector<8x1xf32> to vector<8x8xf32>
    %360 = arith.subf %356, %359 : vector<8x8xf32>
    %361 = math.exp %360 : vector<8x8xf32>
    %cst_112 = arith.constant dense<0.000000e+00> : vector<8xf32>
    %362 = vector.multi_reduction <add>, %361, %cst_112 [1] : vector<8x8xf32> to vector<8xf32>
    %363 = vector.shape_cast %362 : vector<8xf32> to vector<8x1xf32>
    %364 = tpu.reciprocal %363 {approx = true} : vector<8x1xf32> -> vector<8x1xf32>
    %365 = vector.broadcast %364 : vector<8x1xf32> to vector<8x8xf32>
    %366 = arith.mulf %361, %365 : vector<8x8xf32>
    %cst_113 = arith.constant dense<0.000000e+00> : vector<8x8xf32>
    %367 = tpu.matmul %366, %354, %cst_113 {dimension_numbers = #tpu.dot_dimension_numbers<[1], [0], [0], [1], [0, 0, 1, 1], [], []>} : vector<8x8xf32>, vector<8x8xf32>, vector<8x8xf32> -> vector<8x8xf32>
    %cst_114 = arith.constant dense<0.000000e+00> : vector<8x32xf32>
    %368 = tpu.matmul %367, %234, %cst_114 {dimension_numbers = #tpu.dot_dimension_numbers<[1], [0], [0], [1], [0, 0, 1, 1], [], []>} : vector<8x8xf32>, vector<8x32xf32>, vector<8x32xf32> -> vector<8x32xf32>
    %369 = arith.addf %351, %368 : vector<8x32xf32>
    %370 = vector.extract_strided_slice %312 {offsets = [0, 24], sizes = [8, 8], strides = [1, 1]} : vector<8x32xf32> to vector<8x8xf32>
    %371 = vector.extract_strided_slice %313 {offsets = [0, 24], sizes = [8, 8], strides = [1, 1]} : vector<8x32xf32> to vector<8x8xf32>
    %372 = vector.extract_strided_slice %314 {offsets = [0, 24], sizes = [8, 8], strides = [1, 1]} : vector<8x32xf32> to vector<8x8xf32>
    %373 = tpu.transpose %371, [1, 0] : vector<8x8xf32> -> vector<8x8xf32>
    %cst_115 = arith.constant dense<0.000000e+00> : vector<8x8xf32>
    %374 = tpu.matmul %370, %373, %cst_115 {dimension_numbers = #tpu.dot_dimension_numbers<[1], [0], [0], [1], [0, 0, 1, 1], [], []>} : vector<8x8xf32>, vector<8x8xf32>, vector<8x8xf32> -> vector<8x8xf32>
    %cst_116 = arith.constant dense<0xFF800000> : vector<8xf32>
    %375 = vector.multi_reduction <maximumf>, %374, %cst_116 [1] : vector<8x8xf32> to vector<8xf32>
    %376 = vector.shape_cast %375 : vector<8xf32> to vector<8x1xf32>
    %377 = vector.broadcast %376 : vector<8x1xf32> to vector<8x8xf32>
    %378 = arith.subf %374, %377 : vector<8x8xf32>
    %379 = math.exp %378 : vector<8x8xf32>
    %cst_117 = arith.constant dense<0.000000e+00> : vector<8xf32>
    %380 = vector.multi_reduction <add>, %379, %cst_117 [1] : vector<8x8xf32> to vector<8xf32>
    %381 = vector.shape_cast %380 : vector<8xf32> to vector<8x1xf32>
    %382 = tpu.reciprocal %381 {approx = true} : vector<8x1xf32> -> vector<8x1xf32>
    %383 = vector.broadcast %382 : vector<8x1xf32> to vector<8x8xf32>
    %384 = arith.mulf %379, %383 : vector<8x8xf32>
    %cst_118 = arith.constant dense<0.000000e+00> : vector<8x8xf32>
    %385 = tpu.matmul %384, %372, %cst_118 {dimension_numbers = #tpu.dot_dimension_numbers<[1], [0], [0], [1], [0, 0, 1, 1], [], []>} : vector<8x8xf32>, vector<8x8xf32>, vector<8x8xf32> -> vector<8x8xf32>
    %cst_119 = arith.constant dense<0.000000e+00> : vector<8x32xf32>
    %386 = tpu.matmul %385, %235, %cst_119 {dimension_numbers = #tpu.dot_dimension_numbers<[1], [0], [0], [1], [0, 0, 1, 1], [], []>} : vector<8x8xf32>, vector<8x32xf32>, vector<8x32xf32> -> vector<8x32xf32>
    %387 = arith.addf %369, %386 : vector<8x32xf32>
    %388 = tpu.concatenate %311, %387 in 0 : vector<8x32xf32>, vector<8x32xf32> -> vector<16x32xf32>
    %389 = vector.broadcast %6 : vector<1x32xf32> to vector<16x32xf32>
    %390 = arith.addf %388, %389 : vector<16x32xf32>
    %391 = arith.addf %390, %220 : vector<16x32xf32>
    %cst_120 = arith.constant dense<0.000000e+00> : vector<16xf32>
    %392 = vector.multi_reduction <add>, %391, %cst_120 [1] : vector<16x32xf32> to vector<16xf32>
    %393 = vector.shape_cast %392 : vector<16xf32> to vector<16x1xf32>
    %cst_121 = arith.constant 3.200000e+01 : f32
    %394 = vector.broadcast %cst_121 : f32 to vector<16x1xf32>
    %395 = arith.divf %393, %394 : vector<16x1xf32>
    %396 = vector.broadcast %395 : vector<16x1xf32> to vector<16x32xf32>
    %397 = arith.subf %391, %396 : vector<16x32xf32>
    %398 = vector.broadcast %395 : vector<16x1xf32> to vector<16x32xf32>
    %399 = arith.subf %391, %398 : vector<16x32xf32>
    %400 = arith.mulf %397, %399 : vector<16x32xf32>
    %cst_122 = arith.constant dense<0.000000e+00> : vector<16xf32>
    %401 = vector.multi_reduction <add>, %400, %cst_122 [1] : vector<16x32xf32> to vector<16xf32>
    %402 = vector.shape_cast %401 : vector<16xf32> to vector<16x1xf32>
    %cst_123 = arith.constant 3.200000e+01 : f32
    %403 = vector.broadcast %cst_123 : f32 to vector<16x1xf32>
    %404 = arith.divf %402, %403 : vector<16x1xf32>
    %405 = vector.broadcast %395 : vector<16x1xf32> to vector<16x32xf32>
    %406 = arith.subf %391, %405 : vector<16x32xf32>
    %cst_124 = arith.constant 9.99999974E-6 : f32
    %407 = vector.broadcast %cst_124 : f32 to vector<16x1xf32>
    %408 = arith.addf %404, %407 : vector<16x1xf32>
    %409 = math.rsqrt %408 : vector<16x1xf32>
    %410 = vector.broadcast %409 : vector<16x1xf32> to vector<16x32xf32>
    %411 = arith.mulf %406, %410 : vector<16x32xf32>
    %412 = vector.broadcast %11 : vector<1x32xf32> to vector<16x32xf32>
    %413 = arith.mulf %411, %412 : vector<16x32xf32>
    %414 = vector.broadcast %12 : vector<1x32xf32> to vector<16x32xf32>
    %415 = arith.addf %413, %414 : vector<16x32xf32>
    %c0_125 = arith.constant 0 : index
    %c0_126 = arith.constant 0 : index
    %416 = vector.load %arg7[%c0_125, %c0_126] : memref<32x64xf32, #tpu.memory_space<vmem>>, vector<32x64xf32>
    %cst_127 = arith.constant dense<0.000000e+00> : vector<16x64xf32>
    %417 = tpu.matmul %415, %416, %cst_127 {dimension_numbers = #tpu.dot_dimension_numbers<[1], [0], [0], [1], [0, 0, 1, 1], [], []>} : vector<16x32xf32>, vector<32x64xf32>, vector<16x64xf32> -> vector<16x64xf32>
    %418 = vector.broadcast %7 : vector<1x64xf32> to vector<16x64xf32>
    %419 = arith.addf %417, %418 : vector<16x64xf32>
    %cst_128 = arith.constant 0.000000e+00 : f32
    %420 = vector.broadcast %cst_128 : f32 to vector<16x64xf32>
    %421 = arith.maximumf %419, %420 : vector<16x64xf32>
    %c0_129 = arith.constant 0 : index
    %c0_130 = arith.constant 0 : index
    %422 = vector.load %arg8[%c0_129, %c0_130] : memref<64x32xf32, #tpu.memory_space<vmem>>, vector<64x32xf32>
    %cst_131 = arith.constant dense<0.000000e+00> : vector<16x32xf32>
    %423 = tpu.matmul %421, %422, %cst_131 {dimension_numbers = #tpu.dot_dimension_numbers<[1], [0], [0], [1], [0, 0, 1, 1], [], []>} : vector<16x64xf32>, vector<64x32xf32>, vector<16x32xf32> -> vector<16x32xf32>
    %424 = vector.broadcast %8 : vector<1x32xf32> to vector<16x32xf32>
    %425 = arith.addf %423, %424 : vector<16x32xf32>
    %426 = arith.addf %425, %415 : vector<16x32xf32>
    %cst_132 = arith.constant dense<0.000000e+00> : vector<16xf32>
    %427 = vector.multi_reduction <add>, %426, %cst_132 [1] : vector<16x32xf32> to vector<16xf32>
    %428 = vector.shape_cast %427 : vector<16xf32> to vector<16x1xf32>
    %cst_133 = arith.constant 3.200000e+01 : f32
    %429 = vector.broadcast %cst_133 : f32 to vector<16x1xf32>
    %430 = arith.divf %428, %429 : vector<16x1xf32>
    %431 = vector.broadcast %430 : vector<16x1xf32> to vector<16x32xf32>
    %432 = arith.subf %426, %431 : vector<16x32xf32>
    %433 = vector.broadcast %430 : vector<16x1xf32> to vector<16x32xf32>
    %434 = arith.subf %426, %433 : vector<16x32xf32>
    %435 = arith.mulf %432, %434 : vector<16x32xf32>
    %cst_134 = arith.constant dense<0.000000e+00> : vector<16xf32>
    %436 = vector.multi_reduction <add>, %435, %cst_134 [1] : vector<16x32xf32> to vector<16xf32>
    %437 = vector.shape_cast %436 : vector<16xf32> to vector<16x1xf32>
    %cst_135 = arith.constant 3.200000e+01 : f32
    %438 = vector.broadcast %cst_135 : f32 to vector<16x1xf32>
    %439 = arith.divf %437, %438 : vector<16x1xf32>
    %440 = vector.broadcast %430 : vector<16x1xf32> to vector<16x32xf32>
    %441 = arith.subf %426, %440 : vector<16x32xf32>
    %cst_136 = arith.constant 9.99999974E-6 : f32
    %442 = vector.broadcast %cst_136 : f32 to vector<16x1xf32>
    %443 = arith.addf %439, %442 : vector<16x1xf32>
    %444 = math.rsqrt %443 : vector<16x1xf32>
    %445 = vector.broadcast %444 : vector<16x1xf32> to vector<16x32xf32>
    %446 = arith.mulf %441, %445 : vector<16x32xf32>
    %447 = vector.broadcast %13 : vector<1x32xf32> to vector<16x32xf32>
    %448 = arith.mulf %446, %447 : vector<16x32xf32>
    %449 = vector.broadcast %14 : vector<1x32xf32> to vector<16x32xf32>
    %450 = arith.addf %448, %449 : vector<16x32xf32>
    %c0_137 = arith.constant 0 : index
    %c0_138 = arith.constant 0 : index
    %451 = vector.load %arg10[%c0_137, %c0_138] : memref<16x32xf32, #tpu.memory_space<vmem>>, vector<16x32xf32>
    tpu.vector_store %arg10[%c0_137, %c0_138], %450 {strides = array<i32>} : memref<16x32xf32, #tpu.memory_space<vmem>>, vector<16x32xf32>,
    return
  }
}

</mosaic_0001>

<llo_original>
// kernel: tpu_custom_call.1
$region0: #{tpu_custom_call.1}
  #allocation0 [shape = 'u32[]', space=smem, size = 0x4, offset = 0x4, fixed_abs, tag = 'smem constant byte address 0x4 - core index']
  #allocation1 [shape = 'u32[144,128]{1,0:T(1,128)}', space=vmem, size = 0x12000, scoped, tag = 'internal scratch']
  %s0 = inlined_call_operand.hbm [shape: f32[16,32], index: 0, kind: input, shape index: {}]
  %s1 = inlined_call_operand.hbm [shape: f32[16,32], index: 1, kind: input, shape index: {}]
  %s2 = inlined_call_operand.vmem [shape: f32[32,96], index: 2, kind: input, shape index: {}]
  %s3 = inlined_call_operand.vmem [shape: f32[32,32], index: 3, kind: input, shape index: {}]
  %s4 = inlined_call_operand.vmem [shape: f32[32,32], index: 4, kind: input, shape index: {}]
  %s5 = inlined_call_operand.hbm [shape: f32[32,64], index: 5, kind: input, shape index: {}]
  %s6 = inlined_call_operand.hbm [shape: f32[32,32], index: 6, kind: input, shape index: {}]
  %s7 = inlined_call_operand.hbm [shape: f32[32,64], index: 7, kind: input, shape index: {}]
  %s8 = inlined_call_operand.vmem [shape: f32[64,32], index: 8, kind: input, shape index: {}]
  %s9 = inlined_call_operand.vmem [shape: f32[13,96], index: 9, kind: input, shape index: {}]
  %s10 = inlined_call_operand.hbm [shape: f32[16,32], index: 10, kind: output, shape index: {}]
  %s11 = sld [smem:[#allocation0]]
  $region70: #{tpu_custom_call.1} parent=0
    _
  %s13 = ssub.s32 1, %s11
  %s14 = scalar_select 0, %s13, %s11
  $region1: #{tpu_custom_call.1} parent=0
    #allocation2 [shape = 'u8[8192]{0}', space=vmem, size = 0x2000, scoped, tag = 'input window, operand 0, single buffered']
    #allocation3 [shape = 's32[1]{0}', space=sflag, size = 0x4, scoped, tag = 'scoped memory for tpu_custom_call.1']
    #allocation4 [shape = 's32[1]{0}', space=sflag, size = 0x4, scoped, tag = 'scoped memory for tpu_custom_call.1']
    #allocation5 [shape = 'u8[8192]{0}', space=vmem, size = 0x2000, scoped, tag = 'input window, operand 1, single buffered']
    #allocation6 [shape = 's32[1]{0}', space=sflag, size = 0x4, scoped, tag = 'scoped memory for tpu_custom_call.1']
    #allocation7 [shape = 'u8[16384]{0}', space=vmem, size = 0x4000, scoped, tag = 'input window, operand 5, single buffered']
    #allocation8 [shape = 'u8[16384]{0}', space=vmem, size = 0x4000, scoped, tag = 'input window, operand 6, single buffered']
    #allocation9 [shape = 's32[1]{0}', space=sflag, size = 0x4, scoped, tag = 'scoped memory for tpu_custom_call.1']
    #allocation10 [shape = 'u8[16384]{0}', space=vmem, size = 0x4000, scoped, tag = 'input window, operand 7, single buffered']
    #allocation11 [shape = 'u8[8192]{0}', space=vmem, size = 0x2000, scoped, tag = 'output window, operand 0, single buffered']
    %15 = vsyncpa [#allocation3], 0
    %16 = vsyncpa [#allocation6], 0
    %17 = vsyncpa [#allocation9], 0
    %18 = vsyncpa [#allocation4], 0
    // Predicated region
    $region2: #{tpu_custom_call.1} parent=1 // pred_check
      _
    $region3: #{tpu_custom_call.1} parent=1 // pred_check_branch
      %20 = sbr.rel (0) target = $region5
    $region4: #{tpu_custom_call.1} parent=1 // pred_region
      %s22 = ssub.s32 256, 256
      %23 = vsyncadd [#allocation3], %s22
      %s24 = sshll.u32 [#allocation2], 4
      %s25 = int_to_ptr.vmem [resolvable:$true] %s24
      %30 = dma.hbm_to_vmem [thread:$0]  %s0, 256, %s25, [#allocation3], 128, 128, 8
    $region5: #{tpu_custom_call.1} parent=1 // pred_fallthru
      _
    // Predicated region
    $region6: #{tpu_custom_call.1} parent=1 // pred_check
      _
    $region7: #{tpu_custom_call.1} parent=1 // pred_check_branch
      %32 = sbr.rel (0) target = $region9
    $region8: #{tpu_custom_call.1} parent=1 // pred_region
      %s34 = ssub.s32 256, 256
      %35 = vsyncadd [#allocation6], %s34
      %s36 = sshll.u32 [#allocation5], 4
      %s37 = int_to_ptr.vmem [resolvable:$true] %s36
      %42 = dma.hbm_to_vmem [thread:$0]  %s1, 256, %s37, [#allocation6], 128, 128, 8
    $region9: #{tpu_custom_call.1} parent=1 // pred_fallthru
      _
    // Predicated region
    $region10: #{tpu_custom_call.1} parent=1 // pred_check
      _
    $region11: #{tpu_custom_call.1} parent=1 // pred_check_branch
      %44 = sbr.rel (0) target = $region13
    $region12: #{tpu_custom_call.1} parent=1 // pred_region
      _
    $region13: #{tpu_custom_call.1} parent=1 // pred_fallthru
      _
    // Predicated region
    $region14: #{tpu_custom_call.1} parent=1 // pred_check
      _
    $region15: #{tpu_custom_call.1} parent=1 // pred_check_branch
      %46 = sbr.rel (0) target = $region17
    $region16: #{tpu_custom_call.1} parent=1 // pred_region
      _
    $region17: #{tpu_custom_call.1} parent=1 // pred_fallthru
      _
    // Predicated region
    $region18: #{tpu_custom_call.1} parent=1 // pred_check
      _
    $region19: #{tpu_custom_call.1} parent=1 // pred_check_branch
      %48 = sbr.rel (0) target = $region21
    $region20: #{tpu_custom_call.1} parent=1 // pred_region
      _
    $region21: #{tpu_custom_call.1} parent=1 // pred_fallthru
      _
    // Predicated region
    $region22: #{tpu_custom_call.1} parent=1 // pred_check
      _
    $region23: #{tpu_custom_call.1} parent=1 // pred_check_branch
      %50 = sbr.rel (0) target = $region25
    $region24: #{tpu_custom_call.1} parent=1 // pred_region
      %s52 = ssub.s32 512, 512
      %53 = vsyncadd [#allocation6], %s52
      %s54 = sshll.u32 [#allocation7], 4
      %s55 = int_to_ptr.vmem [resolvable:$true] %s54
      %60 = dma.hbm_to_vmem [thread:$0]  %s5, 512, %s55, [#allocation6], 128, 128, 8
    $region25: #{tpu_custom_call.1} parent=1 // pred_fallthru
      _
    // Predicated region
    $region26: #{tpu_custom_call.1} parent=1 // pred_check
      _
    $region27: #{tpu_custom_call.1} parent=1 // pred_check_branch
      %62 = sbr.rel (0) target = $region29
    $region28: #{tpu_custom_call.1} parent=1 // pred_region
      %s64 = ssub.s32 512, 512
      %65 = vsyncadd [#allocation9], %s64
      %s66 = sshll.u32 [#allocation8], 4
      %s67 = int_to_ptr.vmem [resolvable:$true] %s66
      %72 = dma.hbm_to_vmem [thread:$0]  %s6, 512, %s67, [#allocation9], 128, 128, 8
    $region29: #{tpu_custom_call.1} parent=1 // pred_fallthru
      _
    // Predicated region
    $region30: #{tpu_custom_call.1} parent=1 // pred_check
      _
    $region31: #{tpu_custom_call.1} parent=1 // pred_check_branch
      %74 = sbr.rel (0) target = $region33
    $region32: #{tpu_custom_call.1} parent=1 // pred_region
      %s76 = ssub.s32 512, 512
      %77 = vsyncadd [#allocation9], %s76
      %s78 = sshll.u32 [#allocation10], 4
      %s79 = int_to_ptr.vmem [resolvable:$true] %s78
      %84 = dma.hbm_to_vmem [thread:$0]  %s7, 512, %s79, [#allocation9], 128, 128, 8
    $region33: #{tpu_custom_call.1} parent=1 // pred_fallthru
      _
    // Predicated region
    $region34: #{tpu_custom_call.1} parent=1 // pred_check
      _
    $region35: #{tpu_custom_call.1} parent=1 // pred_check_branch
      %86 = sbr.rel (0) target = $region37
    $region36: #{tpu_custom_call.1} parent=1 // pred_region
      _
    $region37: #{tpu_custom_call.1} parent=1 // pred_fallthru
      _
    // Predicated region
    $region38: #{tpu_custom_call.1} parent=1 // pred_check
      _
    $region39: #{tpu_custom_call.1} parent=1 // pred_check_branch
      %88 = sbr.rel (0) target = $region41
    $region40: #{tpu_custom_call.1} parent=1 // pred_region
      _
    $region41: #{tpu_custom_call.1} parent=1 // pred_fallthru
      _
    // Predicated region
    $region42: #{tpu_custom_call.1} parent=1 // pred_check
      _
    $region43: #{tpu_custom_call.1} parent=1 // pred_check_branch
      %90 = sbr.rel (0) target = $region45
    $region44: #{tpu_custom_call.1} parent=1 // pred_region
      %91 = dma.done [#allocation3], 256
    $region45: #{tpu_custom_call.1} parent=1 // pred_fallthru
      _
    // Predicated region
    $region46: #{tpu_custom_call.1} parent=1 // pred_check
      _
    $region47: #{tpu_custom_call.1} parent=1 // pred_check_branch
      %93 = sbr.rel (0) target = $region49
    $region48: #{tpu_custom_call.1} parent=1 // pred_region
      %94 = dma.done [#allocation6], 256
    $region49: #{tpu_custom_call.1} parent=1 // pred_fallthru
      _
    // Predicated region
    $region50: #{tpu_custom_call.1} parent=1 // pred_check
      _
    $region51: #{tpu_custom_call.1} parent=1 // pred_check_branch
      %96 = sbr.rel (0) target = $region53
    $region52: #{tpu_custom_call.1} parent=1 // pred_region
      %97 = dma.done [#allocation6], 512
    $region53: #{tpu_custom_call.1} parent=1 // pred_fallthru
      _
    // Predicated region
    $region54: #{tpu_custom_call.1} parent=1 // pred_check
      _
    $region55: #{tpu_custom_call.1} parent=1 // pred_check_branch
      %99 = sbr.rel (0) target = $region57
    $region56: #{tpu_custom_call.1} parent=1 // pred_region
      %100 = dma.done [#allocation9], 512
    $region57: #{tpu_custom_call.1} parent=1 // pred_fallthru
      _
    // Predicated region
    $region58: #{tpu_custom_call.1} parent=1 // pred_check
      _
    $region59: #{tpu_custom_call.1} parent=1 // pred_check_branch
      %102 = sbr.rel (0) target = $region61
    $region60: #{tpu_custom_call.1} parent=1 // pred_region
      %103 = dma.done [#allocation9], 512
    $region61: #{tpu_custom_call.1} parent=1 // pred_fallthru
      _
    %v104 = vld [vmem:[#allocation2] sm:$0xff]
    %v105 = vld [vmem:[#allocation2 + $0x8] sm:$0xff]
    %v106 = vld [vmem:[#allocation5] sm:$0xff]
    %v107 = vld [vmem:[#allocation5 + $0x8] sm:$0xff]
    %v108 = vld [vmem:[%s9] sm:$0x1]
    %v109 = vld [vmem:[%s9 + $0x1] sm:$0x1]
    %v110 = vld [vmem:[%s9 + $0x2] sm:$0x1]
    %v111 = vld [vmem:[%s9 + $0x3] sm:$0x1]
    %v112 = vld [vmem:[%s9 + $0x4] sm:$0x1]
    %v113 = vld [vmem:[%s9 + $0x5] sm:$0x1]
    %v114 = vld [vmem:[%s9 + $0x6] sm:$0x1]
    %v115 = vld [vmem:[%s9 + $0x7] sm:$0x1]
    %v116 = vld [vmem:[%s9 + $0x8] sm:$0x1]
    %v117 = vld [vmem:[%s9 + $0x9] sm:$0x1]
    %v118 = vld [vmem:[%s9 + $0xa] sm:$0x1]
    %v119 = vld [vmem:[%s9 + $0xb] sm:$0x1]
    %v120 = vld [vmem:[%s9 + $0xc] sm:$0x1]
    %v121 = vlaneseq
    %v122 = vshrl.u32 %v121, 7
    %v123 = vlaneseq
    %v124 = vand.u32 %v123, 127
    %vm125 = vcmp.gt.s32.totalorder %v124, %v122
    %v126 = vsel %vm125, -1e+30, 0.0
    %v127 = vld [vmem:[%s2] sm:$0xff]
    %v128 = vld [vmem:[%s2 + $0x8] sm:$0xff]
    %v129 = vld [vmem:[%s2 + $0x10] sm:$0xff]
    %v130 = vld [vmem:[%s2 + $0x18] sm:$0xff]
    %v131 = vlaneseq
    %v132 = vshrl.u32 %v131, 7
    %v133 = vsub.s32 0, %v132
    %v134 = vrot.slane %v108, %v133
    %vm135 = vcmask 261120
    %v137 = vsel %vm135, %v104, 0
    %v140 = vsel %vm135, %v105, 0
    %142 = vmatprep.subr.mxu0 0.0
    %143 = vmatpush1.msra.mxu0 0.0
    %144 = vmatprep.subr.mxu0 0.0
    %145 = vmatpush1.msra.mxu0 0.0
    %146 = vmatprep.subr.mxu0 0.0
    %147 = vmatpush1.msra.mxu0 0.0
    %148 = vmatprep.subr.mxu0 0.0
    %149 = vmatpush1.msra.mxu0 0.0
    %150 = vmatprep.subr.mxu0 0.0
    %151 = vmatpush1.msra.mxu0 0.0
    %152 = vmatprep.subr.mxu0 0.0
    %153 = vmatpush1.msra.mxu0 0.0
    %154 = vmatprep.subr.mxu0 0.0
    %155 = vmatpush1.msra.mxu0 0.0
    %156 = vmatprep.subr.mxu0 0.0
    %157 = vmatpush1.msra.mxu0 0.0
    %158 = vmatprep.subr.mxu0 0.0
    %159 = vmatpush1.msra.mxu0 0.0
    %160 = vmatprep.subr.mxu0 0.0
    %161 = vmatpush1.msra.mxu0 0.0
    %162 = vmatprep.subr.mxu0 0.0
    %163 = vmatpush1.msra.mxu0 0.0
    %164 = vmatprep.subr.mxu0 0.0
    %165 = vmatpush1.msra.mxu0 0.0
    %166 = vmatprep.subr.mxu0 0.0
    %167 = vmatpush1.msra.mxu0 %v130
    %168 = vmatprep.subr.mxu0 0.0
    %169 = vmatpush1.msra.mxu0 %v129
    %170 = vmatprep.subr.mxu0 0.0
    %171 = vmatpush1.msra.mxu0 %v128
    %172 = vmatprep.subr.mxu0 0.0
    %173 = vmatpush1.msra.mxu0 %v127
    %174 = vmatprep.subr.mxu0 0.0
    %175 = vmatpush2.msra.mxu0 0.0
    %176 = vmatprep.subr.mxu0 0.0
    %177 = vmatpush2.msra.mxu0 0.0
    %178 = vmatprep.subr.mxu0 0.0
    %179 = vmatpush2.msra.mxu0 0.0
    %180 = vmatprep.subr.mxu0 0.0
    %181 = vmatpush2.msra.mxu0 0.0
    %182 = vmatprep.subr.mxu0 0.0
    %183 = vmatpush2.msra.mxu0 0.0
    %184 = vmatprep.subr.mxu0 0.0
    %185 = vmatpush2.msra.mxu0 0.0
    %186 = vmatprep.subr.mxu0 0.0
    %187 = vmatpush2.msra.mxu0 0.0
    %188 = vmatprep.subr.mxu0 0.0
    %189 = vmatpush2.msra.mxu0 0.0
    %190 = vmatprep.subr.mxu0 0.0
    %191 = vmatpush2.msra.mxu0 0.0
    %192 = vmatprep.subr.mxu0 0.0
    %193 = vmatpush2.msra.mxu0 0.0
    %194 = vmatprep.subr.mxu0 0.0
    %195 = vmatpush2.msra.mxu0 0.0
    %196 = vmatprep.subr.mxu0 0.0
    %197 = vmatpush2.msra.mxu0 0.0
    %198 = vmatprep.subr.mxu0 0.0
    %199 = vmatpush2.msra.mxu0 0.0
    %200 = vmatprep.subr.mxu0 0.0
    %201 = vmatpush2.msra.mxu0 0.0
    %202 = vmatprep.subr.mxu0 0.0
    %203 = vmatpush2.msra.mxu0 0.0
    %204 = vmatprep.subr.mxu0 0.0
    %205 = vmatpush2.msra.mxu0 0.0
    %206 = vmatprep.mubr.f32.mxu0 0.0
    %207 = vmatmul.mubr.f32.gmra.mxu0 %v137
    %v208 = vpop.f32.mrf.mxu0
    %v209 = vadd.f32 %v134, %v208
    %v210 = vpop.f32.mrf.mxu0
    %211 = vmatprep.mubr.f32.mxu0 0.0
    %212 = vmatmul.mubr.f32.gmra.mxu0 %v140
    %v213 = vpop.f32.mrf.mxu0
    %v214 = vadd.f32 %v134, %v213
    %v215 = vpop.f32.mrf.mxu0
    %216 = vdwg.mxu0
    %v217 = vld [vmem:[%s3] sm:$0xff]
    %v218 = vld [vmem:[%s3 + $0x8] sm:$0xff]
    %v219 = vld [vmem:[%s3 + $0x10] sm:$0xff]
    %v220 = vld [vmem:[%s3 + $0x18] sm:$0xff]
    %222 = vrot.lane.b32.xlu0 %v209, 96
    %v223 = vpop.permute.xlu0 %222
    %vm224 = vcmask 64512
    %v225 = vsel %vm224, %v209, 0
    %v227 = vsel %vm224, %v223, 0
    %229 = vmatprep.subr.mxu0 0.0
    %230 = vmatpush1.xpose.msra.mxu0 0.0
    %231 = vmatprep.subr.mxu0 0.0
    %232 = vmatpush1.xpose.msra.mxu0 0.0
    %233 = vmatprep.subr.mxu0 0.0
    %234 = vmatpush1.xpose.msra.mxu0 0.0
    %235 = vmatprep.subr.mxu0 0.0
    %236 = vmatpush1.xpose.msra.mxu0 0.0
    %237 = vmatprep.subr.mxu0 0.0
    %238 = vmatpush1.xpose.msra.mxu0 0.0
    %239 = vmatprep.subr.mxu0 0.0
    %240 = vmatpush1.xpose.msra.mxu0 0.0
    %241 = vmatprep.subr.mxu0 0.0
    %242 = vmatpush1.xpose.msra.mxu0 0.0
    %243 = vmatprep.subr.mxu0 0.0
    %244 = vmatpush1.xpose.msra.mxu0 0.0
    %245 = vmatprep.subr.mxu0 0.0
    %246 = vmatpush1.xpose.msra.mxu0 0.0
    %247 = vmatprep.subr.mxu0 0.0
    %248 = vmatpush1.xpose.msra.mxu0 0.0
    %249 = vmatprep.subr.mxu0 0.0
    %250 = vmatpush1.xpose.msra.mxu0 0.0
    %251 = vmatprep.subr.mxu0 0.0
    %252 = vmatpush1.xpose.msra.mxu0 0.0
    %253 = vmatprep.subr.mxu0 0.0
    %254 = vmatpush1.xpose.msra.mxu0 0.0
    %255 = vmatprep.subr.mxu0 0.0
    %256 = vmatpush1.xpose.msra.mxu0 0.0
    %257 = vmatprep.subr.mxu0 0.0
    %258 = vmatpush1.xpose.msra.mxu0 0.0
    %259 = vmatprep.subr.mxu0 0.0
    %260 = vmatpush1.xpose.msra.mxu0 %v227
    %261 = vmatprep.subr.mxu0 0.0
    %262 = vmatpush2.xpose.msra.mxu0 0.0
    %263 = vmatprep.subr.mxu0 0.0
    %264 = vmatpush2.xpose.msra.mxu0 0.0
    %265 = vmatprep.subr.mxu0 0.0
    %266 = vmatpush2.xpose.msra.mxu0 0.0
    %267 = vmatprep.subr.mxu0 0.0
    %268 = vmatpush2.xpose.msra.mxu0 0.0
    %269 = vmatprep.subr.mxu0 0.0
    %270 = vmatpush2.xpose.msra.mxu0 0.0
    %271 = vmatprep.subr.mxu0 0.0
    %272 = vmatpush2.xpose.msra.mxu0 0.0
    %273 = vmatprep.subr.mxu0 0.0
    %274 = vmatpush2.xpose.msra.mxu0 0.0
    %275 = vmatprep.subr.mxu0 0.0
    %276 = vmatpush2.xpose.msra.mxu0 0.0
    %277 = vmatprep.subr.mxu0 0.0
    %278 = vmatpush2.xpose.msra.mxu0 0.0
    %279 = vmatprep.subr.mxu0 0.0
    %280 = vmatpush2.xpose.msra.mxu0 0.0
    %281 = vmatprep.subr.mxu0 0.0
    %282 = vmatpush2.xpose.msra.mxu0 0.0
    %283 = vmatprep.subr.mxu0 0.0
    %284 = vmatpush2.xpose.msra.mxu0 0.0
    %285 = vmatprep.subr.mxu0 0.0
    %286 = vmatpush2.xpose.msra.mxu0 0.0
    %287 = vmatprep.subr.mxu0 0.0
    %288 = vmatpush2.xpose.msra.mxu0 0.0
    %289 = vmatprep.subr.mxu0 0.0
    %290 = vmatpush2.xpose.msra.mxu0 0.0
    %291 = vmatprep.subr.mxu0 0.0
    %292 = vmatpush2.xpose.msra.mxu0 0.0
    %293 = vmatprep.mubr.f32.mxu0 0.0
    %294 = vmatmul.mubr.f32.gmra.mxu0 %v225
    %v295 = vpop.f32.mrf.mxu0
    %v296 = vadd.f32 %v126, %v295
    %v297 = vpop.f32.mrf.mxu0
    %298 = vdwg.mxu0
    %v299 = vsel %vm224, %v296, -inf
    %300 = vmax.xlane.f32.xlu0 %v299
    %v301 = vpop.xlane.xlu0 %300
    %v302 = vsub.f32 %v296, %v301
    %v303 = vmul.f32 %v302, 1.442695
    %v304 = vpow.pop %v303
    %v305 = vsel %vm224, %v304, 0.0
    %306 = vadd.xlane.f32.xlu0 %v305
    %v307 = vpop.xlane.xlu0 %306
    %v308 = vrcp.pop %v307
    %v309 = vmul.f32 %v304, %v308
    %310 = vrot.lane.b32.xlu0 %v209, 64
    %v311 = vpop.permute.xlu0 %310
    %v314 = vsel %vm224, %v309, 0
    %316 = vmatprep.subr.mxu0 0.0
    %317 = vmatpush1.msra.mxu0 0.0
    %318 = vmatprep.subr.mxu0 0.0
    %319 = vmatpush1.msra.mxu0 0.0
    %320 = vmatprep.subr.mxu0 0.0
    %321 = vmatpush1.msra.mxu0 0.0
    %322 = vmatprep.subr.mxu0 0.0
    %323 = vmatpush1.msra.mxu0 0.0
    %324 = vmatprep.subr.mxu0 0.0
    %325 = vmatpush1.msra.mxu0 0.0
    %326 = vmatprep.subr.mxu0 0.0
    %327 = vmatpush1.msra.mxu0 0.0
    %328 = vmatprep.subr.mxu0 0.0
    %329 = vmatpush1.msra.mxu0 0.0
    %330 = vmatprep.subr.mxu0 0.0
    %331 = vmatpush1.msra.mxu0 0.0
    %332 = vmatprep.subr.mxu0 0.0
    %333 = vmatpush1.msra.mxu0 0.0
    %334 = vmatprep.subr.mxu0 0.0
    %335 = vmatpush1.msra.mxu0 0.0
    %336 = vmatprep.subr.mxu0 0.0
    %337 = vmatpush1.msra.mxu0 0.0
    %338 = vmatprep.subr.mxu0 0.0
    %339 = vmatpush1.msra.mxu0 0.0
    %340 = vmatprep.subr.mxu0 0.0
    %341 = vmatpush1.msra.mxu0 0.0
    %342 = vmatprep.subr.mxu0 0.0
    %343 = vmatpush1.msra.mxu0 0.0
    %344 = vmatprep.subr.mxu0 0.0
    %345 = vmatpush1.msra.mxu0 0.0
    %346 = vmatprep.subr.mxu0 0.0
    %347 = vmatpush1.msra.mxu0 %v311
    %348 = vmatprep.subr.mxu0 0.0
    %349 = vmatpush2.msra.mxu0 0.0
    %350 = vmatprep.subr.mxu0 0.0
    %351 = vmatpush2.msra.mxu0 0.0
    %352 = vmatprep.subr.mxu0 0.0
    %353 = vmatpush2.msra.mxu0 0.0
    %354 = vmatprep.subr.mxu0 0.0
    %355 = vmatpush2.msra.mxu0 0.0
    %356 = vmatprep.subr.mxu0 0.0
    %357 = vmatpush2.msra.mxu0 0.0
    %358 = vmatprep.subr.mxu0 0.0
    %359 = vmatpush2.msra.mxu0 0.0
    %360 = vmatprep.subr.mxu0 0.0
    %361 = vmatpush2.msra.mxu0 0.0
    %362 = vmatprep.subr.mxu0 0.0
    %363 = vmatpush2.msra.mxu0 0.0
    %364 = vmatprep.subr.mxu0 0.0
    %365 = vmatpush2.msra.mxu0 0.0
    %366 = vmatprep.subr.mxu0 0.0
    %367 = vmatpush2.msra.mxu0 0.0
    %368 = vmatprep.subr.mxu0 0.0
    %369 = vmatpush2.msra.mxu0 0.0
    %370 = vmatprep.subr.mxu0 0.0
    %371 = vmatpush2.msra.mxu0 0.0
    %372 = vmatprep.subr.mxu0 0.0
    %373 = vmatpush2.msra.mxu0 0.0
    %374 = vmatprep.subr.mxu0 0.0
    %375 = vmatpush2.msra.mxu0 0.0
    %376 = vmatprep.subr.mxu0 0.0
    %377 = vmatpush2.msra.mxu0 0.0
    %378 = vmatprep.subr.mxu0 0.0
    %379 = vmatpush2.msra.mxu0 0.0
    %380 = vmatprep.mubr.f32.mxu0 0.0
    %381 = vmatmul.mubr.f32.gmra.mxu0 %v314
    %v382 = vpop.f32.mrf.mxu0
    %v383 = vadd.f32 0.0, %v382
    %v384 = vpop.f32.mrf.mxu0
    %385 = vdwg.mxu0
    %386 = vrot.lane.b32.xlu0 %v209, 120
    %v387 = vpop.permute.xlu0 %386
    %388 = vrot.lane.b32.xlu0 %v209, 88
    %v389 = vpop.permute.xlu0 %388
    %v390 = vsel %vm224, %v387, 0
    %v392 = vsel %vm224, %v389, 0
    %394 = vmatprep.subr.mxu0 0.0
    %395 = vmatpush1.xpose.msra.mxu0 0.0
    %396 = vmatprep.subr.mxu0 0.0
    %397 = vmatpush1.xpose.msra.mxu0 0.0
    %398 = vmatprep.subr.mxu0 0.0
    %399 = vmatpush1.xpose.msra.mxu0 0.0
    %400 = vmatprep.subr.mxu0 0.0
    %401 = vmatpush1.xpose.msra.mxu0 0.0
    %402 = vmatprep.subr.mxu0 0.0
    %403 = vmatpush1.xpose.msra.mxu0 0.0
    %404 = vmatprep.subr.mxu0 0.0
    %405 = vmatpush1.xpose.msra.mxu0 0.0
    %406 = vmatprep.subr.mxu0 0.0
    %407 = vmatpush1.xpose.msra.mxu0 0.0
    %408 = vmatprep.subr.mxu0 0.0
    %409 = vmatpush1.xpose.msra.mxu0 0.0
    %410 = vmatprep.subr.mxu0 0.0
    %411 = vmatpush1.xpose.msra.mxu0 0.0
    %412 = vmatprep.subr.mxu0 0.0
    %413 = vmatpush1.xpose.msra.mxu0 0.0
    %414 = vmatprep.subr.mxu0 0.0
    %415 = vmatpush1.xpose.msra.mxu0 0.0
    %416 = vmatprep.subr.mxu0 0.0
    %417 = vmatpush1.xpose.msra.mxu0 0.0
    %418 = vmatprep.subr.mxu0 0.0
    %419 = vmatpush1.xpose.msra.mxu0 0.0
    %420 = vmatprep.subr.mxu0 0.0
    %421 = vmatpush1.xpose.msra.mxu0 0.0
    %422 = vmatprep.subr.mxu0 0.0
    %423 = vmatpush1.xpose.msra.mxu0 0.0
    %424 = vmatprep.subr.mxu0 0.0
    %425 = vmatpush1.xpose.msra.mxu0 %v392
    %426 = vmatprep.subr.mxu0 0.0
    %427 = vmatpush2.xpose.msra.mxu0 0.0
    %428 = vmatprep.subr.mxu0 0.0
    %429 = vmatpush2.xpose.msra.mxu0 0.0
    %430 = vmatprep.subr.mxu0 0.0
    %431 = vmatpush2.xpose.msra.mxu0 0.0
    %432 = vmatprep.subr.mxu0 0.0
    %433 = vmatpush2.xpose.msra.mxu0 0.0
    %434 = vmatprep.subr.mxu0 0.0
    %435 = vmatpush2.xpose.msra.mxu0 0.0
    %436 = vmatprep.subr.mxu0 0.0
    %437 = vmatpush2.xpose.msra.mxu0 0.0
    %438 = vmatprep.subr.mxu0 0.0
    %439 = vmatpush2.xpose.msra.mxu0 0.0
    %440 = vmatprep.subr.mxu0 0.0
    %441 = vmatpush2.xpose.msra.mxu0 0.0
    %442 = vmatprep.subr.mxu0 0.0
    %443 = vmatpush2.xpose.msra.mxu0 0.0
    %444 = vmatprep.subr.mxu0 0.0
    %445 = vmatpush2.xpose.msra.mxu0 0.0
    %446 = vmatprep.subr.mxu0 0.0
    %447 = vmatpush2.xpose.msra.mxu0 0.0
    %448 = vmatprep.subr.mxu0 0.0
    %449 = vmatpush2.xpose.msra.mxu0 0.0
    %450 = vmatprep.subr.mxu0 0.0
    %451 = vmatpush2.xpose.msra.mxu0 0.0
    %452 = vmatprep.subr.mxu0 0.0
    %453 = vmatpush2.xpose.msra.mxu0 0.0
    %454 = vmatprep.subr.mxu0 0.0
    %455 = vmatpush2.xpose.msra.mxu0 0.0
    %456 = vmatprep.subr.mxu0 0.0
    %457 = vmatpush2.xpose.msra.mxu0 0.0
    %458 = vmatprep.mubr.f32.mxu0 0.0
    %459 = vmatmul.mubr.f32.gmra.mxu0 %v390
    %v460 = vpop.f32.mrf.mxu0
    %v461 = vadd.f32 %v126, %v460
    %v462 = vpop.f32.mrf.mxu0
    %463 = vdwg.mxu0
    %v464 = vsel %vm224, %v461, -inf
    %465 = vmax.xlane.f32.xlu0 %v464
    %v466 = vpop.xlane.xlu0 %465
    %v467 = vsub.f32 %v461, %v466
    %v468 = vmul.f32 %v467, 1.442695
    %v469 = vpow.pop %v468
    %v470 = vsel %vm224, %v469, 0.0
    %471 = vadd.xlane.f32.xlu0 %v470
    %v472 = vpop.xlane.xlu0 %471
    %v473 = vrcp.pop %v472
    %v474 = vmul.f32 %v469, %v473
    %475 = vrot.lane.b32.xlu0 %v209, 56
    %v476 = vpop.permute.xlu0 %475
    %v479 = vsel %vm224, %v474, 0
    %481 = vmatprep.subr.mxu0 0.0
    %482 = vmatpush1.msra.mxu0 0.0
    %483 = vmatprep.subr.mxu0 0.0
    %484 = vmatpush1.msra.mxu0 0.0
    %485 = vmatprep.subr.mxu0 0.0
    %486 = vmatpush1.msra.mxu0 0.0
    %487 = vmatprep.subr.mxu0 0.0
    %488 = vmatpush1.msra.mxu0 0.0
    %489 = vmatprep.subr.mxu0 0.0
    %490 = vmatpush1.msra.mxu0 0.0
    %491 = vmatprep.subr.mxu0 0.0
    %492 = vmatpush1.msra.mxu0 0.0
    %493 = vmatprep.subr.mxu0 0.0
    %494 = vmatpush1.msra.mxu0 0.0
    %495 = vmatprep.subr.mxu0 0.0
    %496 = vmatpush1.msra.mxu0 0.0
    %497 = vmatprep.subr.mxu0 0.0
    %498 = vmatpush1.msra.mxu0 0.0
    %499 = vmatprep.subr.mxu0 0.0
    %500 = vmatpush1.msra.mxu0 0.0
    %501 = vmatprep.subr.mxu0 0.0
    %502 = vmatpush1.msra.mxu0 0.0
    %503 = vmatprep.subr.mxu0 0.0
    %504 = vmatpush1.msra.mxu0 0.0
    %505 = vmatprep.subr.mxu0 0.0
    %506 = vmatpush1.msra.mxu0 0.0
    %507 = vmatprep.subr.mxu0 0.0
    %508 = vmatpush1.msra.mxu0 0.0
    %509 = vmatprep.subr.mxu0 0.0
    %510 = vmatpush1.msra.mxu0 0.0
    %511 = vmatprep.subr.mxu0 0.0
    %512 = vmatpush1.msra.mxu0 %v476
    %513 = vmatprep.subr.mxu0 0.0
    %514 = vmatpush2.msra.mxu0 0.0
    %515 = vmatprep.subr.mxu0 0.0
    %516 = vmatpush2.msra.mxu0 0.0
    %517 = vmatprep.subr.mxu0 0.0
    %518 = vmatpush2.msra.mxu0 0.0
    %519 = vmatprep.subr.mxu0 0.0
    %520 = vmatpush2.msra.mxu0 0.0
    %521 = vmatprep.subr.mxu0 0.0
    %522 = vmatpush2.msra.mxu0 0.0
    %523 = vmatprep.subr.mxu0 0.0
    %524 = vmatpush2.msra.mxu0 0.0
    %525 = vmatprep.subr.mxu0 0.0
    %526 = vmatpush2.msra.mxu0 0.0
    %527 = vmatprep.subr.mxu0 0.0
    %528 = vmatpush2.msra.mxu0 0.0
    %529 = vmatprep.subr.mxu0 0.0
    %530 = vmatpush2.msra.mxu0 0.0
    %531 = vmatprep.subr.mxu0 0.0
    %532 = vmatpush2.msra.mxu0 0.0
    %533 = vmatprep.subr.mxu0 0.0
    %534 = vmatpush2.msra.mxu0 0.0
    %535 = vmatprep.subr.mxu0 0.0
    %536 = vmatpush2.msra.mxu0 0.0
    %537 = vmatprep.subr.mxu0 0.0
    %538 = vmatpush2.msra.mxu0 0.0
    %539 = vmatprep.subr.mxu0 0.0
    %540 = vmatpush2.msra.mxu0 0.0
    %541 = vmatprep.subr.mxu0 0.0
    %542 = vmatpush2.msra.mxu0 0.0
    %543 = vmatprep.subr.mxu0 0.0
    %544 = vmatpush2.msra.mxu0 0.0
    %545 = vmatprep.mubr.f32.mxu0 0.0
    %546 = vmatmul.mubr.f32.gmra.mxu0 %v479
    %v547 = vpop.f32.mrf.mxu0
    %v548 = vadd.f32 0.0, %v547
    %v549 = vpop.f32.mrf.mxu0
    %550 = vdwg.mxu0
    %v552 = vsel %vm224, %v548, 0
    %554 = vmatprep.subr.mxu0 0.0
    %555 = vmatpush1.msra.mxu0 0.0
    %556 = vmatprep.subr.mxu0 0.0
    %557 = vmatpush1.msra.mxu0 0.0
    %558 = vmatprep.subr.mxu0 0.0
    %559 = vmatpush1.msra.mxu0 0.0
    %560 = vmatprep.subr.mxu0 0.0
    %561 = vmatpush1.msra.mxu0 0.0
    %562 = vmatprep.subr.mxu0 0.0
    %563 = vmatpush1.msra.mxu0 0.0
    %564 = vmatprep.subr.mxu0 0.0
    %565 = vmatpush1.msra.mxu0 0.0
    %566 = vmatprep.subr.mxu0 0.0
    %567 = vmatpush1.msra.mxu0 0.0
    %568 = vmatprep.subr.mxu0 0.0
    %569 = vmatpush1.msra.mxu0 0.0
    %570 = vmatprep.subr.mxu0 0.0
    %571 = vmatpush1.msra.mxu0 0.0
    %572 = vmatprep.subr.mxu0 0.0
    %573 = vmatpush1.msra.mxu0 0.0
    %574 = vmatprep.subr.mxu0 0.0
    %575 = vmatpush1.msra.mxu0 0.0
    %576 = vmatprep.subr.mxu0 0.0
    %577 = vmatpush1.msra.mxu0 0.0
    %578 = vmatprep.subr.mxu0 0.0
    %579 = vmatpush1.msra.mxu0 0.0
    %580 = vmatprep.subr.mxu0 0.0
    %581 = vmatpush1.msra.mxu0 0.0
    %582 = vmatprep.subr.mxu0 0.0
    %583 = vmatpush1.msra.mxu0 0.0
    %584 = vmatprep.subr.mxu0 0.0
    %585 = vmatpush1.msra.mxu0 %v218
    %586 = vmatprep.subr.mxu0 0.0
    %587 = vmatpush2.msra.mxu0 0.0
    %588 = vmatprep.subr.mxu0 0.0
    %589 = vmatpush2.msra.mxu0 0.0
    %590 = vmatprep.subr.mxu0 0.0
    %591 = vmatpush2.msra.mxu0 0.0
    %592 = vmatprep.subr.mxu0 0.0
    %593 = vmatpush2.msra.mxu0 0.0
    %594 = vmatprep.subr.mxu0 0.0
    %595 = vmatpush2.msra.mxu0 0.0
    %596 = vmatprep.subr.mxu0 0.0
    %597 = vmatpush2.msra.mxu0 0.0
    %598 = vmatprep.subr.mxu0 0.0
    %599 = vmatpush2.msra.mxu0 0.0
    %600 = vmatprep.subr.mxu0 0.0
    %601 = vmatpush2.msra.mxu0 0.0
    %602 = vmatprep.subr.mxu0 0.0
    %603 = vmatpush2.msra.mxu0 0.0
    %604 = vmatprep.subr.mxu0 0.0
    %605 = vmatpush2.msra.mxu0 0.0
    %606 = vmatprep.subr.mxu0 0.0
    %607 = vmatpush2.msra.mxu0 0.0
    %608 = vmatprep.subr.mxu0 0.0
    %609 = vmatpush2.msra.mxu0 0.0
    %610 = vmatprep.subr.mxu0 0.0
    %611 = vmatpush2.msra.mxu0 0.0
    %612 = vmatprep.subr.mxu0 0.0
    %613 = vmatpush2.msra.mxu0 0.0
    %614 = vmatprep.subr.mxu0 0.0
    %615 = vmatpush2.msra.mxu0 0.0
    %616 = vmatprep.subr.mxu0 0.0
    %617 = vmatpush2.msra.mxu0 0.0
    %618 = vmatprep.mubr.f32.mxu0 0.0
    %619 = vmatmul.mubr.f32.gmra.mxu0 %v552
    %v620 = vpop.f32.mrf.mxu0
    %v621 = vadd.f32 0.0, %v620
    %v622 = vpop.f32.mrf.mxu0
    %623 = vdwg.mxu0
    %v625 = vsel %vm224, %v383, 0
    %627 = vmatprep.subr.mxu0 0.0
    %628 = vmatpush1.msra.mxu0 0.0
    %629 = vmatprep.subr.mxu0 0.0
    %630 = vmatpush1.msra.mxu0 0.0
    %631 = vmatprep.subr.mxu0 0.0
    %632 = vmatpush1.msra.mxu0 0.0
    %633 = vmatprep.subr.mxu0 0.0
    %634 = vmatpush1.msra.mxu0 0.0
    %635 = vmatprep.subr.mxu0 0.0
    %636 = vmatpush1.msra.mxu0 0.0
    %637 = vmatprep.subr.mxu0 0.0
    %638 = vmatpush1.msra.mxu0 0.0
    %639 = vmatprep.subr.mxu0 0.0
    %640 = vmatpush1.msra.mxu0 0.0
    %641 = vmatprep.subr.mxu0 0.0
    %642 = vmatpush1.msra.mxu0 0.0
    %643 = vmatprep.subr.mxu0 0.0
    %644 = vmatpush1.msra.mxu0 0.0
    %645 = vmatprep.subr.mxu0 0.0
    %646 = vmatpush1.msra.mxu0 0.0
    %647 = vmatprep.subr.mxu0 0.0
    %648 = vmatpush1.msra.mxu0 0.0
    %649 = vmatprep.subr.mxu0 0.0
    %650 = vmatpush1.msra.mxu0 0.0
    %651 = vmatprep.subr.mxu0 0.0
    %652 = vmatpush1.msra.mxu0 0.0
    %653 = vmatprep.subr.mxu0 0.0
    %654 = vmatpush1.msra.mxu0 0.0
    %655 = vmatprep.subr.mxu0 0.0
    %656 = vmatpush1.msra.mxu0 0.0
    %657 = vmatprep.subr.mxu0 0.0
    %658 = vmatpush1.msra.mxu0 %v217
    %659 = vmatprep.subr.mxu0 0.0
    %660 = vmatpush2.msra.mxu0 0.0
    %661 = vmatprep.subr.mxu0 0.0
    %662 = vmatpush2.msra.mxu0 0.0
    %663 = vmatprep.subr.mxu0 0.0
    %664 = vmatpush2.msra.mxu0 0.0
    %665 = vmatprep.subr.mxu0 0.0
    %666 = vmatpush2.msra.mxu0 0.0
    %667 = vmatprep.subr.mxu0 0.0
    %668 = vmatpush2.msra.mxu0 0.0
    %669 = vmatprep.subr.mxu0 0.0
    %670 = vmatpush2.msra.mxu0 0.0
    %671 = vmatprep.subr.mxu0 0.0
    %672 = vmatpush2.msra.mxu0 0.0
    %673 = vmatprep.subr.mxu0 0.0
    %674 = vmatpush2.msra.mxu0 0.0
    %675 = vmatprep.subr.mxu0 0.0
    %676 = vmatpush2.msra.mxu0 0.0
    %677 = vmatprep.subr.mxu0 0.0
    %678 = vmatpush2.msra.mxu0 0.0
    %679 = vmatprep.subr.mxu0 0.0
    %680 = vmatpush2.msra.mxu0 0.0
    %681 = vmatprep.subr.mxu0 0.0
    %682 = vmatpush2.msra.mxu0 0.0
    %683 = vmatprep.subr.mxu0 0.0
    %684 = vmatpush2.msra.mxu0 0.0
    %685 = vmatprep.subr.mxu0 0.0
    %686 = vmatpush2.msra.mxu0 0.0
    %687 = vmatprep.subr.mxu0 0.0
    %688 = vmatpush2.msra.mxu0 0.0
    %689 = vmatprep.subr.mxu0 0.0
    %690 = vmatpush2.msra.mxu0 0.0
    %691 = vmatprep.mubr.f32.mxu0 0.0
    %692 = vmatmul.mubr.f32.gmra.mxu0 %v625
    %v693 = vpop.f32.mrf.mxu0
    %v694 = vadd.f32 %v621, %v693
    %v695 = vpop.f32.mrf.mxu0
    %696 = vdwg.mxu0
    %697 = vrot.lane.b32.xlu0 %v209, 112
    %v698 = vpop.permute.xlu0 %697
    %699 = vrot.lane.b32.xlu0 %v209, 80
    %v700 = vpop.permute.xlu0 %699
    %v701 = vsel %vm224, %v698, 0
    %v703 = vsel %vm224, %v700, 0
    %705 = vmatprep.subr.mxu0 0.0
    %706 = vmatpush1.xpose.msra.mxu0 0.0
    %707 = vmatprep.subr.mxu0 0.0
    %708 = vmatpush1.xpose.msra.mxu0 0.0
    %709 = vmatprep.subr.mxu0 0.0
    %710 = vmatpush1.xpose.msra.mxu0 0.0
    %711 = vmatprep.subr.mxu0 0.0
    %712 = vmatpush1.xpose.msra.mxu0 0.0
    %713 = vmatprep.subr.mxu0 0.0
    %714 = vmatpush1.xpose.msra.mxu0 0.0
    %715 = vmatprep.subr.mxu0 0.0
    %716 = vmatpush1.xpose.msra.mxu0 0.0
    %717 = vmatprep.subr.mxu0 0.0
    %718 = vmatpush1.xpose.msra.mxu0 0.0
    %719 = vmatprep.subr.mxu0 0.0
    %720 = vmatpush1.xpose.msra.mxu0 0.0
    %721 = vmatprep.subr.mxu0 0.0
    %722 = vmatpush1.xpose.msra.mxu0 0.0
    %723 = vmatprep.subr.mxu0 0.0
    %724 = vmatpush1.xpose.msra.mxu0 0.0
    %725 = vmatprep.subr.mxu0 0.0
    %726 = vmatpush1.xpose.msra.mxu0 0.0
    %727 = vmatprep.subr.mxu0 0.0
    %728 = vmatpush1.xpose.msra.mxu0 0.0
    %729 = vmatprep.subr.mxu0 0.0
    %730 = vmatpush1.xpose.msra.mxu0 0.0
    %731 = vmatprep.subr.mxu0 0.0
    %732 = vmatpush1.xpose.msra.mxu0 0.0
    %733 = vmatprep.subr.mxu0 0.0
    %734 = vmatpush1.xpose.msra.mxu0 0.0
    %735 = vmatprep.subr.mxu0 0.0
    %736 = vmatpush1.xpose.msra.mxu0 %v703
    %737 = vmatprep.subr.mxu0 0.0
    %738 = vmatpush2.xpose.msra.mxu0 0.0
    %739 = vmatprep.subr.mxu0 0.0
    %740 = vmatpush2.xpose.msra.mxu0 0.0
    %741 = vmatprep.subr.mxu0 0.0
    %742 = vmatpush2.xpose.msra.mxu0 0.0
    %743 = vmatprep.subr.mxu0 0.0
    %744 = vmatpush2.xpose.msra.mxu0 0.0
    %745 = vmatprep.subr.mxu0 0.0
    %746 = vmatpush2.xpose.msra.mxu0 0.0
    %747 = vmatprep.subr.mxu0 0.0
    %748 = vmatpush2.xpose.msra.mxu0 0.0
    %749 = vmatprep.subr.mxu0 0.0
    %750 = vmatpush2.xpose.msra.mxu0 0.0
    %751 = vmatprep.subr.mxu0 0.0
    %752 = vmatpush2.xpose.msra.mxu0 0.0
    %753 = vmatprep.subr.mxu0 0.0
    %754 = vmatpush2.xpose.msra.mxu0 0.0
    %755 = vmatprep.subr.mxu0 0.0
    %756 = vmatpush2.xpose.msra.mxu0 0.0
    %757 = vmatprep.subr.mxu0 0.0
    %758 = vmatpush2.xpose.msra.mxu0 0.0
    %759 = vmatprep.subr.mxu0 0.0
    %760 = vmatpush2.xpose.msra.mxu0 0.0
    %761 = vmatprep.subr.mxu0 0.0
    %762 = vmatpush2.xpose.msra.mxu0 0.0
    %763 = vmatprep.subr.mxu0 0.0
    %764 = vmatpush2.xpose.msra.mxu0 0.0
    %765 = vmatprep.subr.mxu0 0.0
    %766 = vmatpush2.xpose.msra.mxu0 0.0
    %767 = vmatprep.subr.mxu0 0.0
    %768 = vmatpush2.xpose.msra.mxu0 0.0
    %769 = vmatprep.mubr.f32.mxu0 0.0
    %770 = vmatmul.mubr.f32.gmra.mxu0 %v701
    %v771 = vpop.f32.mrf.mxu0
    %v772 = vadd.f32 %v126, %v771
    %v773 = vpop.f32.mrf.mxu0
    %774 = vdwg.mxu0
    %v775 = vsel %vm224, %v772, -inf
    %776 = vmax.xlane.f32.xlu0 %v775
    %v777 = vpop.xlane.xlu0 %776
    %v778 = vsub.f32 %v772, %v777
    %v779 = vmul.f32 %v778, 1.442695
    %v780 = vpow.pop %v779
    %v781 = vsel %vm224, %v780, 0.0
    %782 = vadd.xlane.f32.xlu0 %v781
    %v783 = vpop.xlane.xlu0 %782
    %v784 = vrcp.pop %v783
    %v785 = vmul.f32 %v780, %v784
    %786 = vrot.lane.b32.xlu0 %v209, 48
    %v787 = vpop.permute.xlu0 %786
    %v790 = vsel %vm224, %v785, 0
    %792 = vmatprep.subr.mxu0 0.0
    %793 = vmatpush1.msra.mxu0 0.0
    %794 = vmatprep.subr.mxu0 0.0
    %795 = vmatpush1.msra.mxu0 0.0
    %796 = vmatprep.subr.mxu0 0.0
    %797 = vmatpush1.msra.mxu0 0.0
    %798 = vmatprep.subr.mxu0 0.0
    %799 = vmatpush1.msra.mxu0 0.0
    %800 = vmatprep.subr.mxu0 0.0
    %801 = vmatpush1.msra.mxu0 0.0
    %802 = vmatprep.subr.mxu0 0.0
    %803 = vmatpush1.msra.mxu0 0.0
    %804 = vmatprep.subr.mxu0 0.0
    %805 = vmatpush1.msra.mxu0 0.0
    %806 = vmatprep.subr.mxu0 0.0
    %807 = vmatpush1.msra.mxu0 0.0
    %808 = vmatprep.subr.mxu0 0.0
    %809 = vmatpush1.msra.mxu0 0.0
    %810 = vmatprep.subr.mxu0 0.0
    %811 = vmatpush1.msra.mxu0 0.0
    %812 = vmatprep.subr.mxu0 0.0
    %813 = vmatpush1.msra.mxu0 0.0
    %814 = vmatprep.subr.mxu0 0.0
    %815 = vmatpush1.msra.mxu0 0.0
    %816 = vmatprep.subr.mxu0 0.0
    %817 = vmatpush1.msra.mxu0 0.0
    %818 = vmatprep.subr.mxu0 0.0
    %819 = vmatpush1.msra.mxu0 0.0
    %820 = vmatprep.subr.mxu0 0.0
    %821 = vmatpush1.msra.mxu0 0.0
    %822 = vmatprep.subr.mxu0 0.0
    %823 = vmatpush1.msra.mxu0 %v787
    %824 = vmatprep.subr.mxu0 0.0
    %825 = vmatpush2.msra.mxu0 0.0
    %826 = vmatprep.subr.mxu0 0.0
    %827 = vmatpush2.msra.mxu0 0.0
    %828 = vmatprep.subr.mxu0 0.0
    %829 = vmatpush2.msra.mxu0 0.0
    %830 = vmatprep.subr.mxu0 0.0
    %831 = vmatpush2.msra.mxu0 0.0
    %832 = vmatprep.subr.mxu0 0.0
    %833 = vmatpush2.msra.mxu0 0.0
    %834 = vmatprep.subr.mxu0 0.0
    %835 = vmatpush2.msra.mxu0 0.0
    %836 = vmatprep.subr.mxu0 0.0
    %837 = vmatpush2.msra.mxu0 0.0
    %838 = vmatprep.subr.mxu0 0.0
    %839 = vmatpush2.msra.mxu0 0.0
    %840 = vmatprep.subr.mxu0 0.0
    %841 = vmatpush2.msra.mxu0 0.0
    %842 = vmatprep.subr.mxu0 0.0
    %843 = vmatpush2.msra.mxu0 0.0
    %844 = vmatprep.subr.mxu0 0.0
    %845 = vmatpush2.msra.mxu0 0.0
    %846 = vmatprep.subr.mxu0 0.0
    %847 = vmatpush2.msra.mxu0 0.0
    %848 = vmatprep.subr.mxu0 0.0
    %849 = vmatpush2.msra.mxu0 0.0
    %850 = vmatprep.subr.mxu0 0.0
    %851 = vmatpush2.msra.mxu0 0.0
    %852 = vmatprep.subr.mxu0 0.0
    %853 = vmatpush2.msra.mxu0 0.0
    %854 = vmatprep.subr.mxu0 0.0
    %855 = vmatpush2.msra.mxu0 0.0
    %856 = vmatprep.mubr.f32.mxu0 0.0
    %857 = vmatmul.mubr.f32.gmra.mxu0 %v790
    %v858 = vpop.f32.mrf.mxu0
    %v859 = vadd.f32 0.0, %v858
    %v860 = vpop.f32.mrf.mxu0
    %861 = vdwg.mxu0
    %v863 = vsel %vm224, %v859, 0
    %865 = vmatprep.subr.mxu0 0.0
    %866 = vmatpush1.msra.mxu0 0.0
    %867 = vmatprep.subr.mxu0 0.0
    %868 = vmatpush1.msra.mxu0 0.0
    %869 = vmatprep.subr.mxu0 0.0
    %870 = vmatpush1.msra.mxu0 0.0
    %871 = vmatprep.subr.mxu0 0.0
    %872 = vmatpush1.msra.mxu0 0.0
    %873 = vmatprep.subr.mxu0 0.0
    %874 = vmatpush1.msra.mxu0 0.0
    %875 = vmatprep.subr.mxu0 0.0
    %876 = vmatpush1.msra.mxu0 0.0
    %877 = vmatprep.subr.mxu0 0.0
    %878 = vmatpush1.msra.mxu0 0.0
    %879 = vmatprep.subr.mxu0 0.0
    %880 = vmatpush1.msra.mxu0 0.0
    %881 = vmatprep.subr.mxu0 0.0
    %882 = vmatpush1.msra.mxu0 0.0
    %883 = vmatprep.subr.mxu0 0.0
    %884 = vmatpush1.msra.mxu0 0.0
    %885 = vmatprep.subr.mxu0 0.0
    %886 = vmatpush1.msra.mxu0 0.0
    %887 = vmatprep.subr.mxu0 0.0
    %888 = vmatpush1.msra.mxu0 0.0
    %889 = vmatprep.subr.mxu0 0.0
    %890 = vmatpush1.msra.mxu0 0.0
    %891 = vmatprep.subr.mxu0 0.0
    %892 = vmatpush1.msra.mxu0 0.0
    %893 = vmatprep.subr.mxu0 0.0
    %894 = vmatpush1.msra.mxu0 0.0
    %895 = vmatprep.subr.mxu0 0.0
    %896 = vmatpush1.msra.mxu0 %v219
    %897 = vmatprep.subr.mxu0 0.0
    %898 = vmatpush2.msra.mxu0 0.0
    %899 = vmatprep.subr.mxu0 0.0
    %900 = vmatpush2.msra.mxu0 0.0
    %901 = vmatprep.subr.mxu0 0.0
    %902 = vmatpush2.msra.mxu0 0.0
    %903 = vmatprep.subr.mxu0 0.0
    %904 = vmatpush2.msra.mxu0 0.0
    %905 = vmatprep.subr.mxu0 0.0
    %906 = vmatpush2.msra.mxu0 0.0
    %907 = vmatprep.subr.mxu0 0.0
    %908 = vmatpush2.msra.mxu0 0.0
    %909 = vmatprep.subr.mxu0 0.0
    %910 = vmatpush2.msra.mxu0 0.0
    %911 = vmatprep.subr.mxu0 0.0
    %912 = vmatpush2.msra.mxu0 0.0
    %913 = vmatprep.subr.mxu0 0.0
    %914 = vmatpush2.msra.mxu0 0.0
    %915 = vmatprep.subr.mxu0 0.0
    %916 = vmatpush2.msra.mxu0 0.0
    %917 = vmatprep.subr.mxu0 0.0
    %918 = vmatpush2.msra.mxu0 0.0
    %919 = vmatprep.subr.mxu0 0.0
    %920 = vmatpush2.msra.mxu0 0.0
    %921 = vmatprep.subr.mxu0 0.0
    %922 = vmatpush2.msra.mxu0 0.0
    %923 = vmatprep.subr.mxu0 0.0
    %924 = vmatpush2.msra.mxu0 0.0
    %925 = vmatprep.subr.mxu0 0.0
    %926 = vmatpush2.msra.mxu0 0.0
    %927 = vmatprep.subr.mxu0 0.0
    %928 = vmatpush2.msra.mxu0 0.0
    %929 = vmatprep.mubr.f32.mxu0 0.0
    %930 = vmatmul.mubr.f32.gmra.mxu0 %v863
    %v931 = vpop.f32.mrf.mxu0
    %v932 = vadd.f32 0.0, %v931
    %v933 = vpop.f32.mrf.mxu0
    %934 = vdwg.mxu0
    %v935 = vadd.f32 %v694, %v932
    %936 = vrot.lane.b32.xlu0 %v209, 104
    %v937 = vpop.permute.xlu0 %936
    %938 = vrot.lane.b32.xlu0 %v209, 72
    %v939 = vpop.permute.xlu0 %938
    %v940 = vsel %vm224, %v937, 0
    %v942 = vsel %vm224, %v939, 0
    %944 = vmatprep.subr.mxu0 0.0
    %945 = vmatpush1.xpose.msra.mxu0 0.0
    %946 = vmatprep.subr.mxu0 0.0
    %947 = vmatpush1.xpose.msra.mxu0 0.0
    %948 = vmatprep.subr.mxu0 0.0
    %949 = vmatpush1.xpose.msra.mxu0 0.0
    %950 = vmatprep.subr.mxu0 0.0
    %951 = vmatpush1.xpose.msra.mxu0 0.0
    %952 = vmatprep.subr.mxu0 0.0
    %953 = vmatpush1.xpose.msra.mxu0 0.0
    %954 = vmatprep.subr.mxu0 0.0
    %955 = vmatpush1.xpose.msra.mxu0 0.0
    %956 = vmatprep.subr.mxu0 0.0
    %957 = vmatpush1.xpose.msra.mxu0 0.0
    %958 = vmatprep.subr.mxu0 0.0
    %959 = vmatpush1.xpose.msra.mxu0 0.0
    %960 = vmatprep.subr.mxu0 0.0
    %961 = vmatpush1.xpose.msra.mxu0 0.0
    %962 = vmatprep.subr.mxu0 0.0
    %963 = vmatpush1.xpose.msra.mxu0 0.0
    %964 = vmatprep.subr.mxu0 0.0
    %965 = vmatpush1.xpose.msra.mxu0 0.0
    %966 = vmatprep.subr.mxu0 0.0
    %967 = vmatpush1.xpose.msra.mxu0 0.0
    %968 = vmatprep.subr.mxu0 0.0
    %969 = vmatpush1.xpose.msra.mxu0 0.0
    %970 = vmatprep.subr.mxu0 0.0
    %971 = vmatpush1.xpose.msra.mxu0 0.0
    %972 = vmatprep.subr.mxu0 0.0
    %973 = vmatpush1.xpose.msra.mxu0 0.0
    %974 = vmatprep.subr.mxu0 0.0
    %975 = vmatpush1.xpose.msra.mxu0 %v942
    %976 = vmatprep.subr.mxu0 0.0
    %977 = vmatpush2.xpose.msra.mxu0 0.0
    %978 = vmatprep.subr.mxu0 0.0
    %979 = vmatpush2.xpose.msra.mxu0 0.0
    %980 = vmatprep.subr.mxu0 0.0
    %981 = vmatpush2.xpose.msra.mxu0 0.0
    %982 = vmatprep.subr.mxu0 0.0
    %983 = vmatpush2.xpose.msra.mxu0 0.0
    %984 = vmatprep.subr.mxu0 0.0
    %985 = vmatpush2.xpose.msra.mxu0 0.0
    %986 = vmatprep.subr.mxu0 0.0
    %987 = vmatpush2.xpose.msra.mxu0 0.0
    %988 = vmatprep.subr.mxu0 0.0
    %989 = vmatpush2.xpose.msra.mxu0 0.0
    %990 = vmatprep.subr.mxu0 0.0
    %991 = vmatpush2.xpose.msra.mxu0 0.0
    %992 = vmatprep.subr.mxu0 0.0
    %993 = vmatpush2.xpose.msra.mxu0 0.0
    %994 = vmatprep.subr.mxu0 0.0
    %995 = vmatpush2.xpose.msra.mxu0 0.0
    %996 = vmatprep.subr.mxu0 0.0
    %997 = vmatpush2.xpose.msra.mxu0 0.0
    %998 = vmatprep.subr.mxu0 0.0
    %999 = vmatpush2.xpose.msra.mxu0 0.0
    %1000 = vmatprep.subr.mxu0 0.0
    %1001 = vmatpush2.xpose.msra.mxu0 0.0
    %1002 = vmatprep.subr.mxu0 0.0
    %1003 = vmatpush2.xpose.msra.mxu0 0.0
    %1004 = vmatprep.subr.mxu0 0.0
    %1005 = vmatpush2.xpose.msra.mxu0 0.0
    %1006 = vmatprep.subr.mxu0 0.0
    %1007 = vmatpush2.xpose.msra.mxu0 0.0
    %1008 = vmatprep.mubr.f32.mxu0 0.0
    %1009 = vmatmul.mubr.f32.gmra.mxu0 %v940
    %v1010 = vpop.f32.mrf.mxu0
    %v1011 = vadd.f32 %v126, %v1010
    %v1012 = vpop.f32.mrf.mxu0
    %1013 = vdwg.mxu0
    %v1014 = vsel %vm224, %v1011, -inf
    %1015 = vmax.xlane.f32.xlu0 %v1014
    %v1016 = vpop.xlane.xlu0 %1015
    %v1017 = vsub.f32 %v1011, %v1016
    %v1018 = vmul.f32 %v1017, 1.442695
    %v1019 = vpow.pop %v1018
    %v1020 = vsel %vm224, %v1019, 0.0
    %1021 = vadd.xlane.f32.xlu0 %v1020
    %v1022 = vpop.xlane.xlu0 %1021
    %v1023 = vrcp.pop %v1022
    %v1024 = vmul.f32 %v1019, %v1023
    %1025 = vrot.lane.b32.xlu0 %v209, 40
    %v1026 = vpop.permute.xlu0 %1025
    %v1029 = vsel %vm224, %v1024, 0
    %1031 = vmatprep.subr.mxu0 0.0
    %1032 = vmatpush1.msra.mxu0 0.0
    %1033 = vmatprep.subr.mxu0 0.0
    %1034 = vmatpush1.msra.mxu0 0.0
    %1035 = vmatprep.subr.mxu0 0.0
    %1036 = vmatpush1.msra.mxu0 0.0
    %1037 = vmatprep.subr.mxu0 0.0
    %1038 = vmatpush1.msra.mxu0 0.0
    %1039 = vmatprep.subr.mxu0 0.0
    %1040 = vmatpush1.msra.mxu0 0.0
    %1041 = vmatprep.subr.mxu0 0.0
    %1042 = vmatpush1.msra.mxu0 0.0
    %1043 = vmatprep.subr.mxu0 0.0
    %1044 = vmatpush1.msra.mxu0 0.0
    %1045 = vmatprep.subr.mxu0 0.0
    %1046 = vmatpush1.msra.mxu0 0.0
    %1047 = vmatprep.subr.mxu0 0.0
    %1048 = vmatpush1.msra.mxu0 0.0
    %1049 = vmatprep.subr.mxu0 0.0
    %1050 = vmatpush1.msra.mxu0 0.0
    %1051 = vmatprep.subr.mxu0 0.0
    %1052 = vmatpush1.msra.mxu0 0.0
    %1053 = vmatprep.subr.mxu0 0.0
    %1054 = vmatpush1.msra.mxu0 0.0
    %1055 = vmatprep.subr.mxu0 0.0
    %1056 = vmatpush1.msra.mxu0 0.0
    %1057 = vmatprep.subr.mxu0 0.0
    %1058 = vmatpush1.msra.mxu0 0.0
    %1059 = vmatprep.subr.mxu0 0.0
    %1060 = vmatpush1.msra.mxu0 0.0
    %1061 = vmatprep.subr.mxu0 0.0
    %1062 = vmatpush1.msra.mxu0 %v1026
    %1063 = vmatprep.subr.mxu0 0.0
    %1064 = vmatpush2.msra.mxu0 0.0
    %1065 = vmatprep.subr.mxu0 0.0
    %1066 = vmatpush2.msra.mxu0 0.0
    %1067 = vmatprep.subr.mxu0 0.0
    %1068 = vmatpush2.msra.mxu0 0.0
    %1069 = vmatprep.subr.mxu0 0.0
    %1070 = vmatpush2.msra.mxu0 0.0
    %1071 = vmatprep.subr.mxu0 0.0
    %1072 = vmatpush2.msra.mxu0 0.0
    %1073 = vmatprep.subr.mxu0 0.0
    %1074 = vmatpush2.msra.mxu0 0.0
    %1075 = vmatprep.subr.mxu0 0.0
    %1076 = vmatpush2.msra.mxu0 0.0
    %1077 = vmatprep.subr.mxu0 0.0
    %1078 = vmatpush2.msra.mxu0 0.0
    %1079 = vmatprep.subr.mxu0 0.0
    %1080 = vmatpush2.msra.mxu0 0.0
    %1081 = vmatprep.subr.mxu0 0.0
    %1082 = vmatpush2.msra.mxu0 0.0
    %1083 = vmatprep.subr.mxu0 0.0
    %1084 = vmatpush2.msra.mxu0 0.0
    %1085 = vmatprep.subr.mxu0 0.0
    %1086 = vmatpush2.msra.mxu0 0.0
    %1087 = vmatprep.subr.mxu0 0.0
    %1088 = vmatpush2.msra.mxu0 0.0
    %1089 = vmatprep.subr.mxu0 0.0
    %1090 = vmatpush2.msra.mxu0 0.0
    %1091 = vmatprep.subr.mxu0 0.0
    %1092 = vmatpush2.msra.mxu0 0.0
    %1093 = vmatprep.subr.mxu0 0.0
    %1094 = vmatpush2.msra.mxu0 0.0
    %1095 = vmatprep.mubr.f32.mxu0 0.0
    %1096 = vmatmul.mubr.f32.gmra.mxu0 %v1029
    %v1097 = vpop.f32.mrf.mxu0
    %v1098 = vadd.f32 0.0, %v1097
    %v1099 = vpop.f32.mrf.mxu0
    %1100 = vdwg.mxu0
    %v1102 = vsel %vm224, %v1098, 0
    %1104 = vmatprep.subr.mxu0 0.0
    %1105 = vmatpush1.msra.mxu0 0.0
    %1106 = vmatprep.subr.mxu0 0.0
    %1107 = vmatpush1.msra.mxu0 0.0
    %1108 = vmatprep.subr.mxu0 0.0
    %1109 = vmatpush1.msra.mxu0 0.0
    %1110 = vmatprep.subr.mxu0 0.0
    %1111 = vmatpush1.msra.mxu0 0.0
    %1112 = vmatprep.subr.mxu0 0.0
    %1113 = vmatpush1.msra.mxu0 0.0
    %1114 = vmatprep.subr.mxu0 0.0
    %1115 = vmatpush1.msra.mxu0 0.0
    %1116 = vmatprep.subr.mxu0 0.0
    %1117 = vmatpush1.msra.mxu0 0.0
    %1118 = vmatprep.subr.mxu0 0.0
    %1119 = vmatpush1.msra.mxu0 0.0
    %1120 = vmatprep.subr.mxu0 0.0
    %1121 = vmatpush1.msra.mxu0 0.0
    %1122 = vmatprep.subr.mxu0 0.0
    %1123 = vmatpush1.msra.mxu0 0.0
    %1124 = vmatprep.subr.mxu0 0.0
    %1125 = vmatpush1.msra.mxu0 0.0
    %1126 = vmatprep.subr.mxu0 0.0
    %1127 = vmatpush1.msra.mxu0 0.0
    %1128 = vmatprep.subr.mxu0 0.0
    %1129 = vmatpush1.msra.mxu0 0.0
    %1130 = vmatprep.subr.mxu0 0.0
    %1131 = vmatpush1.msra.mxu0 0.0
    %1132 = vmatprep.subr.mxu0 0.0
    %1133 = vmatpush1.msra.mxu0 0.0
    %1134 = vmatprep.subr.mxu0 0.0
    %1135 = vmatpush1.msra.mxu0 %v220
    %1136 = vmatprep.subr.mxu0 0.0
    %1137 = vmatpush2.msra.mxu0 0.0
    %1138 = vmatprep.subr.mxu0 0.0
    %1139 = vmatpush2.msra.mxu0 0.0
    %1140 = vmatprep.subr.mxu0 0.0
    %1141 = vmatpush2.msra.mxu0 0.0
    %1142 = vmatprep.subr.mxu0 0.0
    %1143 = vmatpush2.msra.mxu0 0.0
    %1144 = vmatprep.subr.mxu0 0.0
    %1145 = vmatpush2.msra.mxu0 0.0
    %1146 = vmatprep.subr.mxu0 0.0
    %1147 = vmatpush2.msra.mxu0 0.0
    %1148 = vmatprep.subr.mxu0 0.0
    %1149 = vmatpush2.msra.mxu0 0.0
    %1150 = vmatprep.subr.mxu0 0.0
    %1151 = vmatpush2.msra.mxu0 0.0
    %1152 = vmatprep.subr.mxu0 0.0
    %1153 = vmatpush2.msra.mxu0 0.0
    %1154 = vmatprep.subr.mxu0 0.0
    %1155 = vmatpush2.msra.mxu0 0.0
    %1156 = vmatprep.subr.mxu0 0.0
    %1157 = vmatpush2.msra.mxu0 0.0
    %1158 = vmatprep.subr.mxu0 0.0
    %1159 = vmatpush2.msra.mxu0 0.0
    %1160 = vmatprep.subr.mxu0 0.0
    %1161 = vmatpush2.msra.mxu0 0.0
    %1162 = vmatprep.subr.mxu0 0.0
    %1163 = vmatpush2.msra.mxu0 0.0
    %1164 = vmatprep.subr.mxu0 0.0
    %1165 = vmatpush2.msra.mxu0 0.0
    %1166 = vmatprep.subr.mxu0 0.0
    %1167 = vmatpush2.msra.mxu0 0.0
    %1168 = vmatprep.mubr.f32.mxu0 0.0
    %1169 = vmatmul.mubr.f32.gmra.mxu0 %v1102
    %v1170 = vpop.f32.mrf.mxu0
    %v1171 = vadd.f32 0.0, %v1170
    %v1172 = vpop.f32.mrf.mxu0
    %1173 = vdwg.mxu0
    %v1174 = vadd.f32 %v935, %v1171
    %1176 = vrot.lane.b32.xlu0 %v214, 96
    %v1177 = vpop.permute.xlu0 %1176
    %v1178 = vsel %vm224, %v214, 0
    %v1180 = vsel %vm224, %v1177, 0
    %1182 = vmatprep.subr.mxu0 0.0
    %1183 = vmatpush1.xpose.msra.mxu0 0.0
    %1184 = vmatprep.subr.mxu0 0.0
    %1185 = vmatpush1.xpose.msra.mxu0 0.0
    %1186 = vmatprep.subr.mxu0 0.0
    %1187 = vmatpush1.xpose.msra.mxu0 0.0
    %1188 = vmatprep.subr.mxu0 0.0
    %1189 = vmatpush1.xpose.msra.mxu0 0.0
    %1190 = vmatprep.subr.mxu0 0.0
    %1191 = vmatpush1.xpose.msra.mxu0 0.0
    %1192 = vmatprep.subr.mxu0 0.0
    %1193 = vmatpush1.xpose.msra.mxu0 0.0
    %1194 = vmatprep.subr.mxu0 0.0
    %1195 = vmatpush1.xpose.msra.mxu0 0.0
    %1196 = vmatprep.subr.mxu0 0.0
    %1197 = vmatpush1.xpose.msra.mxu0 0.0
    %1198 = vmatprep.subr.mxu0 0.0
    %1199 = vmatpush1.xpose.msra.mxu0 0.0
    %1200 = vmatprep.subr.mxu0 0.0
    %1201 = vmatpush1.xpose.msra.mxu0 0.0
    %1202 = vmatprep.subr.mxu0 0.0
    %1203 = vmatpush1.xpose.msra.mxu0 0.0
    %1204 = vmatprep.subr.mxu0 0.0
    %1205 = vmatpush1.xpose.msra.mxu0 0.0
    %1206 = vmatprep.subr.mxu0 0.0
    %1207 = vmatpush1.xpose.msra.mxu0 0.0
    %1208 = vmatprep.subr.mxu0 0.0
    %1209 = vmatpush1.xpose.msra.mxu0 0.0
    %1210 = vmatprep.subr.mxu0 0.0
    %1211 = vmatpush1.xpose.msra.mxu0 0.0
    %1212 = vmatprep.subr.mxu0 0.0
    %1213 = vmatpush1.xpose.msra.mxu0 %v1180
    %1214 = vmatprep.subr.mxu0 0.0
    %1215 = vmatpush2.xpose.msra.mxu0 0.0
    %1216 = vmatprep.subr.mxu0 0.0
    %1217 = vmatpush2.xpose.msra.mxu0 0.0
    %1218 = vmatprep.subr.mxu0 0.0
    %1219 = vmatpush2.xpose.msra.mxu0 0.0
    %1220 = vmatprep.subr.mxu0 0.0
    %1221 = vmatpush2.xpose.msra.mxu0 0.0
    %1222 = vmatprep.subr.mxu0 0.0
    %1223 = vmatpush2.xpose.msra.mxu0 0.0
    %1224 = vmatprep.subr.mxu0 0.0
    %1225 = vmatpush2.xpose.msra.mxu0 0.0
    %1226 = vmatprep.subr.mxu0 0.0
    %1227 = vmatpush2.xpose.msra.mxu0 0.0
    %1228 = vmatprep.subr.mxu0 0.0
    %1229 = vmatpush2.xpose.msra.mxu0 0.0
    %1230 = vmatprep.subr.mxu0 0.0
    %1231 = vmatpush2.xpose.msra.mxu0 0.0
    %1232 = vmatprep.subr.mxu0 0.0
    %1233 = vmatpush2.xpose.msra.mxu0 0.0
    %1234 = vmatprep.subr.mxu0 0.0
    %1235 = vmatpush2.xpose.msra.mxu0 0.0
    %1236 = vmatprep.subr.mxu0 0.0
    %1237 = vmatpush2.xpose.msra.mxu0 0.0
    %1238 = vmatprep.subr.mxu0 0.0
    %1239 = vmatpush2.xpose.msra.mxu0 0.0
    %1240 = vmatprep.subr.mxu0 0.0
    %1241 = vmatpush2.xpose.msra.mxu0 0.0
    %1242 = vmatprep.subr.mxu0 0.0
    %1243 = vmatpush2.xpose.msra.mxu0 0.0
    %1244 = vmatprep.subr.mxu0 0.0
    %1245 = vmatpush2.xpose.msra.mxu0 0.0
    %1246 = vmatprep.mubr.f32.mxu0 0.0
    %1247 = vmatmul.mubr.f32.gmra.mxu0 %v1178
    %v1248 = vpop.f32.mrf.mxu0
    %v1249 = vadd.f32 %v126, %v1248
    %v1250 = vpop.f32.mrf.mxu0
    %1251 = vdwg.mxu0
    %v1252 = vsel %vm224, %v1249, -inf
    %1253 = vmax.xlane.f32.xlu0 %v1252
    %v1254 = vpop.xlane.xlu0 %1253
    %v1255 = vsub.f32 %v1249, %v1254
    %v1256 = vmul.f32 %v1255, 1.442695
    %v1257 = vpow.pop %v1256
    %v1258 = vsel %vm224, %v1257, 0.0
    %1259 = vadd.xlane.f32.xlu0 %v1258
    %v1260 = vpop.xlane.xlu0 %1259
    %v1261 = vrcp.pop %v1260
    %v1262 = vmul.f32 %v1257, %v1261
    %1263 = vrot.lane.b32.xlu0 %v214, 64
    %v1264 = vpop.permute.xlu0 %1263
    %v1267 = vsel %vm224, %v1262, 0
    %1269 = vmatprep.subr.mxu0 0.0
    %1270 = vmatpush1.msra.mxu0 0.0
    %1271 = vmatprep.subr.mxu0 0.0
    %1272 = vmatpush1.msra.mxu0 0.0
    %1273 = vmatprep.subr.mxu0 0.0
    %1274 = vmatpush1.msra.mxu0 0.0
    %1275 = vmatprep.subr.mxu0 0.0
    %1276 = vmatpush1.msra.mxu0 0.0
    %1277 = vmatprep.subr.mxu0 0.0
    %1278 = vmatpush1.msra.mxu0 0.0
    %1279 = vmatprep.subr.mxu0 0.0
    %1280 = vmatpush1.msra.mxu0 0.0
    %1281 = vmatprep.subr.mxu0 0.0
    %1282 = vmatpush1.msra.mxu0 0.0
    %1283 = vmatprep.subr.mxu0 0.0
    %1284 = vmatpush1.msra.mxu0 0.0
    %1285 = vmatprep.subr.mxu0 0.0
    %1286 = vmatpush1.msra.mxu0 0.0
    %1287 = vmatprep.subr.mxu0 0.0
    %1288 = vmatpush1.msra.mxu0 0.0
    %1289 = vmatprep.subr.mxu0 0.0
    %1290 = vmatpush1.msra.mxu0 0.0
    %1291 = vmatprep.subr.mxu0 0.0
    %1292 = vmatpush1.msra.mxu0 0.0
    %1293 = vmatprep.subr.mxu0 0.0
    %1294 = vmatpush1.msra.mxu0 0.0
    %1295 = vmatprep.subr.mxu0 0.0
    %1296 = vmatpush1.msra.mxu0 0.0
    %1297 = vmatprep.subr.mxu0 0.0
    %1298 = vmatpush1.msra.mxu0 0.0
    %1299 = vmatprep.subr.mxu0 0.0
    %1300 = vmatpush1.msra.mxu0 %v1264
    %1301 = vmatprep.subr.mxu0 0.0
    %1302 = vmatpush2.msra.mxu0 0.0
    %1303 = vmatprep.subr.mxu0 0.0
    %1304 = vmatpush2.msra.mxu0 0.0
    %1305 = vmatprep.subr.mxu0 0.0
    %1306 = vmatpush2.msra.mxu0 0.0
    %1307 = vmatprep.subr.mxu0 0.0
    %1308 = vmatpush2.msra.mxu0 0.0
    %1309 = vmatprep.subr.mxu0 0.0
    %1310 = vmatpush2.msra.mxu0 0.0
    %1311 = vmatprep.subr.mxu0 0.0
    %1312 = vmatpush2.msra.mxu0 0.0
    %1313 = vmatprep.subr.mxu0 0.0
    %1314 = vmatpush2.msra.mxu0 0.0
    %1315 = vmatprep.subr.mxu0 0.0
    %1316 = vmatpush2.msra.mxu0 0.0
    %1317 = vmatprep.subr.mxu0 0.0
    %1318 = vmatpush2.msra.mxu0 0.0
    %1319 = vmatprep.subr.mxu0 0.0
    %1320 = vmatpush2.msra.mxu0 0.0
    %1321 = vmatprep.subr.mxu0 0.0
    %1322 = vmatpush2.msra.mxu0 0.0
    %1323 = vmatprep.subr.mxu0 0.0
    %1324 = vmatpush2.msra.mxu0 0.0
    %1325 = vmatprep.subr.mxu0 0.0
    %1326 = vmatpush2.msra.mxu0 0.0
    %1327 = vmatprep.subr.mxu0 0.0
    %1328 = vmatpush2.msra.mxu0 0.0
    %1329 = vmatprep.subr.mxu0 0.0
    %1330 = vmatpush2.msra.mxu0 0.0
    %1331 = vmatprep.subr.mxu0 0.0
    %1332 = vmatpush2.msra.mxu0 0.0
    %1333 = vmatprep.mubr.f32.mxu0 0.0
    %1334 = vmatmul.mubr.f32.gmra.mxu0 %v1267
    %v1335 = vpop.f32.mrf.mxu0
    %v1336 = vadd.f32 0.0, %v1335
    %v1337 = vpop.f32.mrf.mxu0
    %1338 = vdwg.mxu0
    %1339 = vrot.lane.b32.xlu0 %v214, 120
    %v1340 = vpop.permute.xlu0 %1339
    %1341 = vrot.lane.b32.xlu0 %v214, 88
    %v1342 = vpop.permute.xlu0 %1341
    %v1343 = vsel %vm224, %v1340, 0
    %v1345 = vsel %vm224, %v1342, 0
    %1347 = vmatprep.subr.mxu0 0.0
    %1348 = vmatpush1.xpose.msra.mxu0 0.0
    %1349 = vmatprep.subr.mxu0 0.0
    %1350 = vmatpush1.xpose.msra.mxu0 0.0
    %1351 = vmatprep.subr.mxu0 0.0
    %1352 = vmatpush1.xpose.msra.mxu0 0.0
    %1353 = vmatprep.subr.mxu0 0.0
    %1354 = vmatpush1.xpose.msra.mxu0 0.0
    %1355 = vmatprep.subr.mxu0 0.0
    %1356 = vmatpush1.xpose.msra.mxu0 0.0
    %1357 = vmatprep.subr.mxu0 0.0
    %1358 = vmatpush1.xpose.msra.mxu0 0.0
    %1359 = vmatprep.subr.mxu0 0.0
    %1360 = vmatpush1.xpose.msra.mxu0 0.0
    %1361 = vmatprep.subr.mxu0 0.0
    %1362 = vmatpush1.xpose.msra.mxu0 0.0
    %1363 = vmatprep.subr.mxu0 0.0
    %1364 = vmatpush1.xpose.msra.mxu0 0.0
    %1365 = vmatprep.subr.mxu0 0.0
    %1366 = vmatpush1.xpose.msra.mxu0 0.0
    %1367 = vmatprep.subr.mxu0 0.0
    %1368 = vmatpush1.xpose.msra.mxu0 0.0
    %1369 = vmatprep.subr.mxu0 0.0
    %1370 = vmatpush1.xpose.msra.mxu0 0.0
    %1371 = vmatprep.subr.mxu0 0.0
    %1372 = vmatpush1.xpose.msra.mxu0 0.0
    %1373 = vmatprep.subr.mxu0 0.0
    %1374 = vmatpush1.xpose.msra.mxu0 0.0
    %1375 = vmatprep.subr.mxu0 0.0
    %1376 = vmatpush1.xpose.msra.mxu0 0.0
    %1377 = vmatprep.subr.mxu0 0.0
    %1378 = vmatpush1.xpose.msra.mxu0 %v1345
    %1379 = vmatprep.subr.mxu0 0.0
    %1380 = vmatpush2.xpose.msra.mxu0 0.0
    %1381 = vmatprep.subr.mxu0 0.0
    %1382 = vmatpush2.xpose.msra.mxu0 0.0
    %1383 = vmatprep.subr.mxu0 0.0
    %1384 = vmatpush2.xpose.msra.mxu0 0.0
    %1385 = vmatprep.subr.mxu0 0.0
    %1386 = vmatpush2.xpose.msra.mxu0 0.0
    %1387 = vmatprep.subr.mxu0 0.0
    %1388 = vmatpush2.xpose.msra.mxu0 0.0
    %1389 = vmatprep.subr.mxu0 0.0
    %1390 = vmatpush2.xpose.msra.mxu0 0.0
    %1391 = vmatprep.subr.mxu0 0.0
    %1392 = vmatpush2.xpose.msra.mxu0 0.0
    %1393 = vmatprep.subr.mxu0 0.0
    %1394 = vmatpush2.xpose.msra.mxu0 0.0
    %1395 = vmatprep.subr.mxu0 0.0
    %1396 = vmatpush2.xpose.msra.mxu0 0.0
    %1397 = vmatprep.subr.mxu0 0.0
    %1398 = vmatpush2.xpose.msra.mxu0 0.0
    %1399 = vmatprep.subr.mxu0 0.0
    %1400 = vmatpush2.xpose.msra.mxu0 0.0
    %1401 = vmatprep.subr.mxu0 0.0
    %1402 = vmatpush2.xpose.msra.mxu0 0.0
    %1403 = vmatprep.subr.mxu0 0.0
    %1404 = vmatpush2.xpose.msra.mxu0 0.0
    %1405 = vmatprep.subr.mxu0 0.0
    %1406 = vmatpush2.xpose.msra.mxu0 0.0
    %1407 = vmatprep.subr.mxu0 0.0
    %1408 = vmatpush2.xpose.msra.mxu0 0.0
    %1409 = vmatprep.subr.mxu0 0.0
    %1410 = vmatpush2.xpose.msra.mxu0 0.0
    %1411 = vmatprep.mubr.f32.mxu0 0.0
    %1412 = vmatmul.mubr.f32.gmra.mxu0 %v1343
    %v1413 = vpop.f32.mrf.mxu0
    %v1414 = vadd.f32 %v126, %v1413
    %v1415 = vpop.f32.mrf.mxu0
    %1416 = vdwg.mxu0
    %v1417 = vsel %vm224, %v1414, -inf
    %1418 = vmax.xlane.f32.xlu0 %v1417
    %v1419 = vpop.xlane.xlu0 %1418
    %v1420 = vsub.f32 %v1414, %v1419
    %v1421 = vmul.f32 %v1420, 1.442695
    %v1422 = vpow.pop %v1421
    %v1423 = vsel %vm224, %v1422, 0.0
    %1424 = vadd.xlane.f32.xlu0 %v1423
    %v1425 = vpop.xlane.xlu0 %1424
    %v1426 = vrcp.pop %v1425
    %v1427 = vmul.f32 %v1422, %v1426
    %1428 = vrot.lane.b32.xlu0 %v214, 56
    %v1429 = vpop.permute.xlu0 %1428
    %v1432 = vsel %vm224, %v1427, 0
    %1434 = vmatprep.subr.mxu0 0.0
    %1435 = vmatpush1.msra.mxu0 0.0
    %1436 = vmatprep.subr.mxu0 0.0
    %1437 = vmatpush1.msra.mxu0 0.0
    %1438 = vmatprep.subr.mxu0 0.0
    %1439 = vmatpush1.msra.mxu0 0.0
    %1440 = vmatprep.subr.mxu0 0.0
    %1441 = vmatpush1.msra.mxu0 0.0
    %1442 = vmatprep.subr.mxu0 0.0
    %1443 = vmatpush1.msra.mxu0 0.0
    %1444 = vmatprep.subr.mxu0 0.0
    %1445 = vmatpush1.msra.mxu0 0.0
    %1446 = vmatprep.subr.mxu0 0.0
    %1447 = vmatpush1.msra.mxu0 0.0
    %1448 = vmatprep.subr.mxu0 0.0
    %1449 = vmatpush1.msra.mxu0 0.0
    %1450 = vmatprep.subr.mxu0 0.0
    %1451 = vmatpush1.msra.mxu0 0.0
    %1452 = vmatprep.subr.mxu0 0.0
    %1453 = vmatpush1.msra.mxu0 0.0
    %1454 = vmatprep.subr.mxu0 0.0
    %1455 = vmatpush1.msra.mxu0 0.0
    %1456 = vmatprep.subr.mxu0 0.0
    %1457 = vmatpush1.msra.mxu0 0.0
    %1458 = vmatprep.subr.mxu0 0.0
    %1459 = vmatpush1.msra.mxu0 0.0
    %1460 = vmatprep.subr.mxu0 0.0
    %1461 = vmatpush1.msra.mxu0 0.0
    %1462 = vmatprep.subr.mxu0 0.0
    %1463 = vmatpush1.msra.mxu0 0.0
    %1464 = vmatprep.subr.mxu0 0.0
    %1465 = vmatpush1.msra.mxu0 %v1429
    %1466 = vmatprep.subr.mxu0 0.0
    %1467 = vmatpush2.msra.mxu0 0.0
    %1468 = vmatprep.subr.mxu0 0.0
    %1469 = vmatpush2.msra.mxu0 0.0
    %1470 = vmatprep.subr.mxu0 0.0
    %1471 = vmatpush2.msra.mxu0 0.0
    %1472 = vmatprep.subr.mxu0 0.0
    %1473 = vmatpush2.msra.mxu0 0.0
    %1474 = vmatprep.subr.mxu0 0.0
    %1475 = vmatpush2.msra.mxu0 0.0
    %1476 = vmatprep.subr.mxu0 0.0
    %1477 = vmatpush2.msra.mxu0 0.0
    %1478 = vmatprep.subr.mxu0 0.0
    %1479 = vmatpush2.msra.mxu0 0.0
    %1480 = vmatprep.subr.mxu0 0.0
    %1481 = vmatpush2.msra.mxu0 0.0
    %1482 = vmatprep.subr.mxu0 0.0
    %1483 = vmatpush2.msra.mxu0 0.0
    %1484 = vmatprep.subr.mxu0 0.0
    %1485 = vmatpush2.msra.mxu0 0.0
    %1486 = vmatprep.subr.mxu0 0.0
    %1487 = vmatpush2.msra.mxu0 0.0
    %1488 = vmatprep.subr.mxu0 0.0
    %1489 = vmatpush2.msra.mxu0 0.0
    %1490 = vmatprep.subr.mxu0 0.0
    %1491 = vmatpush2.msra.mxu0 0.0
    %1492 = vmatprep.subr.mxu0 0.0
    %1493 = vmatpush2.msra.mxu0 0.0
    %1494 = vmatprep.subr.mxu0 0.0
    %1495 = vmatpush2.msra.mxu0 0.0
    %1496 = vmatprep.subr.mxu0 0.0
    %1497 = vmatpush2.msra.mxu0 0.0
    %1498 = vmatprep.mubr.f32.mxu0 0.0
    %1499 = vmatmul.mubr.f32.gmra.mxu0 %v1432
    %v1500 = vpop.f32.mrf.mxu0
    %v1501 = vadd.f32 0.0, %v1500
    %v1502 = vpop.f32.mrf.mxu0
    %1503 = vdwg.mxu0
    %v1505 = vsel %vm224, %v1501, 0
    %1507 = vmatprep.subr.mxu0 0.0
    %1508 = vmatpush1.msra.mxu0 0.0
    %1509 = vmatprep.subr.mxu0 0.0
    %1510 = vmatpush1.msra.mxu0 0.0
    %1511 = vmatprep.subr.mxu0 0.0
    %1512 = vmatpush1.msra.mxu0 0.0
    %1513 = vmatprep.subr.mxu0 0.0
    %1514 = vmatpush1.msra.mxu0 0.0
    %1515 = vmatprep.subr.mxu0 0.0
    %1516 = vmatpush1.msra.mxu0 0.0
    %1517 = vmatprep.subr.mxu0 0.0
    %1518 = vmatpush1.msra.mxu0 0.0
    %1519 = vmatprep.subr.mxu0 0.0
    %1520 = vmatpush1.msra.mxu0 0.0
    %1521 = vmatprep.subr.mxu0 0.0
    %1522 = vmatpush1.msra.mxu0 0.0
    %1523 = vmatprep.subr.mxu0 0.0
    %1524 = vmatpush1.msra.mxu0 0.0
    %1525 = vmatprep.subr.mxu0 0.0
    %1526 = vmatpush1.msra.mxu0 0.0
    %1527 = vmatprep.subr.mxu0 0.0
    %1528 = vmatpush1.msra.mxu0 0.0
    %1529 = vmatprep.subr.mxu0 0.0
    %1530 = vmatpush1.msra.mxu0 0.0
    %1531 = vmatprep.subr.mxu0 0.0
    %1532 = vmatpush1.msra.mxu0 0.0
    %1533 = vmatprep.subr.mxu0 0.0
    %1534 = vmatpush1.msra.mxu0 0.0
    %1535 = vmatprep.subr.mxu0 0.0
    %1536 = vmatpush1.msra.mxu0 0.0
    %1537 = vmatprep.subr.mxu0 0.0
    %1538 = vmatpush1.msra.mxu0 %v218
    %1539 = vmatprep.subr.mxu0 0.0
    %1540 = vmatpush2.msra.mxu0 0.0
    %1541 = vmatprep.subr.mxu0 0.0
    %1542 = vmatpush2.msra.mxu0 0.0
    %1543 = vmatprep.subr.mxu0 0.0
    %1544 = vmatpush2.msra.mxu0 0.0
    %1545 = vmatprep.subr.mxu0 0.0
    %1546 = vmatpush2.msra.mxu0 0.0
    %1547 = vmatprep.subr.mxu0 0.0
    %1548 = vmatpush2.msra.mxu0 0.0
    %1549 = vmatprep.subr.mxu0 0.0
    %1550 = vmatpush2.msra.mxu0 0.0
    %1551 = vmatprep.subr.mxu0 0.0
    %1552 = vmatpush2.msra.mxu0 0.0
    %1553 = vmatprep.subr.mxu0 0.0
    %1554 = vmatpush2.msra.mxu0 0.0
    %1555 = vmatprep.subr.mxu0 0.0
    %1556 = vmatpush2.msra.mxu0 0.0
    %1557 = vmatprep.subr.mxu0 0.0
    %1558 = vmatpush2.msra.mxu0 0.0
    %1559 = vmatprep.subr.mxu0 0.0
    %1560 = vmatpush2.msra.mxu0 0.0
    %1561 = vmatprep.subr.mxu0 0.0
    %1562 = vmatpush2.msra.mxu0 0.0
    %1563 = vmatprep.subr.mxu0 0.0
    %1564 = vmatpush2.msra.mxu0 0.0
    %1565 = vmatprep.subr.mxu0 0.0
    %1566 = vmatpush2.msra.mxu0 0.0
    %1567 = vmatprep.subr.mxu0 0.0
    %1568 = vmatpush2.msra.mxu0 0.0
    %1569 = vmatprep.subr.mxu0 0.0
    %1570 = vmatpush2.msra.mxu0 0.0
    %1571 = vmatprep.mubr.f32.mxu0 0.0
    %1572 = vmatmul.mubr.f32.gmra.mxu0 %v1505
    %v1573 = vpop.f32.mrf.mxu0
    %v1574 = vadd.f32 0.0, %v1573
    %v1575 = vpop.f32.mrf.mxu0
    %1576 = vdwg.mxu0
    %v1578 = vsel %vm224, %v1336, 0
    %1580 = vmatprep.subr.mxu0 0.0
    %1581 = vmatpush1.msra.mxu0 0.0
    %1582 = vmatprep.subr.mxu0 0.0
    %1583 = vmatpush1.msra.mxu0 0.0
    %1584 = vmatprep.subr.mxu0 0.0
    %1585 = vmatpush1.msra.mxu0 0.0
    %1586 = vmatprep.subr.mxu0 0.0
    %1587 = vmatpush1.msra.mxu0 0.0
    %1588 = vmatprep.subr.mxu0 0.0
    %1589 = vmatpush1.msra.mxu0 0.0
    %1590 = vmatprep.subr.mxu0 0.0
    %1591 = vmatpush1.msra.mxu0 0.0
    %1592 = vmatprep.subr.mxu0 0.0
    %1593 = vmatpush1.msra.mxu0 0.0
    %1594 = vmatprep.subr.mxu0 0.0
    %1595 = vmatpush1.msra.mxu0 0.0
    %1596 = vmatprep.subr.mxu0 0.0
    %1597 = vmatpush1.msra.mxu0 0.0
    %1598 = vmatprep.subr.mxu0 0.0
    %1599 = vmatpush1.msra.mxu0 0.0
    %1600 = vmatprep.subr.mxu0 0.0
    %1601 = vmatpush1.msra.mxu0 0.0
    %1602 = vmatprep.subr.mxu0 0.0
    %1603 = vmatpush1.msra.mxu0 0.0
    %1604 = vmatprep.subr.mxu0 0.0
    %1605 = vmatpush1.msra.mxu0 0.0
    %1606 = vmatprep.subr.mxu0 0.0
    %1607 = vmatpush1.msra.mxu0 0.0
    %1608 = vmatprep.subr.mxu0 0.0
    %1609 = vmatpush1.msra.mxu0 0.0
    %1610 = vmatprep.subr.mxu0 0.0
    %1611 = vmatpush1.msra.mxu0 %v217
    %1612 = vmatprep.subr.mxu0 0.0
    %1613 = vmatpush2.msra.mxu0 0.0
    %1614 = vmatprep.subr.mxu0 0.0
    %1615 = vmatpush2.msra.mxu0 0.0
    %1616 = vmatprep.subr.mxu0 0.0
    %1617 = vmatpush2.msra.mxu0 0.0
    %1618 = vmatprep.subr.mxu0 0.0
    %1619 = vmatpush2.msra.mxu0 0.0
    %1620 = vmatprep.subr.mxu0 0.0
    %1621 = vmatpush2.msra.mxu0 0.0
    %1622 = vmatprep.subr.mxu0 0.0
    %1623 = vmatpush2.msra.mxu0 0.0
    %1624 = vmatprep.subr.mxu0 0.0
    %1625 = vmatpush2.msra.mxu0 0.0
    %1626 = vmatprep.subr.mxu0 0.0
    %1627 = vmatpush2.msra.mxu0 0.0
    %1628 = vmatprep.subr.mxu0 0.0
    %1629 = vmatpush2.msra.mxu0 0.0
    %1630 = vmatprep.subr.mxu0 0.0
    %1631 = vmatpush2.msra.mxu0 0.0
    %1632 = vmatprep.subr.mxu0 0.0
    %1633 = vmatpush2.msra.mxu0 0.0
    %1634 = vmatprep.subr.mxu0 0.0
    %1635 = vmatpush2.msra.mxu0 0.0
    %1636 = vmatprep.subr.mxu0 0.0
    %1637 = vmatpush2.msra.mxu0 0.0
    %1638 = vmatprep.subr.mxu0 0.0
    %1639 = vmatpush2.msra.mxu0 0.0
    %1640 = vmatprep.subr.mxu0 0.0
    %1641 = vmatpush2.msra.mxu0 0.0
    %1642 = vmatprep.subr.mxu0 0.0
    %1643 = vmatpush2.msra.mxu0 0.0
    %1644 = vmatprep.mubr.f32.mxu0 0.0
    %1645 = vmatmul.mubr.f32.gmra.mxu0 %v1578
    %v1646 = vpop.f32.mrf.mxu0
    %v1647 = vadd.f32 %v1574, %v1646
    %v1648 = vpop.f32.mrf.mxu0
    %1649 = vdwg.mxu0
    %1650 = vrot.lane.b32.xlu0 %v214, 112
    %v1651 = vpop.permute.xlu0 %1650
    %1652 = vrot.lane.b32.xlu0 %v214, 80
    %v1653 = vpop.permute.xlu0 %1652
    %v1654 = vsel %vm224, %v1651, 0
    %v1656 = vsel %vm224, %v1653, 0
    %1658 = vmatprep.subr.mxu0 0.0
    %1659 = vmatpush1.xpose.msra.mxu0 0.0
    %1660 = vmatprep.subr.mxu0 0.0
    %1661 = vmatpush1.xpose.msra.mxu0 0.0
    %1662 = vmatprep.subr.mxu0 0.0
    %1663 = vmatpush1.xpose.msra.mxu0 0.0
    %1664 = vmatprep.subr.mxu0 0.0
    %1665 = vmatpush1.xpose.msra.mxu0 0.0
    %1666 = vmatprep.subr.mxu0 0.0
    %1667 = vmatpush1.xpose.msra.mxu0 0.0
    %1668 = vmatprep.subr.mxu0 0.0
    %1669 = vmatpush1.xpose.msra.mxu0 0.0
    %1670 = vmatprep.subr.mxu0 0.0
    %1671 = vmatpush1.xpose.msra.mxu0 0.0
    %1672 = vmatprep.subr.mxu0 0.0
    %1673 = vmatpush1.xpose.msra.mxu0 0.0
    %1674 = vmatprep.subr.mxu0 0.0
    %1675 = vmatpush1.xpose.msra.mxu0 0.0
    %1676 = vmatprep.subr.mxu0 0.0
    %1677 = vmatpush1.xpose.msra.mxu0 0.0
    %1678 = vmatprep.subr.mxu0 0.0
    %1679 = vmatpush1.xpose.msra.mxu0 0.0
    %1680 = vmatprep.subr.mxu0 0.0
    %1681 = vmatpush1.xpose.msra.mxu0 0.0
    %1682 = vmatprep.subr.mxu0 0.0
    %1683 = vmatpush1.xpose.msra.mxu0 0.0
    %1684 = vmatprep.subr.mxu0 0.0
    %1685 = vmatpush1.xpose.msra.mxu0 0.0
    %1686 = vmatprep.subr.mxu0 0.0
    %1687 = vmatpush1.xpose.msra.mxu0 0.0
    %1688 = vmatprep.subr.mxu0 0.0
    %1689 = vmatpush1.xpose.msra.mxu0 %v1656
    %1690 = vmatprep.subr.mxu0 0.0
    %1691 = vmatpush2.xpose.msra.mxu0 0.0
    %1692 = vmatprep.subr.mxu0 0.0
    %1693 = vmatpush2.xpose.msra.mxu0 0.0
    %1694 = vmatprep.subr.mxu0 0.0
    %1695 = vmatpush2.xpose.msra.mxu0 0.0
    %1696 = vmatprep.subr.mxu0 0.0
    %1697 = vmatpush2.xpose.msra.mxu0 0.0
    %1698 = vmatprep.subr.mxu0 0.0
    %1699 = vmatpush2.xpose.msra.mxu0 0.0
    %1700 = vmatprep.subr.mxu0 0.0
    %1701 = vmatpush2.xpose.msra.mxu0 0.0
    %1702 = vmatprep.subr.mxu0 0.0
    %1703 = vmatpush2.xpose.msra.mxu0 0.0
    %1704 = vmatprep.subr.mxu0 0.0
    %1705 = vmatpush2.xpose.msra.mxu0 0.0
    %1706 = vmatprep.subr.mxu0 0.0
    %1707 = vmatpush2.xpose.msra.mxu0 0.0
    %1708 = vmatprep.subr.mxu0 0.0
    %1709 = vmatpush2.xpose.msra.mxu0 0.0
    %1710 = vmatprep.subr.mxu0 0.0
    %1711 = vmatpush2.xpose.msra.mxu0 0.0
    %1712 = vmatprep.subr.mxu0 0.0
    %1713 = vmatpush2.xpose.msra.mxu0 0.0
    %1714 = vmatprep.subr.mxu0 0.0
    %1715 = vmatpush2.xpose.msra.mxu0 0.0
    %1716 = vmatprep.subr.mxu0 0.0
    %1717 = vmatpush2.xpose.msra.mxu0 0.0
    %1718 = vmatprep.subr.mxu0 0.0
    %1719 = vmatpush2.xpose.msra.mxu0 0.0
    %1720 = vmatprep.subr.mxu0 0.0
    %1721 = vmatpush2.xpose.msra.mxu0 0.0
    %1722 = vmatprep.mubr.f32.mxu0 0.0
    %1723 = vmatmul.mubr.f32.gmra.mxu0 %v1654
    %v1724 = vpop.f32.mrf.mxu0
    %v1725 = vadd.f32 %v126, %v1724
    %v1726 = vpop.f32.mrf.mxu0
    %1727 = vdwg.mxu0
    %v1728 = vsel %vm224, %v1725, -inf
    %1729 = vmax.xlane.f32.xlu0 %v1728
    %v1730 = vpop.xlane.xlu0 %1729
    %v1731 = vsub.f32 %v1725, %v1730
    %v1732 = vmul.f32 %v1731, 1.442695
    %v1733 = vpow.pop %v1732
    %v1734 = vsel %vm224, %v1733, 0.0
    %1735 = vadd.xlane.f32.xlu0 %v1734
    %v1736 = vpop.xlane.xlu0 %1735
    %v1737 = vrcp.pop %v1736
    %v1738 = vmul.f32 %v1733, %v1737
    %1739 = vrot.lane.b32.xlu0 %v214, 48
    %v1740 = vpop.permute.xlu0 %1739
    %v1743 = vsel %vm224, %v1738, 0
    %1745 = vmatprep.subr.mxu0 0.0
    %1746 = vmatpush1.msra.mxu0 0.0
    %1747 = vmatprep.subr.mxu0 0.0
    %1748 = vmatpush1.msra.mxu0 0.0
    %1749 = vmatprep.subr.mxu0 0.0
    %1750 = vmatpush1.msra.mxu0 0.0
    %1751 = vmatprep.subr.mxu0 0.0
    %1752 = vmatpush1.msra.mxu0 0.0
    %1753 = vmatprep.subr.mxu0 0.0
    %1754 = vmatpush1.msra.mxu0 0.0
    %1755 = vmatprep.subr.mxu0 0.0
    %1756 = vmatpush1.msra.mxu0 0.0
    %1757 = vmatprep.subr.mxu0 0.0
    %1758 = vmatpush1.msra.mxu0 0.0
    %1759 = vmatprep.subr.mxu0 0.0
    %1760 = vmatpush1.msra.mxu0 0.0
    %1761 = vmatprep.subr.mxu0 0.0
    %1762 = vmatpush1.msra.mxu0 0.0
    %1763 = vmatprep.subr.mxu0 0.0
    %1764 = vmatpush1.msra.mxu0 0.0
    %1765 = vmatprep.subr.mxu0 0.0
    %1766 = vmatpush1.msra.mxu0 0.0
    %1767 = vmatprep.subr.mxu0 0.0
    %1768 = vmatpush1.msra.mxu0 0.0
    %1769 = vmatprep.subr.mxu0 0.0
    %1770 = vmatpush1.msra.mxu0 0.0
    %1771 = vmatprep.subr.mxu0 0.0
    %1772 = vmatpush1.msra.mxu0 0.0
    %1773 = vmatprep.subr.mxu0 0.0
    %1774 = vmatpush1.msra.mxu0 0.0
    %1775 = vmatprep.subr.mxu0 0.0
    %1776 = vmatpush1.msra.mxu0 %v1740
    %1777 = vmatprep.subr.mxu0 0.0
    %1778 = vmatpush2.msra.mxu0 0.0
    %1779 = vmatprep.subr.mxu0 0.0
    %1780 = vmatpush2.msra.mxu0 0.0
    %1781 = vmatprep.subr.mxu0 0.0
    %1782 = vmatpush2.msra.mxu0 0.0
    %1783 = vmatprep.subr.mxu0 0.0
    %1784 = vmatpush2.msra.mxu0 0.0
    %1785 = vmatprep.subr.mxu0 0.0
    %1786 = vmatpush2.msra.mxu0 0.0
    %1787 = vmatprep.subr.mxu0 0.0
    %1788 = vmatpush2.msra.mxu0 0.0
    %1789 = vmatprep.subr.mxu0 0.0
    %1790 = vmatpush2.msra.mxu0 0.0
    %1791 = vmatprep.subr.mxu0 0.0
    %1792 = vmatpush2.msra.mxu0 0.0
    %1793 = vmatprep.subr.mxu0 0.0
    %1794 = vmatpush2.msra.mxu0 0.0
    %1795 = vmatprep.subr.mxu0 0.0
    %1796 = vmatpush2.msra.mxu0 0.0
    %1797 = vmatprep.subr.mxu0 0.0
    %1798 = vmatpush2.msra.mxu0 0.0
    %1799 = vmatprep.subr.mxu0 0.0
    %1800 = vmatpush2.msra.mxu0 0.0
    %1801 = vmatprep.subr.mxu0 0.0
    %1802 = vmatpush2.msra.mxu0 0.0
    %1803 = vmatprep.subr.mxu0 0.0
    %1804 = vmatpush2.msra.mxu0 0.0
    %1805 = vmatprep.subr.mxu0 0.0
    %1806 = vmatpush2.msra.mxu0 0.0
    %1807 = vmatprep.subr.mxu0 0.0
    %1808 = vmatpush2.msra.mxu0 0.0
    %1809 = vmatprep.mubr.f32.mxu0 0.0
    %1810 = vmatmul.mubr.f32.gmra.mxu0 %v1743
    %v1811 = vpop.f32.mrf.mxu0
    %v1812 = vadd.f32 0.0, %v1811
    %v1813 = vpop.f32.mrf.mxu0
    %1814 = vdwg.mxu0
    %v1816 = vsel %vm224, %v1812, 0
    %1818 = vmatprep.subr.mxu0 0.0
    %1819 = vmatpush1.msra.mxu0 0.0
    %1820 = vmatprep.subr.mxu0 0.0
    %1821 = vmatpush1.msra.mxu0 0.0
    %1822 = vmatprep.subr.mxu0 0.0
    %1823 = vmatpush1.msra.mxu0 0.0
    %1824 = vmatprep.subr.mxu0 0.0
    %1825 = vmatpush1.msra.mxu0 0.0
    %1826 = vmatprep.subr.mxu0 0.0
    %1827 = vmatpush1.msra.mxu0 0.0
    %1828 = vmatprep.subr.mxu0 0.0
    %1829 = vmatpush1.msra.mxu0 0.0
    %1830 = vmatprep.subr.mxu0 0.0
    %1831 = vmatpush1.msra.mxu0 0.0
    %1832 = vmatprep.subr.mxu0 0.0
    %1833 = vmatpush1.msra.mxu0 0.0
    %1834 = vmatprep.subr.mxu0 0.0
    %1835 = vmatpush1.msra.mxu0 0.0
    %1836 = vmatprep.subr.mxu0 0.0
    %1837 = vmatpush1.msra.mxu0 0.0
    %1838 = vmatprep.subr.mxu0 0.0
    %1839 = vmatpush1.msra.mxu0 0.0
    %1840 = vmatprep.subr.mxu0 0.0
    %1841 = vmatpush1.msra.mxu0 0.0
    %1842 = vmatprep.subr.mxu0 0.0
    %1843 = vmatpush1.msra.mxu0 0.0
    %1844 = vmatprep.subr.mxu0 0.0
    %1845 = vmatpush1.msra.mxu0 0.0
    %1846 = vmatprep.subr.mxu0 0.0
    %1847 = vmatpush1.msra.mxu0 0.0
    %1848 = vmatprep.subr.mxu0 0.0
    %1849 = vmatpush1.msra.mxu0 %v219
    %1850 = vmatprep.subr.mxu0 0.0
    %1851 = vmatpush2.msra.mxu0 0.0
    %1852 = vmatprep.subr.mxu0 0.0
    %1853 = vmatpush2.msra.mxu0 0.0
    %1854 = vmatprep.subr.mxu0 0.0
    %1855 = vmatpush2.msra.mxu0 0.0
    %1856 = vmatprep.subr.mxu0 0.0
    %1857 = vmatpush2.msra.mxu0 0.0
    %1858 = vmatprep.subr.mxu0 0.0
    %1859 = vmatpush2.msra.mxu0 0.0
    %1860 = vmatprep.subr.mxu0 0.0
    %1861 = vmatpush2.msra.mxu0 0.0
    %1862 = vmatprep.subr.mxu0 0.0
    %1863 = vmatpush2.msra.mxu0 0.0
    %1864 = vmatprep.subr.mxu0 0.0
    %1865 = vmatpush2.msra.mxu0 0.0
    %1866 = vmatprep.subr.mxu0 0.0
    %1867 = vmatpush2.msra.mxu0 0.0
    %1868 = vmatprep.subr.mxu0 0.0
    %1869 = vmatpush2.msra.mxu0 0.0
    %1870 = vmatprep.subr.mxu0 0.0
    %1871 = vmatpush2.msra.mxu0 0.0
    %1872 = vmatprep.subr.mxu0 0.0
    %1873 = vmatpush2.msra.mxu0 0.0
    %1874 = vmatprep.subr.mxu0 0.0
    %1875 = vmatpush2.msra.mxu0 0.0
    %1876 = vmatprep.subr.mxu0 0.0
    %1877 = vmatpush2.msra.mxu0 0.0
    %1878 = vmatprep.subr.mxu0 0.0
    %1879 = vmatpush2.msra.mxu0 0.0
    %1880 = vmatprep.subr.mxu0 0.0
    %1881 = vmatpush2.msra.mxu0 0.0
    %1882 = vmatprep.mubr.f32.mxu0 0.0
    %1883 = vmatmul.mubr.f32.gmra.mxu0 %v1816
    %v1884 = vpop.f32.mrf.mxu0
    %v1885 = vadd.f32 0.0, %v1884
    %v1886 = vpop.f32.mrf.mxu0
    %1887 = vdwg.mxu0
    %v1888 = vadd.f32 %v1647, %v1885
    %1889 = vrot.lane.b32.xlu0 %v214, 104
    %v1890 = vpop.permute.xlu0 %1889
    %1891 = vrot.lane.b32.xlu0 %v214, 72
    %v1892 = vpop.permute.xlu0 %1891
    %v1893 = vsel %vm224, %v1890, 0
    %v1895 = vsel %vm224, %v1892, 0
    %1897 = vmatprep.subr.mxu0 0.0
    %1898 = vmatpush1.xpose.msra.mxu0 0.0
    %1899 = vmatprep.subr.mxu0 0.0
    %1900 = vmatpush1.xpose.msra.mxu0 0.0
    %1901 = vmatprep.subr.mxu0 0.0
    %1902 = vmatpush1.xpose.msra.mxu0 0.0
    %1903 = vmatprep.subr.mxu0 0.0
    %1904 = vmatpush1.xpose.msra.mxu0 0.0
    %1905 = vmatprep.subr.mxu0 0.0
    %1906 = vmatpush1.xpose.msra.mxu0 0.0
    %1907 = vmatprep.subr.mxu0 0.0
    %1908 = vmatpush1.xpose.msra.mxu0 0.0
    %1909 = vmatprep.subr.mxu0 0.0
    %1910 = vmatpush1.xpose.msra.mxu0 0.0
    %1911 = vmatprep.subr.mxu0 0.0
    %1912 = vmatpush1.xpose.msra.mxu0 0.0
    %1913 = vmatprep.subr.mxu0 0.0
    %1914 = vmatpush1.xpose.msra.mxu0 0.0
    %1915 = vmatprep.subr.mxu0 0.0
    %1916 = vmatpush1.xpose.msra.mxu0 0.0
    %1917 = vmatprep.subr.mxu0 0.0
    %1918 = vmatpush1.xpose.msra.mxu0 0.0
    %1919 = vmatprep.subr.mxu0 0.0
    %1920 = vmatpush1.xpose.msra.mxu0 0.0
    %1921 = vmatprep.subr.mxu0 0.0
    %1922 = vmatpush1.xpose.msra.mxu0 0.0
    %1923 = vmatprep.subr.mxu0 0.0
    %1924 = vmatpush1.xpose.msra.mxu0 0.0
    %1925 = vmatprep.subr.mxu0 0.0
    %1926 = vmatpush1.xpose.msra.mxu0 0.0
    %1927 = vmatprep.subr.mxu0 0.0
    %1928 = vmatpush1.xpose.msra.mxu0 %v1895
    %1929 = vmatprep.subr.mxu0 0.0
    %1930 = vmatpush2.xpose.msra.mxu0 0.0
    %1931 = vmatprep.subr.mxu0 0.0
    %1932 = vmatpush2.xpose.msra.mxu0 0.0
    %1933 = vmatprep.subr.mxu0 0.0
    %1934 = vmatpush2.xpose.msra.mxu0 0.0
    %1935 = vmatprep.subr.mxu0 0.0
    %1936 = vmatpush2.xpose.msra.mxu0 0.0
    %1937 = vmatprep.subr.mxu0 0.0
    %1938 = vmatpush2.xpose.msra.mxu0 0.0
    %1939 = vmatprep.subr.mxu0 0.0
    %1940 = vmatpush2.xpose.msra.mxu0 0.0
    %1941 = vmatprep.subr.mxu0 0.0
    %1942 = vmatpush2.xpose.msra.mxu0 0.0
    %1943 = vmatprep.subr.mxu0 0.0
    %1944 = vmatpush2.xpose.msra.mxu0 0.0
    %1945 = vmatprep.subr.mxu0 0.0
    %1946 = vmatpush2.xpose.msra.mxu0 0.0
    %1947 = vmatprep.subr.mxu0 0.0
    %1948 = vmatpush2.xpose.msra.mxu0 0.0
    %1949 = vmatprep.subr.mxu0 0.0
    %1950 = vmatpush2.xpose.msra.mxu0 0.0
    %1951 = vmatprep.subr.mxu0 0.0
    %1952 = vmatpush2.xpose.msra.mxu0 0.0
    %1953 = vmatprep.subr.mxu0 0.0
    %1954 = vmatpush2.xpose.msra.mxu0 0.0
    %1955 = vmatprep.subr.mxu0 0.0
    %1956 = vmatpush2.xpose.msra.mxu0 0.0
    %1957 = vmatprep.subr.mxu0 0.0
    %1958 = vmatpush2.xpose.msra.mxu0 0.0
    %1959 = vmatprep.subr.mxu0 0.0
    %1960 = vmatpush2.xpose.msra.mxu0 0.0
    %1961 = vmatprep.mubr.f32.mxu0 0.0
    %1962 = vmatmul.mubr.f32.gmra.mxu0 %v1893
    %v1963 = vpop.f32.mrf.mxu0
    %v1964 = vadd.f32 %v126, %v1963
    %v1965 = vpop.f32.mrf.mxu0
    %1966 = vdwg.mxu0
    %v1967 = vsel %vm224, %v1964, -inf
    %1968 = vmax.xlane.f32.xlu0 %v1967
    %v1969 = vpop.xlane.xlu0 %1968
    %v1970 = vsub.f32 %v1964, %v1969
    %v1971 = vmul.f32 %v1970, 1.442695
    %v1972 = vpow.pop %v1971
    %v1973 = vsel %vm224, %v1972, 0.0
    %1974 = vadd.xlane.f32.xlu0 %v1973
    %v1975 = vpop.xlane.xlu0 %1974
    %v1976 = vrcp.pop %v1975
    %v1977 = vmul.f32 %v1972, %v1976
    %1978 = vrot.lane.b32.xlu0 %v214, 40
    %v1979 = vpop.permute.xlu0 %1978
    %v1982 = vsel %vm224, %v1977, 0
    %1984 = vmatprep.subr.mxu0 0.0
    %1985 = vmatpush1.msra.mxu0 0.0
    %1986 = vmatprep.subr.mxu0 0.0
    %1987 = vmatpush1.msra.mxu0 0.0
    %1988 = vmatprep.subr.mxu0 0.0
    %1989 = vmatpush1.msra.mxu0 0.0
    %1990 = vmatprep.subr.mxu0 0.0
    %1991 = vmatpush1.msra.mxu0 0.0
    %1992 = vmatprep.subr.mxu0 0.0
    %1993 = vmatpush1.msra.mxu0 0.0
    %1994 = vmatprep.subr.mxu0 0.0
    %1995 = vmatpush1.msra.mxu0 0.0
    %1996 = vmatprep.subr.mxu0 0.0
    %1997 = vmatpush1.msra.mxu0 0.0
    %1998 = vmatprep.subr.mxu0 0.0
    %1999 = vmatpush1.msra.mxu0 0.0
    %2000 = vmatprep.subr.mxu0 0.0
    %2001 = vmatpush1.msra.mxu0 0.0
    %2002 = vmatprep.subr.mxu0 0.0
    %2003 = vmatpush1.msra.mxu0 0.0
    %2004 = vmatprep.subr.mxu0 0.0
    %2005 = vmatpush1.msra.mxu0 0.0
    %2006 = vmatprep.subr.mxu0 0.0
    %2007 = vmatpush1.msra.mxu0 0.0
    %2008 = vmatprep.subr.mxu0 0.0
    %2009 = vmatpush1.msra.mxu0 0.0
    %2010 = vmatprep.subr.mxu0 0.0
    %2011 = vmatpush1.msra.mxu0 0.0
    %2012 = vmatprep.subr.mxu0 0.0
    %2013 = vmatpush1.msra.mxu0 0.0
    %2014 = vmatprep.subr.mxu0 0.0
    %2015 = vmatpush1.msra.mxu0 %v1979
    %2016 = vmatprep.subr.mxu0 0.0
    %2017 = vmatpush2.msra.mxu0 0.0
    %2018 = vmatprep.subr.mxu0 0.0
    %2019 = vmatpush2.msra.mxu0 0.0
    %2020 = vmatprep.subr.mxu0 0.0
    %2021 = vmatpush2.msra.mxu0 0.0
    %2022 = vmatprep.subr.mxu0 0.0
    %2023 = vmatpush2.msra.mxu0 0.0
    %2024 = vmatprep.subr.mxu0 0.0
    %2025 = vmatpush2.msra.mxu0 0.0
    %2026 = vmatprep.subr.mxu0 0.0
    %2027 = vmatpush2.msra.mxu0 0.0
    %2028 = vmatprep.subr.mxu0 0.0
    %2029 = vmatpush2.msra.mxu0 0.0
    %2030 = vmatprep.subr.mxu0 0.0
    %2031 = vmatpush2.msra.mxu0 0.0
    %2032 = vmatprep.subr.mxu0 0.0
    %2033 = vmatpush2.msra.mxu0 0.0
    %2034 = vmatprep.subr.mxu0 0.0
    %2035 = vmatpush2.msra.mxu0 0.0
    %2036 = vmatprep.subr.mxu0 0.0
    %2037 = vmatpush2.msra.mxu0 0.0
    %2038 = vmatprep.subr.mxu0 0.0
    %2039 = vmatpush2.msra.mxu0 0.0
    %2040 = vmatprep.subr.mxu0 0.0
    %2041 = vmatpush2.msra.mxu0 0.0
    %2042 = vmatprep.subr.mxu0 0.0
    %2043 = vmatpush2.msra.mxu0 0.0
    %2044 = vmatprep.subr.mxu0 0.0
    %2045 = vmatpush2.msra.mxu0 0.0
    %2046 = vmatprep.subr.mxu0 0.0
    %2047 = vmatpush2.msra.mxu0 0.0
    %2048 = vmatprep.mubr.f32.mxu0 0.0
    %2049 = vmatmul.mubr.f32.gmra.mxu0 %v1982
    %v2050 = vpop.f32.mrf.mxu0
    %v2051 = vadd.f32 0.0, %v2050
    %v2052 = vpop.f32.mrf.mxu0
    %2053 = vdwg.mxu0
    %v2055 = vsel %vm224, %v2051, 0
    %2057 = vmatprep.subr.mxu0 0.0
    %2058 = vmatpush1.msra.mxu0 0.0
    %2059 = vmatprep.subr.mxu0 0.0
    %2060 = vmatpush1.msra.mxu0 0.0
    %2061 = vmatprep.subr.mxu0 0.0
    %2062 = vmatpush1.msra.mxu0 0.0
    %2063 = vmatprep.subr.mxu0 0.0
    %2064 = vmatpush1.msra.mxu0 0.0
    %2065 = vmatprep.subr.mxu0 0.0
    %2066 = vmatpush1.msra.mxu0 0.0
    %2067 = vmatprep.subr.mxu0 0.0
    %2068 = vmatpush1.msra.mxu0 0.0
    %2069 = vmatprep.subr.mxu0 0.0
    %2070 = vmatpush1.msra.mxu0 0.0
    %2071 = vmatprep.subr.mxu0 0.0
    %2072 = vmatpush1.msra.mxu0 0.0
    %2073 = vmatprep.subr.mxu0 0.0
    %2074 = vmatpush1.msra.mxu0 0.0
    %2075 = vmatprep.subr.mxu0 0.0
    %2076 = vmatpush1.msra.mxu0 0.0
    %2077 = vmatprep.subr.mxu0 0.0
    %2078 = vmatpush1.msra.mxu0 0.0
    %2079 = vmatprep.subr.mxu0 0.0
    %2080 = vmatpush1.msra.mxu0 0.0
    %2081 = vmatprep.subr.mxu0 0.0
    %2082 = vmatpush1.msra.mxu0 0.0
    %2083 = vmatprep.subr.mxu0 0.0
    %2084 = vmatpush1.msra.mxu0 0.0
    %2085 = vmatprep.subr.mxu0 0.0
    %2086 = vmatpush1.msra.mxu0 0.0
    %2087 = vmatprep.subr.mxu0 0.0
    %2088 = vmatpush1.msra.mxu0 %v220
    %2089 = vmatprep.subr.mxu0 0.0
    %2090 = vmatpush2.msra.mxu0 0.0
    %2091 = vmatprep.subr.mxu0 0.0
    %2092 = vmatpush2.msra.mxu0 0.0
    %2093 = vmatprep.subr.mxu0 0.0
    %2094 = vmatpush2.msra.mxu0 0.0
    %2095 = vmatprep.subr.mxu0 0.0
    %2096 = vmatpush2.msra.mxu0 0.0
    %2097 = vmatprep.subr.mxu0 0.0
    %2098 = vmatpush2.msra.mxu0 0.0
    %2099 = vmatprep.subr.mxu0 0.0
    %2100 = vmatpush2.msra.mxu0 0.0
    %2101 = vmatprep.subr.mxu0 0.0
    %2102 = vmatpush2.msra.mxu0 0.0
    %2103 = vmatprep.subr.mxu0 0.0
    %2104 = vmatpush2.msra.mxu0 0.0
    %2105 = vmatprep.subr.mxu0 0.0
    %2106 = vmatpush2.msra.mxu0 0.0
    %2107 = vmatprep.subr.mxu0 0.0
    %2108 = vmatpush2.msra.mxu0 0.0
    %2109 = vmatprep.subr.mxu0 0.0
    %2110 = vmatpush2.msra.mxu0 0.0
    %2111 = vmatprep.subr.mxu0 0.0
    %2112 = vmatpush2.msra.mxu0 0.0
    %2113 = vmatprep.subr.mxu0 0.0
    %2114 = vmatpush2.msra.mxu0 0.0
    %2115 = vmatprep.subr.mxu0 0.0
    %2116 = vmatpush2.msra.mxu0 0.0
    %2117 = vmatprep.subr.mxu0 0.0
    %2118 = vmatpush2.msra.mxu0 0.0
    %2119 = vmatprep.subr.mxu0 0.0
    %2120 = vmatpush2.msra.mxu0 0.0
    %2121 = vmatprep.mubr.f32.mxu0 0.0
    %2122 = vmatmul.mubr.f32.gmra.mxu0 %v2055
    %v2123 = vpop.f32.mrf.mxu0
    %v2124 = vadd.f32 0.0, %v2123
    %v2125 = vpop.f32.mrf.mxu0
    %2126 = vdwg.mxu0
    %v2127 = vadd.f32 %v1888, %v2124
    %v2128 = vlaneseq
    %v2129 = vshrl.u32 %v2128, 7
    %v2130 = vsub.s32 0, %v2129
    %v2131 = vrot.slane %v109, %v2130
    %v2132 = vadd.f32 %v1174, %v2131
    %v2133 = vadd.f32 %v2127, %v2131
    %v2134 = vadd.f32 %v2132, %v104
    %v2135 = vadd.f32 %v2133, %v105
    %v2136 = vsel %vm135, %v2134, 0.0
    %2137 = vadd.xlane.f32.xlu0 %v2136
    %v2138 = vpop.xlane.xlu0 %2137
    %v2139 = vsel %vm135, %v2135, 0.0
    %2140 = vadd.xlane.f32.xlu0 %v2139
    %v2141 = vpop.xlane.xlu0 %2140
    %v2142 = vrcp.pop 32.0
    %v2143 = vmul.f32 %v2138, %v2142
    %v2144 = vmul.f32 %v2141, %v2142
    %v2145 = vsub.f32 %v2134, %v2143
    %v2146 = vsub.f32 %v2135, %v2144
    %v2147 = vmul.f32 %v2145, %v2145
    %v2148 = vmul.f32 %v2146, %v2146
    %v2149 = vsel %vm135, %v2147, 0.0
    %2150 = vadd.xlane.f32.xlu0 %v2149
    %v2151 = vpop.xlane.xlu0 %2150
    %v2152 = vsel %vm135, %v2148, 0.0
    %2153 = vadd.xlane.f32.xlu0 %v2152
    %v2154 = vpop.xlane.xlu0 %2153
    %v2155 = vmul.f32 %v2151, %v2142
    %v2156 = vmul.f32 %v2154, %v2142
    %v2157 = vadd.f32 %v2155, 1e-05
    %v2158 = vadd.f32 %v2156, 1e-05
    %v2159 = vrsqrt.pop %v2157
    %v2160 = vrsqrt.pop %v2158
    %v2161 = vmul.f32 %v2145, %v2159
    %v2162 = vmul.f32 %v2146, %v2160
    %v2163 = vlaneseq
    %v2164 = vshrl.u32 %v2163, 7
    %v2165 = vsub.s32 0, %v2164
    %v2166 = vrot.slane %v115, %v2165
    %v2167 = vmul.f32 %v2161, %v2166
    %v2168 = vmul.f32 %v2162, %v2166
    %v2169 = vlaneseq
    %v2170 = vshrl.u32 %v2169, 7
    %v2171 = vsub.s32 0, %v2170
    %v2172 = vrot.slane %v116, %v2171
    %v2173 = vadd.f32 %v2167, %v2172
    %v2174 = vadd.f32 %v2168, %v2172
    %v2175 = vld [vmem:[%s4] sm:$0xff]
    %v2176 = vld [vmem:[%s4 + $0x8] sm:$0xff]
    %v2177 = vld [vmem:[%s4 + $0x10] sm:$0xff]
    %v2178 = vld [vmem:[%s4 + $0x18] sm:$0xff]
    %v2179 = vlaneseq
    %v2180 = vshrl.u32 %v2179, 7
    %v2181 = vsub.s32 0, %v2180
    %v2182 = vrot.slane %v110, %v2181
    %v2184 = vsel %vm135, %v2173, 0
    %v2187 = vsel %vm135, %v2174, 0
    %2189 = vmatprep.subr.mxu0 0.0
    %2190 = vmatpush1.msra.mxu0 0.0
    %2191 = vmatprep.subr.mxu0 0.0
    %2192 = vmatpush1.msra.mxu0 0.0
    %2193 = vmatprep.subr.mxu0 0.0
    %2194 = vmatpush1.msra.mxu0 0.0
    %2195 = vmatprep.subr.mxu0 0.0
    %2196 = vmatpush1.msra.mxu0 0.0
    %2197 = vmatprep.subr.mxu0 0.0
    %2198 = vmatpush1.msra.mxu0 0.0
    %2199 = vmatprep.subr.mxu0 0.0
    %2200 = vmatpush1.msra.mxu0 0.0
    %2201 = vmatprep.subr.mxu0 0.0
    %2202 = vmatpush1.msra.mxu0 0.0
    %2203 = vmatprep.subr.mxu0 0.0
    %2204 = vmatpush1.msra.mxu0 0.0
    %2205 = vmatprep.subr.mxu0 0.0
    %2206 = vmatpush1.msra.mxu0 0.0
    %2207 = vmatprep.subr.mxu0 0.0
    %2208 = vmatpush1.msra.mxu0 0.0
    %2209 = vmatprep.subr.mxu0 0.0
    %2210 = vmatpush1.msra.mxu0 0.0
    %2211 = vmatprep.subr.mxu0 0.0
    %2212 = vmatpush1.msra.mxu0 0.0
    %2213 = vmatprep.subr.mxu0 0.0
    %2214 = vmatpush1.msra.mxu0 %v2178
    %2215 = vmatprep.subr.mxu0 0.0
    %2216 = vmatpush1.msra.mxu0 %v2177
    %2217 = vmatprep.subr.mxu0 0.0
    %2218 = vmatpush1.msra.mxu0 %v2176
    %2219 = vmatprep.subr.mxu0 0.0
    %2220 = vmatpush1.msra.mxu0 %v2175
    %2221 = vmatprep.subr.mxu0 0.0
    %2222 = vmatpush2.msra.mxu0 0.0
    %2223 = vmatprep.subr.mxu0 0.0
    %2224 = vmatpush2.msra.mxu0 0.0
    %2225 = vmatprep.subr.mxu0 0.0
    %2226 = vmatpush2.msra.mxu0 0.0
    %2227 = vmatprep.subr.mxu0 0.0
    %2228 = vmatpush2.msra.mxu0 0.0
    %2229 = vmatprep.subr.mxu0 0.0
    %2230 = vmatpush2.msra.mxu0 0.0
    %2231 = vmatprep.subr.mxu0 0.0
    %2232 = vmatpush2.msra.mxu0 0.0
    %2233 = vmatprep.subr.mxu0 0.0
    %2234 = vmatpush2.msra.mxu0 0.0
    %2235 = vmatprep.subr.mxu0 0.0
    %2236 = vmatpush2.msra.mxu0 0.0
    %2237 = vmatprep.subr.mxu0 0.0
    %2238 = vmatpush2.msra.mxu0 0.0
    %2239 = vmatprep.subr.mxu0 0.0
    %2240 = vmatpush2.msra.mxu0 0.0
    %2241 = vmatprep.subr.mxu0 0.0
    %2242 = vmatpush2.msra.mxu0 0.0
    %2243 = vmatprep.subr.mxu0 0.0
    %2244 = vmatpush2.msra.mxu0 0.0
    %2245 = vmatprep.subr.mxu0 0.0
    %2246 = vmatpush2.msra.mxu0 0.0
    %2247 = vmatprep.subr.mxu0 0.0
    %2248 = vmatpush2.msra.mxu0 0.0
    %2249 = vmatprep.subr.mxu0 0.0
    %2250 = vmatpush2.msra.mxu0 0.0
    %2251 = vmatprep.subr.mxu0 0.0
    %2252 = vmatpush2.msra.mxu0 0.0
    %2253 = vmatprep.mubr.f32.mxu0 0.0
    %2254 = vmatmul.mubr.f32.gmra.mxu0 %v2184
    %v2255 = vpop.f32.mrf.mxu0
    %v2256 = vadd.f32 %v2182, %v2255
    %v2257 = vpop.f32.mrf.mxu0
    %2258 = vmatprep.mubr.f32.mxu0 0.0
    %2259 = vmatmul.mubr.f32.gmra.mxu0 %v2187
    %v2260 = vpop.f32.mrf.mxu0
    %v2261 = vadd.f32 %v2182, %v2260
    %v2262 = vpop.f32.mrf.mxu0
    %2263 = vdwg.mxu0
    %v2264 = vld [vmem:[#allocation7] sm:$0xff]
    %v2265 = vld [vmem:[#allocation7 + $0x8] sm:$0xff]
    %v2266 = vld [vmem:[#allocation7 + $0x10] sm:$0xff]
    %v2267 = vld [vmem:[#allocation7 + $0x18] sm:$0xff]
    %v2268 = vlaneseq
    %v2269 = vshrl.u32 %v2268, 7
    %v2270 = vsub.s32 0, %v2269
    %v2271 = vrot.slane %v111, %v2270
    %v2273 = vsel %vm135, %v106, 0
    %v2276 = vsel %vm135, %v107, 0
    %2278 = vmatprep.subr.mxu0 0.0
    %2279 = vmatpush1.msra.mxu0 0.0
    %2280 = vmatprep.subr.mxu0 0.0
    %2281 = vmatpush1.msra.mxu0 0.0
    %2282 = vmatprep.subr.mxu0 0.0
    %2283 = vmatpush1.msra.mxu0 0.0
    %2284 = vmatprep.subr.mxu0 0.0
    %2285 = vmatpush1.msra.mxu0 0.0
    %2286 = vmatprep.subr.mxu0 0.0
    %2287 = vmatpush1.msra.mxu0 0.0
    %2288 = vmatprep.subr.mxu0 0.0
    %2289 = vmatpush1.msra.mxu0 0.0
    %2290 = vmatprep.subr.mxu0 0.0
    %2291 = vmatpush1.msra.mxu0 0.0
    %2292 = vmatprep.subr.mxu0 0.0
    %2293 = vmatpush1.msra.mxu0 0.0
    %2294 = vmatprep.subr.mxu0 0.0
    %2295 = vmatpush1.msra.mxu0 0.0
    %2296 = vmatprep.subr.mxu0 0.0
    %2297 = vmatpush1.msra.mxu0 0.0
    %2298 = vmatprep.subr.mxu0 0.0
    %2299 = vmatpush1.msra.mxu0 0.0
    %2300 = vmatprep.subr.mxu0 0.0
    %2301 = vmatpush1.msra.mxu0 0.0
    %2302 = vmatprep.subr.mxu0 0.0
    %2303 = vmatpush1.msra.mxu0 %v2267
    %2304 = vmatprep.subr.mxu0 0.0
    %2305 = vmatpush1.msra.mxu0 %v2266
    %2306 = vmatprep.subr.mxu0 0.0
    %2307 = vmatpush1.msra.mxu0 %v2265
    %2308 = vmatprep.subr.mxu0 0.0
    %2309 = vmatpush1.msra.mxu0 %v2264
    %2310 = vmatprep.subr.mxu0 0.0
    %2311 = vmatpush2.msra.mxu0 0.0
    %2312 = vmatprep.subr.mxu0 0.0
    %2313 = vmatpush2.msra.mxu0 0.0
    %2314 = vmatprep.subr.mxu0 0.0
    %2315 = vmatpush2.msra.mxu0 0.0
    %2316 = vmatprep.subr.mxu0 0.0
    %2317 = vmatpush2.msra.mxu0 0.0
    %2318 = vmatprep.subr.mxu0 0.0
    %2319 = vmatpush2.msra.mxu0 0.0
    %2320 = vmatprep.subr.mxu0 0.0
    %2321 = vmatpush2.msra.mxu0 0.0
    %2322 = vmatprep.subr.mxu0 0.0
    %2323 = vmatpush2.msra.mxu0 0.0
    %2324 = vmatprep.subr.mxu0 0.0
    %2325 = vmatpush2.msra.mxu0 0.0
    %2326 = vmatprep.subr.mxu0 0.0
    %2327 = vmatpush2.msra.mxu0 0.0
    %2328 = vmatprep.subr.mxu0 0.0
    %2329 = vmatpush2.msra.mxu0 0.0
    %2330 = vmatprep.subr.mxu0 0.0
    %2331 = vmatpush2.msra.mxu0 0.0
    %2332 = vmatprep.subr.mxu0 0.0
    %2333 = vmatpush2.msra.mxu0 0.0
    %2334 = vmatprep.subr.mxu0 0.0
    %2335 = vmatpush2.msra.mxu0 0.0
    %2336 = vmatprep.subr.mxu0 0.0
    %2337 = vmatpush2.msra.mxu0 0.0
    %2338 = vmatprep.subr.mxu0 0.0
    %2339 = vmatpush2.msra.mxu0 0.0
    %2340 = vmatprep.subr.mxu0 0.0
    %2341 = vmatpush2.msra.mxu0 0.0
    %2342 = vmatprep.mubr.f32.mxu0 0.0
    %2343 = vmatmul.mubr.f32.gmra.mxu0 %v2273
    %v2344 = vpop.f32.mrf.mxu0
    %v2345 = vadd.f32 %v2271, %v2344
    %v2346 = vpop.f32.mrf.mxu0
    %2347 = vmatprep.mubr.f32.mxu0 0.0
    %2348 = vmatmul.mubr.f32.gmra.mxu0 %v2276
    %v2349 = vpop.f32.mrf.mxu0
    %v2350 = vadd.f32 %v2271, %v2349
    %v2351 = vpop.f32.mrf.mxu0
    %2352 = vdwg.mxu0
    %v2353 = vld [vmem:[#allocation8] sm:$0xff]
    %v2354 = vld [vmem:[#allocation8 + $0x8] sm:$0xff]
    %v2355 = vld [vmem:[#allocation8 + $0x10] sm:$0xff]
    %v2356 = vld [vmem:[#allocation8 + $0x18] sm:$0xff]
    %v2358 = vsel %vm224, %v2256, 0
    %v2361 = vsel %vm224, %v2345, 0
    %2363 = vmatprep.subr.mxu0 0.0
    %2364 = vmatpush1.xpose.msra.mxu0 0.0
    %2365 = vmatprep.subr.mxu0 0.0
    %2366 = vmatpush1.xpose.msra.mxu0 0.0
    %2367 = vmatprep.subr.mxu0 0.0
    %2368 = vmatpush1.xpose.msra.mxu0 0.0
    %2369 = vmatprep.subr.mxu0 0.0
    %2370 = vmatpush1.xpose.msra.mxu0 0.0
    %2371 = vmatprep.subr.mxu0 0.0
    %2372 = vmatpush1.xpose.msra.mxu0 0.0
    %2373 = vmatprep.subr.mxu0 0.0
    %2374 = vmatpush1.xpose.msra.mxu0 0.0
    %2375 = vmatprep.subr.mxu0 0.0
    %2376 = vmatpush1.xpose.msra.mxu0 0.0
    %2377 = vmatprep.subr.mxu0 0.0
    %2378 = vmatpush1.xpose.msra.mxu0 0.0
    %2379 = vmatprep.subr.mxu0 0.0
    %2380 = vmatpush1.xpose.msra.mxu0 0.0
    %2381 = vmatprep.subr.mxu0 0.0
    %2382 = vmatpush1.xpose.msra.mxu0 0.0
    %2383 = vmatprep.subr.mxu0 0.0
    %2384 = vmatpush1.xpose.msra.mxu0 0.0
    %2385 = vmatprep.subr.mxu0 0.0
    %2386 = vmatpush1.xpose.msra.mxu0 0.0
    %2387 = vmatprep.subr.mxu0 0.0
    %2388 = vmatpush1.xpose.msra.mxu0 0.0
    %2389 = vmatprep.subr.mxu0 0.0
    %2390 = vmatpush1.xpose.msra.mxu0 0.0
    %2391 = vmatprep.subr.mxu0 0.0
    %2392 = vmatpush1.xpose.msra.mxu0 0.0
    %2393 = vmatprep.subr.mxu0 0.0
    %2394 = vmatpush1.xpose.msra.mxu0 %v2361
    %2395 = vmatprep.subr.mxu0 0.0
    %2396 = vmatpush2.xpose.msra.mxu0 0.0
    %2397 = vmatprep.subr.mxu0 0.0
    %2398 = vmatpush2.xpose.msra.mxu0 0.0
    %2399 = vmatprep.subr.mxu0 0.0
    %2400 = vmatpush2.xpose.msra.mxu0 0.0
    %2401 = vmatprep.subr.mxu0 0.0
    %2402 = vmatpush2.xpose.msra.mxu0 0.0
    %2403 = vmatprep.subr.mxu0 0.0
    %2404 = vmatpush2.xpose.msra.mxu0 0.0
    %2405 = vmatprep.subr.mxu0 0.0
    %2406 = vmatpush2.xpose.msra.mxu0 0.0
    %2407 = vmatprep.subr.mxu0 0.0
    %2408 = vmatpush2.xpose.msra.mxu0 0.0
    %2409 = vmatprep.subr.mxu0 0.0
    %2410 = vmatpush2.xpose.msra.mxu0 0.0
    %2411 = vmatprep.subr.mxu0 0.0
    %2412 = vmatpush2.xpose.msra.mxu0 0.0
    %2413 = vmatprep.subr.mxu0 0.0
    %2414 = vmatpush2.xpose.msra.mxu0 0.0
    %2415 = vmatprep.subr.mxu0 0.0
    %2416 = vmatpush2.xpose.msra.mxu0 0.0
    %2417 = vmatprep.subr.mxu0 0.0
    %2418 = vmatpush2.xpose.msra.mxu0 0.0
    %2419 = vmatprep.subr.mxu0 0.0
    %2420 = vmatpush2.xpose.msra.mxu0 0.0
    %2421 = vmatprep.subr.mxu0 0.0
    %2422 = vmatpush2.xpose.msra.mxu0 0.0
    %2423 = vmatprep.subr.mxu0 0.0
    %2424 = vmatpush2.xpose.msra.mxu0 0.0
    %2425 = vmatprep.subr.mxu0 0.0
    %2426 = vmatpush2.xpose.msra.mxu0 0.0
    %2427 = vmatprep.mubr.f32.mxu0 0.0
    %2428 = vmatmul.mubr.f32.gmra.mxu0 %v2358
    %v2429 = vpop.f32.mrf.mxu0
    %v2430 = vadd.f32 0.0, %v2429
    %v2431 = vpop.f32.mrf.mxu0
    %2432 = vdwg.mxu0
    %v2433 = vsel %vm224, %v2430, -inf
    %2434 = vmax.xlane.f32.xlu0 %v2433
    %v2435 = vpop.xlane.xlu0 %2434
    %v2436 = vsub.f32 %v2430, %v2435
    %v2437 = vmul.f32 %v2436, 1.442695
    %v2438 = vpow.pop %v2437
    %v2439 = vsel %vm224, %v2438, 0.0
    %2440 = vadd.xlane.f32.xlu0 %v2439
    %v2441 = vpop.xlane.xlu0 %2440
    %v2442 = vrcp.pop %v2441
    %v2443 = vmul.f32 %v2438, %v2442
    %2444 = vrot.lane.b32.xlu0 %v2345, 96
    %v2445 = vpop.permute.xlu0 %2444
    %v2448 = vsel %vm224, %v2443, 0
    %2450 = vmatprep.subr.mxu0 0.0
    %2451 = vmatpush1.msra.mxu0 0.0
    %2452 = vmatprep.subr.mxu0 0.0
    %2453 = vmatpush1.msra.mxu0 0.0
    %2454 = vmatprep.subr.mxu0 0.0
    %2455 = vmatpush1.msra.mxu0 0.0
    %2456 = vmatprep.subr.mxu0 0.0
    %2457 = vmatpush1.msra.mxu0 0.0
    %2458 = vmatprep.subr.mxu0 0.0
    %2459 = vmatpush1.msra.mxu0 0.0
    %2460 = vmatprep.subr.mxu0 0.0
    %2461 = vmatpush1.msra.mxu0 0.0
    %2462 = vmatprep.subr.mxu0 0.0
    %2463 = vmatpush1.msra.mxu0 0.0
    %2464 = vmatprep.subr.mxu0 0.0
    %2465 = vmatpush1.msra.mxu0 0.0
    %2466 = vmatprep.subr.mxu0 0.0
    %2467 = vmatpush1.msra.mxu0 0.0
    %2468 = vmatprep.subr.mxu0 0.0
    %2469 = vmatpush1.msra.mxu0 0.0
    %2470 = vmatprep.subr.mxu0 0.0
    %2471 = vmatpush1.msra.mxu0 0.0
    %2472 = vmatprep.subr.mxu0 0.0
    %2473 = vmatpush1.msra.mxu0 0.0
    %2474 = vmatprep.subr.mxu0 0.0
    %2475 = vmatpush1.msra.mxu0 0.0
    %2476 = vmatprep.subr.mxu0 0.0
    %2477 = vmatpush1.msra.mxu0 0.0
    %2478 = vmatprep.subr.mxu0 0.0
    %2479 = vmatpush1.msra.mxu0 0.0
    %2480 = vmatprep.subr.mxu0 0.0
    %2481 = vmatpush1.msra.mxu0 %v2445
    %2482 = vmatprep.subr.mxu0 0.0
    %2483 = vmatpush2.msra.mxu0 0.0
    %2484 = vmatprep.subr.mxu0 0.0
    %2485 = vmatpush2.msra.mxu0 0.0
    %2486 = vmatprep.subr.mxu0 0.0
    %2487 = vmatpush2.msra.mxu0 0.0
    %2488 = vmatprep.subr.mxu0 0.0
    %2489 = vmatpush2.msra.mxu0 0.0
    %2490 = vmatprep.subr.mxu0 0.0
    %2491 = vmatpush2.msra.mxu0 0.0
    %2492 = vmatprep.subr.mxu0 0.0
    %2493 = vmatpush2.msra.mxu0 0.0
    %2494 = vmatprep.subr.mxu0 0.0
    %2495 = vmatpush2.msra.mxu0 0.0
    %2496 = vmatprep.subr.mxu0 0.0
    %2497 = vmatpush2.msra.mxu0 0.0
    %2498 = vmatprep.subr.mxu0 0.0
    %2499 = vmatpush2.msra.mxu0 0.0
    %2500 = vmatprep.subr.mxu0 0.0
    %2501 = vmatpush2.msra.mxu0 0.0
    %2502 = vmatprep.subr.mxu0 0.0
    %2503 = vmatpush2.msra.mxu0 0.0
    %2504 = vmatprep.subr.mxu0 0.0
    %2505 = vmatpush2.msra.mxu0 0.0
    %2506 = vmatprep.subr.mxu0 0.0
    %2507 = vmatpush2.msra.mxu0 0.0
    %2508 = vmatprep.subr.mxu0 0.0
    %2509 = vmatpush2.msra.mxu0 0.0
    %2510 = vmatprep.subr.mxu0 0.0
    %2511 = vmatpush2.msra.mxu0 0.0
    %2512 = vmatprep.subr.mxu0 0.0
    %2513 = vmatpush2.msra.mxu0 0.0
    %2514 = vmatprep.mubr.f32.mxu0 0.0
    %2515 = vmatmul.mubr.f32.gmra.mxu0 %v2448
    %v2516 = vpop.f32.mrf.mxu0
    %v2517 = vadd.f32 0.0, %v2516
    %v2518 = vpop.f32.mrf.mxu0
    %2519 = vdwg.mxu0
    %2520 = vrot.lane.b32.xlu0 %v2256, 120
    %v2521 = vpop.permute.xlu0 %2520
    %2522 = vrot.lane.b32.xlu0 %v2345, 120
    %v2523 = vpop.permute.xlu0 %2522
    %v2524 = vsel %vm224, %v2521, 0
    %v2526 = vsel %vm224, %v2523, 0
    %2528 = vmatprep.subr.mxu0 0.0
    %2529 = vmatpush1.xpose.msra.mxu0 0.0
    %2530 = vmatprep.subr.mxu0 0.0
    %2531 = vmatpush1.xpose.msra.mxu0 0.0
    %2532 = vmatprep.subr.mxu0 0.0
    %2533 = vmatpush1.xpose.msra.mxu0 0.0
    %2534 = vmatprep.subr.mxu0 0.0
    %2535 = vmatpush1.xpose.msra.mxu0 0.0
    %2536 = vmatprep.subr.mxu0 0.0
    %2537 = vmatpush1.xpose.msra.mxu0 0.0
    %2538 = vmatprep.subr.mxu0 0.0
    %2539 = vmatpush1.xpose.msra.mxu0 0.0
    %2540 = vmatprep.subr.mxu0 0.0
    %2541 = vmatpush1.xpose.msra.mxu0 0.0
    %2542 = vmatprep.subr.mxu0 0.0
    %2543 = vmatpush1.xpose.msra.mxu0 0.0
    %2544 = vmatprep.subr.mxu0 0.0
    %2545 = vmatpush1.xpose.msra.mxu0 0.0
    %2546 = vmatprep.subr.mxu0 0.0
    %2547 = vmatpush1.xpose.msra.mxu0 0.0
    %2548 = vmatprep.subr.mxu0 0.0
    %2549 = vmatpush1.xpose.msra.mxu0 0.0
    %2550 = vmatprep.subr.mxu0 0.0
    %2551 = vmatpush1.xpose.msra.mxu0 0.0
    %2552 = vmatprep.subr.mxu0 0.0
    %2553 = vmatpush1.xpose.msra.mxu0 0.0
    %2554 = vmatprep.subr.mxu0 0.0
    %2555 = vmatpush1.xpose.msra.mxu0 0.0
    %2556 = vmatprep.subr.mxu0 0.0
    %2557 = vmatpush1.xpose.msra.mxu0 0.0
    %2558 = vmatprep.subr.mxu0 0.0
    %2559 = vmatpush1.xpose.msra.mxu0 %v2526
    %2560 = vmatprep.subr.mxu0 0.0
    %2561 = vmatpush2.xpose.msra.mxu0 0.0
    %2562 = vmatprep.subr.mxu0 0.0
    %2563 = vmatpush2.xpose.msra.mxu0 0.0
    %2564 = vmatprep.subr.mxu0 0.0
    %2565 = vmatpush2.xpose.msra.mxu0 0.0
    %2566 = vmatprep.subr.mxu0 0.0
    %2567 = vmatpush2.xpose.msra.mxu0 0.0
    %2568 = vmatprep.subr.mxu0 0.0
    %2569 = vmatpush2.xpose.msra.mxu0 0.0
    %2570 = vmatprep.subr.mxu0 0.0
    %2571 = vmatpush2.xpose.msra.mxu0 0.0
    %2572 = vmatprep.subr.mxu0 0.0
    %2573 = vmatpush2.xpose.msra.mxu0 0.0
    %2574 = vmatprep.subr.mxu0 0.0
    %2575 = vmatpush2.xpose.msra.mxu0 0.0
    %2576 = vmatprep.subr.mxu0 0.0
    %2577 = vmatpush2.xpose.msra.mxu0 0.0
    %2578 = vmatprep.subr.mxu0 0.0
    %2579 = vmatpush2.xpose.msra.mxu0 0.0
    %2580 = vmatprep.subr.mxu0 0.0
    %2581 = vmatpush2.xpose.msra.mxu0 0.0
    %2582 = vmatprep.subr.mxu0 0.0
    %2583 = vmatpush2.xpose.msra.mxu0 0.0
    %2584 = vmatprep.subr.mxu0 0.0
    %2585 = vmatpush2.xpose.msra.mxu0 0.0
    %2586 = vmatprep.subr.mxu0 0.0
    %2587 = vmatpush2.xpose.msra.mxu0 0.0
    %2588 = vmatprep.subr.mxu0 0.0
    %2589 = vmatpush2.xpose.msra.mxu0 0.0
    %2590 = vmatprep.subr.mxu0 0.0
    %2591 = vmatpush2.xpose.msra.mxu0 0.0
    %2592 = vmatprep.mubr.f32.mxu0 0.0
    %2593 = vmatmul.mubr.f32.gmra.mxu0 %v2524
    %v2594 = vpop.f32.mrf.mxu0
    %v2595 = vadd.f32 0.0, %v2594
    %v2596 = vpop.f32.mrf.mxu0
    %2597 = vdwg.mxu0
    %v2598 = vsel %vm224, %v2595, -inf
    %2599 = vmax.xlane.f32.xlu0 %v2598
    %v2600 = vpop.xlane.xlu0 %2599
    %v2601 = vsub.f32 %v2595, %v2600
    %v2602 = vmul.f32 %v2601, 1.442695
    %v2603 = vpow.pop %v2602
    %v2604 = vsel %vm224, %v2603, 0.0
    %2605 = vadd.xlane.f32.xlu0 %v2604
    %v2606 = vpop.xlane.xlu0 %2605
    %v2607 = vrcp.pop %v2606
    %v2608 = vmul.f32 %v2603, %v2607
    %2609 = vrot.lane.b32.xlu0 %v2345, 88
    %v2610 = vpop.permute.xlu0 %2609
    %v2613 = vsel %vm224, %v2608, 0
    %2615 = vmatprep.subr.mxu0 0.0
    %2616 = vmatpush1.msra.mxu0 0.0
    %2617 = vmatprep.subr.mxu0 0.0
    %2618 = vmatpush1.msra.mxu0 0.0
    %2619 = vmatprep.subr.mxu0 0.0
    %2620 = vmatpush1.msra.mxu0 0.0
    %2621 = vmatprep.subr.mxu0 0.0
    %2622 = vmatpush1.msra.mxu0 0.0
    %2623 = vmatprep.subr.mxu0 0.0
    %2624 = vmatpush1.msra.mxu0 0.0
    %2625 = vmatprep.subr.mxu0 0.0
    %2626 = vmatpush1.msra.mxu0 0.0
    %2627 = vmatprep.subr.mxu0 0.0
    %2628 = vmatpush1.msra.mxu0 0.0
    %2629 = vmatprep.subr.mxu0 0.0
    %2630 = vmatpush1.msra.mxu0 0.0
    %2631 = vmatprep.subr.mxu0 0.0
    %2632 = vmatpush1.msra.mxu0 0.0
    %2633 = vmatprep.subr.mxu0 0.0
    %2634 = vmatpush1.msra.mxu0 0.0
    %2635 = vmatprep.subr.mxu0 0.0
    %2636 = vmatpush1.msra.mxu0 0.0
    %2637 = vmatprep.subr.mxu0 0.0
    %2638 = vmatpush1.msra.mxu0 0.0
    %2639 = vmatprep.subr.mxu0 0.0
    %2640 = vmatpush1.msra.mxu0 0.0
    %2641 = vmatprep.subr.mxu0 0.0
    %2642 = vmatpush1.msra.mxu0 0.0
    %2643 = vmatprep.subr.mxu0 0.0
    %2644 = vmatpush1.msra.mxu0 0.0
    %2645 = vmatprep.subr.mxu0 0.0
    %2646 = vmatpush1.msra.mxu0 %v2610
    %2647 = vmatprep.subr.mxu0 0.0
    %2648 = vmatpush2.msra.mxu0 0.0
    %2649 = vmatprep.subr.mxu0 0.0
    %2650 = vmatpush2.msra.mxu0 0.0
    %2651 = vmatprep.subr.mxu0 0.0
    %2652 = vmatpush2.msra.mxu0 0.0
    %2653 = vmatprep.subr.mxu0 0.0
    %2654 = vmatpush2.msra.mxu0 0.0
    %2655 = vmatprep.subr.mxu0 0.0
    %2656 = vmatpush2.msra.mxu0 0.0
    %2657 = vmatprep.subr.mxu0 0.0
    %2658 = vmatpush2.msra.mxu0 0.0
    %2659 = vmatprep.subr.mxu0 0.0
    %2660 = vmatpush2.msra.mxu0 0.0
    %2661 = vmatprep.subr.mxu0 0.0
    %2662 = vmatpush2.msra.mxu0 0.0
    %2663 = vmatprep.subr.mxu0 0.0
    %2664 = vmatpush2.msra.mxu0 0.0
    %2665 = vmatprep.subr.mxu0 0.0
    %2666 = vmatpush2.msra.mxu0 0.0
    %2667 = vmatprep.subr.mxu0 0.0
    %2668 = vmatpush2.msra.mxu0 0.0
    %2669 = vmatprep.subr.mxu0 0.0
    %2670 = vmatpush2.msra.mxu0 0.0
    %2671 = vmatprep.subr.mxu0 0.0
    %2672 = vmatpush2.msra.mxu0 0.0
    %2673 = vmatprep.subr.mxu0 0.0
    %2674 = vmatpush2.msra.mxu0 0.0
    %2675 = vmatprep.subr.mxu0 0.0
    %2676 = vmatpush2.msra.mxu0 0.0
    %2677 = vmatprep.subr.mxu0 0.0
    %2678 = vmatpush2.msra.mxu0 0.0
    %2679 = vmatprep.mubr.f32.mxu0 0.0
    %2680 = vmatmul.mubr.f32.gmra.mxu0 %v2613
    %v2681 = vpop.f32.mrf.mxu0
    %v2682 = vadd.f32 0.0, %v2681
    %v2683 = vpop.f32.mrf.mxu0
    %2684 = vdwg.mxu0
    %v2686 = vsel %vm224, %v2682, 0
    %2688 = vmatprep.subr.mxu0 0.0
    %2689 = vmatpush1.msra.mxu0 0.0
    %2690 = vmatprep.subr.mxu0 0.0
    %2691 = vmatpush1.msra.mxu0 0.0
    %2692 = vmatprep.subr.mxu0 0.0
    %2693 = vmatpush1.msra.mxu0 0.0
    %2694 = vmatprep.subr.mxu0 0.0
    %2695 = vmatpush1.msra.mxu0 0.0
    %2696 = vmatprep.subr.mxu0 0.0
    %2697 = vmatpush1.msra.mxu0 0.0
    %2698 = vmatprep.subr.mxu0 0.0
    %2699 = vmatpush1.msra.mxu0 0.0
    %2700 = vmatprep.subr.mxu0 0.0
    %2701 = vmatpush1.msra.mxu0 0.0
    %2702 = vmatprep.subr.mxu0 0.0
    %2703 = vmatpush1.msra.mxu0 0.0
    %2704 = vmatprep.subr.mxu0 0.0
    %2705 = vmatpush1.msra.mxu0 0.0
    %2706 = vmatprep.subr.mxu0 0.0
    %2707 = vmatpush1.msra.mxu0 0.0
    %2708 = vmatprep.subr.mxu0 0.0
    %2709 = vmatpush1.msra.mxu0 0.0
    %2710 = vmatprep.subr.mxu0 0.0
    %2711 = vmatpush1.msra.mxu0 0.0
    %2712 = vmatprep.subr.mxu0 0.0
    %2713 = vmatpush1.msra.mxu0 0.0
    %2714 = vmatprep.subr.mxu0 0.0
    %2715 = vmatpush1.msra.mxu0 0.0
    %2716 = vmatprep.subr.mxu0 0.0
    %2717 = vmatpush1.msra.mxu0 0.0
    %2718 = vmatprep.subr.mxu0 0.0
    %2719 = vmatpush1.msra.mxu0 %v2354
    %2720 = vmatprep.subr.mxu0 0.0
    %2721 = vmatpush2.msra.mxu0 0.0
    %2722 = vmatprep.subr.mxu0 0.0
    %2723 = vmatpush2.msra.mxu0 0.0
    %2724 = vmatprep.subr.mxu0 0.0
    %2725 = vmatpush2.msra.mxu0 0.0
    %2726 = vmatprep.subr.mxu0 0.0
    %2727 = vmatpush2.msra.mxu0 0.0
    %2728 = vmatprep.subr.mxu0 0.0
    %2729 = vmatpush2.msra.mxu0 0.0
    %2730 = vmatprep.subr.mxu0 0.0
    %2731 = vmatpush2.msra.mxu0 0.0
    %2732 = vmatprep.subr.mxu0 0.0
    %2733 = vmatpush2.msra.mxu0 0.0
    %2734 = vmatprep.subr.mxu0 0.0
    %2735 = vmatpush2.msra.mxu0 0.0
    %2736 = vmatprep.subr.mxu0 0.0
    %2737 = vmatpush2.msra.mxu0 0.0
    %2738 = vmatprep.subr.mxu0 0.0
    %2739 = vmatpush2.msra.mxu0 0.0
    %2740 = vmatprep.subr.mxu0 0.0
    %2741 = vmatpush2.msra.mxu0 0.0
    %2742 = vmatprep.subr.mxu0 0.0
    %2743 = vmatpush2.msra.mxu0 0.0
    %2744 = vmatprep.subr.mxu0 0.0
    %2745 = vmatpush2.msra.mxu0 0.0
    %2746 = vmatprep.subr.mxu0 0.0
    %2747 = vmatpush2.msra.mxu0 0.0
    %2748 = vmatprep.subr.mxu0 0.0
    %2749 = vmatpush2.msra.mxu0 0.0
    %2750 = vmatprep.subr.mxu0 0.0
    %2751 = vmatpush2.msra.mxu0 0.0
    %2752 = vmatprep.mubr.f32.mxu0 0.0
    %2753 = vmatmul.mubr.f32.gmra.mxu0 %v2686
    %v2754 = vpop.f32.mrf.mxu0
    %v2755 = vadd.f32 0.0, %v2754
    %v2756 = vpop.f32.mrf.mxu0
    %2757 = vdwg.mxu0
    %v2759 = vsel %vm224, %v2517, 0
    %2761 = vmatprep.subr.mxu0 0.0
    %2762 = vmatpush1.msra.mxu0 0.0
    %2763 = vmatprep.subr.mxu0 0.0
    %2764 = vmatpush1.msra.mxu0 0.0
    %2765 = vmatprep.subr.mxu0 0.0
    %2766 = vmatpush1.msra.mxu0 0.0
    %2767 = vmatprep.subr.mxu0 0.0
    %2768 = vmatpush1.msra.mxu0 0.0
    %2769 = vmatprep.subr.mxu0 0.0
    %2770 = vmatpush1.msra.mxu0 0.0
    %2771 = vmatprep.subr.mxu0 0.0
    %2772 = vmatpush1.msra.mxu0 0.0
    %2773 = vmatprep.subr.mxu0 0.0
    %2774 = vmatpush1.msra.mxu0 0.0
    %2775 = vmatprep.subr.mxu0 0.0
    %2776 = vmatpush1.msra.mxu0 0.0
    %2777 = vmatprep.subr.mxu0 0.0
    %2778 = vmatpush1.msra.mxu0 0.0
    %2779 = vmatprep.subr.mxu0 0.0
    %2780 = vmatpush1.msra.mxu0 0.0
    %2781 = vmatprep.subr.mxu0 0.0
    %2782 = vmatpush1.msra.mxu0 0.0
    %2783 = vmatprep.subr.mxu0 0.0
    %2784 = vmatpush1.msra.mxu0 0.0
    %2785 = vmatprep.subr.mxu0 0.0
    %2786 = vmatpush1.msra.mxu0 0.0
    %2787 = vmatprep.subr.mxu0 0.0
    %2788 = vmatpush1.msra.mxu0 0.0
    %2789 = vmatprep.subr.mxu0 0.0
    %2790 = vmatpush1.msra.mxu0 0.0
    %2791 = vmatprep.subr.mxu0 0.0
    %2792 = vmatpush1.msra.mxu0 %v2353
    %2793 = vmatprep.subr.mxu0 0.0
    %2794 = vmatpush2.msra.mxu0 0.0
    %2795 = vmatprep.subr.mxu0 0.0
    %2796 = vmatpush2.msra.mxu0 0.0
    %2797 = vmatprep.subr.mxu0 0.0
    %2798 = vmatpush2.msra.mxu0 0.0
    %2799 = vmatprep.subr.mxu0 0.0
    %2800 = vmatpush2.msra.mxu0 0.0
    %2801 = vmatprep.subr.mxu0 0.0
    %2802 = vmatpush2.msra.mxu0 0.0
    %2803 = vmatprep.subr.mxu0 0.0
    %2804 = vmatpush2.msra.mxu0 0.0
    %2805 = vmatprep.subr.mxu0 0.0
    %2806 = vmatpush2.msra.mxu0 0.0
    %2807 = vmatprep.subr.mxu0 0.0
    %2808 = vmatpush2.msra.mxu0 0.0
    %2809 = vmatprep.subr.mxu0 0.0
    %2810 = vmatpush2.msra.mxu0 0.0
    %2811 = vmatprep.subr.mxu0 0.0
    %2812 = vmatpush2.msra.mxu0 0.0
    %2813 = vmatprep.subr.mxu0 0.0
    %2814 = vmatpush2.msra.mxu0 0.0
    %2815 = vmatprep.subr.mxu0 0.0
    %2816 = vmatpush2.msra.mxu0 0.0
    %2817 = vmatprep.subr.mxu0 0.0
    %2818 = vmatpush2.msra.mxu0 0.0
    %2819 = vmatprep.subr.mxu0 0.0
    %2820 = vmatpush2.msra.mxu0 0.0
    %2821 = vmatprep.subr.mxu0 0.0
    %2822 = vmatpush2.msra.mxu0 0.0
    %2823 = vmatprep.subr.mxu0 0.0
    %2824 = vmatpush2.msra.mxu0 0.0
    %2825 = vmatprep.mubr.f32.mxu0 0.0
    %2826 = vmatmul.mubr.f32.gmra.mxu0 %v2759
    %v2827 = vpop.f32.mrf.mxu0
    %v2828 = vadd.f32 %v2755, %v2827
    %v2829 = vpop.f32.mrf.mxu0
    %2830 = vdwg.mxu0
    %2831 = vrot.lane.b32.xlu0 %v2256, 112
    %v2832 = vpop.permute.xlu0 %2831
    %2833 = vrot.lane.b32.xlu0 %v2345, 112
    %v2834 = vpop.permute.xlu0 %2833
    %v2835 = vsel %vm224, %v2832, 0
    %v2837 = vsel %vm224, %v2834, 0
    %2839 = vmatprep.subr.mxu0 0.0
    %2840 = vmatpush1.xpose.msra.mxu0 0.0
    %2841 = vmatprep.subr.mxu0 0.0
    %2842 = vmatpush1.xpose.msra.mxu0 0.0
    %2843 = vmatprep.subr.mxu0 0.0
    %2844 = vmatpush1.xpose.msra.mxu0 0.0
    %2845 = vmatprep.subr.mxu0 0.0
    %2846 = vmatpush1.xpose.msra.mxu0 0.0
    %2847 = vmatprep.subr.mxu0 0.0
    %2848 = vmatpush1.xpose.msra.mxu0 0.0
    %2849 = vmatprep.subr.mxu0 0.0
    %2850 = vmatpush1.xpose.msra.mxu0 0.0
    %2851 = vmatprep.subr.mxu0 0.0
    %2852 = vmatpush1.xpose.msra.mxu0 0.0
    %2853 = vmatprep.subr.mxu0 0.0
    %2854 = vmatpush1.xpose.msra.mxu0 0.0
    %2855 = vmatprep.subr.mxu0 0.0
    %2856 = vmatpush1.xpose.msra.mxu0 0.0
    %2857 = vmatprep.subr.mxu0 0.0
    %2858 = vmatpush1.xpose.msra.mxu0 0.0
    %2859 = vmatprep.subr.mxu0 0.0
    %2860 = vmatpush1.xpose.msra.mxu0 0.0
    %2861 = vmatprep.subr.mxu0 0.0
    %2862 = vmatpush1.xpose.msra.mxu0 0.0
    %2863 = vmatprep.subr.mxu0 0.0
    %2864 = vmatpush1.xpose.msra.mxu0 0.0
    %2865 = vmatprep.subr.mxu0 0.0
    %2866 = vmatpush1.xpose.msra.mxu0 0.0
    %2867 = vmatprep.subr.mxu0 0.0
    %2868 = vmatpush1.xpose.msra.mxu0 0.0
    %2869 = vmatprep.subr.mxu0 0.0
    %2870 = vmatpush1.xpose.msra.mxu0 %v2837
    %2871 = vmatprep.subr.mxu0 0.0
    %2872 = vmatpush2.xpose.msra.mxu0 0.0
    %2873 = vmatprep.subr.mxu0 0.0
    %2874 = vmatpush2.xpose.msra.mxu0 0.0
    %2875 = vmatprep.subr.mxu0 0.0
    %2876 = vmatpush2.xpose.msra.mxu0 0.0
    %2877 = vmatprep.subr.mxu0 0.0
    %2878 = vmatpush2.xpose.msra.mxu0 0.0
    %2879 = vmatprep.subr.mxu0 0.0
    %2880 = vmatpush2.xpose.msra.mxu0 0.0
    %2881 = vmatprep.subr.mxu0 0.0
    %2882 = vmatpush2.xpose.msra.mxu0 0.0
    %2883 = vmatprep.subr.mxu0 0.0
    %2884 = vmatpush2.xpose.msra.mxu0 0.0
    %2885 = vmatprep.subr.mxu0 0.0
    %2886 = vmatpush2.xpose.msra.mxu0 0.0
    %2887 = vmatprep.subr.mxu0 0.0
    %2888 = vmatpush2.xpose.msra.mxu0 0.0
    %2889 = vmatprep.subr.mxu0 0.0
    %2890 = vmatpush2.xpose.msra.mxu0 0.0
    %2891 = vmatprep.subr.mxu0 0.0
    %2892 = vmatpush2.xpose.msra.mxu0 0.0
    %2893 = vmatprep.subr.mxu0 0.0
    %2894 = vmatpush2.xpose.msra.mxu0 0.0
    %2895 = vmatprep.subr.mxu0 0.0
    %2896 = vmatpush2.xpose.msra.mxu0 0.0
    %2897 = vmatprep.subr.mxu0 0.0
    %2898 = vmatpush2.xpose.msra.mxu0 0.0
    %2899 = vmatprep.subr.mxu0 0.0
    %2900 = vmatpush2.xpose.msra.mxu0 0.0
    %2901 = vmatprep.subr.mxu0 0.0
    %2902 = vmatpush2.xpose.msra.mxu0 0.0
    %2903 = vmatprep.mubr.f32.mxu0 0.0
    %2904 = vmatmul.mubr.f32.gmra.mxu0 %v2835
    %v2905 = vpop.f32.mrf.mxu0
    %v2906 = vadd.f32 0.0, %v2905
    %v2907 = vpop.f32.mrf.mxu0
    %2908 = vdwg.mxu0
    %v2909 = vsel %vm224, %v2906, -inf
    %2910 = vmax.xlane.f32.xlu0 %v2909
    %v2911 = vpop.xlane.xlu0 %2910
    %v2912 = vsub.f32 %v2906, %v2911
    %v2913 = vmul.f32 %v2912, 1.442695
    %v2914 = vpow.pop %v2913
    %v2915 = vsel %vm224, %v2914, 0.0
    %2916 = vadd.xlane.f32.xlu0 %v2915
    %v2917 = vpop.xlane.xlu0 %2916
    %v2918 = vrcp.pop %v2917
    %v2919 = vmul.f32 %v2914, %v2918
    %2920 = vrot.lane.b32.xlu0 %v2345, 80
    %v2921 = vpop.permute.xlu0 %2920
    %v2924 = vsel %vm224, %v2919, 0
    %2926 = vmatprep.subr.mxu0 0.0
    %2927 = vmatpush1.msra.mxu0 0.0
    %2928 = vmatprep.subr.mxu0 0.0
    %2929 = vmatpush1.msra.mxu0 0.0
    %2930 = vmatprep.subr.mxu0 0.0
    %2931 = vmatpush1.msra.mxu0 0.0
    %2932 = vmatprep.subr.mxu0 0.0
    %2933 = vmatpush1.msra.mxu0 0.0
    %2934 = vmatprep.subr.mxu0 0.0
    %2935 = vmatpush1.msra.mxu0 0.0
    %2936 = vmatprep.subr.mxu0 0.0
    %2937 = vmatpush1.msra.mxu0 0.0
    %2938 = vmatprep.subr.mxu0 0.0
    %2939 = vmatpush1.msra.mxu0 0.0
    %2940 = vmatprep.subr.mxu0 0.0
    %2941 = vmatpush1.msra.mxu0 0.0
    %2942 = vmatprep.subr.mxu0 0.0
    %2943 = vmatpush1.msra.mxu0 0.0
    %2944 = vmatprep.subr.mxu0 0.0
    %2945 = vmatpush1.msra.mxu0 0.0
    %2946 = vmatprep.subr.mxu0 0.0
    %2947 = vmatpush1.msra.mxu0 0.0
    %2948 = vmatprep.subr.mxu0 0.0
    %2949 = vmatpush1.msra.mxu0 0.0
    %2950 = vmatprep.subr.mxu0 0.0
    %2951 = vmatpush1.msra.mxu0 0.0
    %2952 = vmatprep.subr.mxu0 0.0
    %2953 = vmatpush1.msra.mxu0 0.0
    %2954 = vmatprep.subr.mxu0 0.0
    %2955 = vmatpush1.msra.mxu0 0.0
    %2956 = vmatprep.subr.mxu0 0.0
    %2957 = vmatpush1.msra.mxu0 %v2921
    %2958 = vmatprep.subr.mxu0 0.0
    %2959 = vmatpush2.msra.mxu0 0.0
    %2960 = vmatprep.subr.mxu0 0.0
    %2961 = vmatpush2.msra.mxu0 0.0
    %2962 = vmatprep.subr.mxu0 0.0
    %2963 = vmatpush2.msra.mxu0 0.0
    %2964 = vmatprep.subr.mxu0 0.0
    %2965 = vmatpush2.msra.mxu0 0.0
    %2966 = vmatprep.subr.mxu0 0.0
    %2967 = vmatpush2.msra.mxu0 0.0
    %2968 = vmatprep.subr.mxu0 0.0
    %2969 = vmatpush2.msra.mxu0 0.0
    %2970 = vmatprep.subr.mxu0 0.0
    %2971 = vmatpush2.msra.mxu0 0.0
    %2972 = vmatprep.subr.mxu0 0.0
    %2973 = vmatpush2.msra.mxu0 0.0
    %2974 = vmatprep.subr.mxu0 0.0
    %2975 = vmatpush2.msra.mxu0 0.0
    %2976 = vmatprep.subr.mxu0 0.0
    %2977 = vmatpush2.msra.mxu0 0.0
    %2978 = vmatprep.subr.mxu0 0.0
    %2979 = vmatpush2.msra.mxu0 0.0
    %2980 = vmatprep.subr.mxu0 0.0
    %2981 = vmatpush2.msra.mxu0 0.0
    %2982 = vmatprep.subr.mxu0 0.0
    %2983 = vmatpush2.msra.mxu0 0.0
    %2984 = vmatprep.subr.mxu0 0.0
    %2985 = vmatpush2.msra.mxu0 0.0
    %2986 = vmatprep.subr.mxu0 0.0
    %2987 = vmatpush2.msra.mxu0 0.0
    %2988 = vmatprep.subr.mxu0 0.0
    %2989 = vmatpush2.msra.mxu0 0.0
    %2990 = vmatprep.mubr.f32.mxu0 0.0
    %2991 = vmatmul.mubr.f32.gmra.mxu0 %v2924
    %v2992 = vpop.f32.mrf.mxu0
    %v2993 = vadd.f32 0.0, %v2992
    %v2994 = vpop.f32.mrf.mxu0
    %2995 = vdwg.mxu0
    %v2997 = vsel %vm224, %v2993, 0
    %2999 = vmatprep.subr.mxu0 0.0
    %3000 = vmatpush1.msra.mxu0 0.0
    %3001 = vmatprep.subr.mxu0 0.0
    %3002 = vmatpush1.msra.mxu0 0.0
    %3003 = vmatprep.subr.mxu0 0.0
    %3004 = vmatpush1.msra.mxu0 0.0
    %3005 = vmatprep.subr.mxu0 0.0
    %3006 = vmatpush1.msra.mxu0 0.0
    %3007 = vmatprep.subr.mxu0 0.0
    %3008 = vmatpush1.msra.mxu0 0.0
    %3009 = vmatprep.subr.mxu0 0.0
    %3010 = vmatpush1.msra.mxu0 0.0
    %3011 = vmatprep.subr.mxu0 0.0
    %3012 = vmatpush1.msra.mxu0 0.0
    %3013 = vmatprep.subr.mxu0 0.0
    %3014 = vmatpush1.msra.mxu0 0.0
    %3015 = vmatprep.subr.mxu0 0.0
    %3016 = vmatpush1.msra.mxu0 0.0
    %3017 = vmatprep.subr.mxu0 0.0
    %3018 = vmatpush1.msra.mxu0 0.0
    %3019 = vmatprep.subr.mxu0 0.0
    %3020 = vmatpush1.msra.mxu0 0.0
    %3021 = vmatprep.subr.mxu0 0.0
    %3022 = vmatpush1.msra.mxu0 0.0
    %3023 = vmatprep.subr.mxu0 0.0
    %3024 = vmatpush1.msra.mxu0 0.0
    %3025 = vmatprep.subr.mxu0 0.0
    %3026 = vmatpush1.msra.mxu0 0.0
    %3027 = vmatprep.subr.mxu0 0.0
    %3028 = vmatpush1.msra.mxu0 0.0
    %3029 = vmatprep.subr.mxu0 0.0
    %3030 = vmatpush1.msra.mxu0 %v2355
    %3031 = vmatprep.subr.mxu0 0.0
    %3032 = vmatpush2.msra.mxu0 0.0
    %3033 = vmatprep.subr.mxu0 0.0
    %3034 = vmatpush2.msra.mxu0 0.0
    %3035 = vmatprep.subr.mxu0 0.0
    %3036 = vmatpush2.msra.mxu0 0.0
    %3037 = vmatprep.subr.mxu0 0.0
    %3038 = vmatpush2.msra.mxu0 0.0
    %3039 = vmatprep.subr.mxu0 0.0
    %3040 = vmatpush2.msra.mxu0 0.0
    %3041 = vmatprep.subr.mxu0 0.0
    %3042 = vmatpush2.msra.mxu0 0.0
    %3043 = vmatprep.subr.mxu0 0.0
    %3044 = vmatpush2.msra.mxu0 0.0
    %3045 = vmatprep.subr.mxu0 0.0
    %3046 = vmatpush2.msra.mxu0 0.0
    %3047 = vmatprep.subr.mxu0 0.0
    %3048 = vmatpush2.msra.mxu0 0.0
    %3049 = vmatprep.subr.mxu0 0.0
    %3050 = vmatpush2.msra.mxu0 0.0
    %3051 = vmatprep.subr.mxu0 0.0
    %3052 = vmatpush2.msra.mxu0 0.0
    %3053 = vmatprep.subr.mxu0 0.0
    %3054 = vmatpush2.msra.mxu0 0.0
    %3055 = vmatprep.subr.mxu0 0.0
    %3056 = vmatpush2.msra.mxu0 0.0
    %3057 = vmatprep.subr.mxu0 0.0
    %3058 = vmatpush2.msra.mxu0 0.0
    %3059 = vmatprep.subr.mxu0 0.0
    %3060 = vmatpush2.msra.mxu0 0.0
    %3061 = vmatprep.subr.mxu0 0.0
    %3062 = vmatpush2.msra.mxu0 0.0
    %3063 = vmatprep.mubr.f32.mxu0 0.0
    %3064 = vmatmul.mubr.f32.gmra.mxu0 %v2997
    %v3065 = vpop.f32.mrf.mxu0
    %v3066 = vadd.f32 0.0, %v3065
    %v3067 = vpop.f32.mrf.mxu0
    %3068 = vdwg.mxu0
    %v3069 = vadd.f32 %v2828, %v3066
    %3070 = vrot.lane.b32.xlu0 %v2256, 104
    %v3071 = vpop.permute.xlu0 %3070
    %3072 = vrot.lane.b32.xlu0 %v2345, 104
    %v3073 = vpop.permute.xlu0 %3072
    %v3074 = vsel %vm224, %v3071, 0
    %v3076 = vsel %vm224, %v3073, 0
    %3078 = vmatprep.subr.mxu0 0.0
    %3079 = vmatpush1.xpose.msra.mxu0 0.0
    %3080 = vmatprep.subr.mxu0 0.0
    %3081 = vmatpush1.xpose.msra.mxu0 0.0
    %3082 = vmatprep.subr.mxu0 0.0
    %3083 = vmatpush1.xpose.msra.mxu0 0.0
    %3084 = vmatprep.subr.mxu0 0.0
    %3085 = vmatpush1.xpose.msra.mxu0 0.0
    %3086 = vmatprep.subr.mxu0 0.0
    %3087 = vmatpush1.xpose.msra.mxu0 0.0
    %3088 = vmatprep.subr.mxu0 0.0
    %3089 = vmatpush1.xpose.msra.mxu0 0.0
    %3090 = vmatprep.subr.mxu0 0.0
    %3091 = vmatpush1.xpose.msra.mxu0 0.0
    %3092 = vmatprep.subr.mxu0 0.0
    %3093 = vmatpush1.xpose.msra.mxu0 0.0
    %3094 = vmatprep.subr.mxu0 0.0
    %3095 = vmatpush1.xpose.msra.mxu0 0.0
    %3096 = vmatprep.subr.mxu0 0.0
    %3097 = vmatpush1.xpose.msra.mxu0 0.0
    %3098 = vmatprep.subr.mxu0 0.0
    %3099 = vmatpush1.xpose.msra.mxu0 0.0
    %3100 = vmatprep.subr.mxu0 0.0
    %3101 = vmatpush1.xpose.msra.mxu0 0.0
    %3102 = vmatprep.subr.mxu0 0.0
    %3103 = vmatpush1.xpose.msra.mxu0 0.0
    %3104 = vmatprep.subr.mxu0 0.0
    %3105 = vmatpush1.xpose.msra.mxu0 0.0
    %3106 = vmatprep.subr.mxu0 0.0
    %3107 = vmatpush1.xpose.msra.mxu0 0.0
    %3108 = vmatprep.subr.mxu0 0.0
    %3109 = vmatpush1.xpose.msra.mxu0 %v3076
    %3110 = vmatprep.subr.mxu0 0.0
    %3111 = vmatpush2.xpose.msra.mxu0 0.0
    %3112 = vmatprep.subr.mxu0 0.0
    %3113 = vmatpush2.xpose.msra.mxu0 0.0
    %3114 = vmatprep.subr.mxu0 0.0
    %3115 = vmatpush2.xpose.msra.mxu0 0.0
    %3116 = vmatprep.subr.mxu0 0.0
    %3117 = vmatpush2.xpose.msra.mxu0 0.0
    %3118 = vmatprep.subr.mxu0 0.0
    %3119 = vmatpush2.xpose.msra.mxu0 0.0
    %3120 = vmatprep.subr.mxu0 0.0
    %3121 = vmatpush2.xpose.msra.mxu0 0.0
    %3122 = vmatprep.subr.mxu0 0.0
    %3123 = vmatpush2.xpose.msra.mxu0 0.0
    %3124 = vmatprep.subr.mxu0 0.0
    %3125 = vmatpush2.xpose.msra.mxu0 0.0
    %3126 = vmatprep.subr.mxu0 0.0
    %3127 = vmatpush2.xpose.msra.mxu0 0.0
    %3128 = vmatprep.subr.mxu0 0.0
    %3129 = vmatpush2.xpose.msra.mxu0 0.0
    %3130 = vmatprep.subr.mxu0 0.0
    %3131 = vmatpush2.xpose.msra.mxu0 0.0
    %3132 = vmatprep.subr.mxu0 0.0
    %3133 = vmatpush2.xpose.msra.mxu0 0.0
    %3134 = vmatprep.subr.mxu0 0.0
    %3135 = vmatpush2.xpose.msra.mxu0 0.0
    %3136 = vmatprep.subr.mxu0 0.0
    %3137 = vmatpush2.xpose.msra.mxu0 0.0
    %3138 = vmatprep.subr.mxu0 0.0
    %3139 = vmatpush2.xpose.msra.mxu0 0.0
    %3140 = vmatprep.subr.mxu0 0.0
    %3141 = vmatpush2.xpose.msra.mxu0 0.0
    %3142 = vmatprep.mubr.f32.mxu0 0.0
    %3143 = vmatmul.mubr.f32.gmra.mxu0 %v3074
    %v3144 = vpop.f32.mrf.mxu0
    %v3145 = vadd.f32 0.0, %v3144
    %v3146 = vpop.f32.mrf.mxu0
    %3147 = vdwg.mxu0
    %v3148 = vsel %vm224, %v3145, -inf
    %3149 = vmax.xlane.f32.xlu0 %v3148
    %v3150 = vpop.xlane.xlu0 %3149
    %v3151 = vsub.f32 %v3145, %v3150
    %v3152 = vmul.f32 %v3151, 1.442695
    %v3153 = vpow.pop %v3152
    %v3154 = vsel %vm224, %v3153, 0.0
    %3155 = vadd.xlane.f32.xlu0 %v3154
    %v3156 = vpop.xlane.xlu0 %3155
    %v3157 = vrcp.pop %v3156
    %v3158 = vmul.f32 %v3153, %v3157
    %3159 = vrot.lane.b32.xlu0 %v2345, 72
    %v3160 = vpop.permute.xlu0 %3159
    %v3163 = vsel %vm224, %v3158, 0
    %3165 = vmatprep.subr.mxu0 0.0
    %3166 = vmatpush1.msra.mxu0 0.0
    %3167 = vmatprep.subr.mxu0 0.0
    %3168 = vmatpush1.msra.mxu0 0.0
    %3169 = vmatprep.subr.mxu0 0.0
    %3170 = vmatpush1.msra.mxu0 0.0
    %3171 = vmatprep.subr.mxu0 0.0
    %3172 = vmatpush1.msra.mxu0 0.0
    %3173 = vmatprep.subr.mxu0 0.0
    %3174 = vmatpush1.msra.mxu0 0.0
    %3175 = vmatprep.subr.mxu0 0.0
    %3176 = vmatpush1.msra.mxu0 0.0
    %3177 = vmatprep.subr.mxu0 0.0
    %3178 = vmatpush1.msra.mxu0 0.0
    %3179 = vmatprep.subr.mxu0 0.0
    %3180 = vmatpush1.msra.mxu0 0.0
    %3181 = vmatprep.subr.mxu0 0.0
    %3182 = vmatpush1.msra.mxu0 0.0
    %3183 = vmatprep.subr.mxu0 0.0
    %3184 = vmatpush1.msra.mxu0 0.0
    %3185 = vmatprep.subr.mxu0 0.0
    %3186 = vmatpush1.msra.mxu0 0.0
    %3187 = vmatprep.subr.mxu0 0.0
    %3188 = vmatpush1.msra.mxu0 0.0
    %3189 = vmatprep.subr.mxu0 0.0
    %3190 = vmatpush1.msra.mxu0 0.0
    %3191 = vmatprep.subr.mxu0 0.0
    %3192 = vmatpush1.msra.mxu0 0.0
    %3193 = vmatprep.subr.mxu0 0.0
    %3194 = vmatpush1.msra.mxu0 0.0
    %3195 = vmatprep.subr.mxu0 0.0
    %3196 = vmatpush1.msra.mxu0 %v3160
    %3197 = vmatprep.subr.mxu0 0.0
    %3198 = vmatpush2.msra.mxu0 0.0
    %3199 = vmatprep.subr.mxu0 0.0
    %3200 = vmatpush2.msra.mxu0 0.0
    %3201 = vmatprep.subr.mxu0 0.0
    %3202 = vmatpush2.msra.mxu0 0.0
    %3203 = vmatprep.subr.mxu0 0.0
    %3204 = vmatpush2.msra.mxu0 0.0
    %3205 = vmatprep.subr.mxu0 0.0
    %3206 = vmatpush2.msra.mxu0 0.0
    %3207 = vmatprep.subr.mxu0 0.0
    %3208 = vmatpush2.msra.mxu0 0.0
    %3209 = vmatprep.subr.mxu0 0.0
    %3210 = vmatpush2.msra.mxu0 0.0
    %3211 = vmatprep.subr.mxu0 0.0
    %3212 = vmatpush2.msra.mxu0 0.0
    %3213 = vmatprep.subr.mxu0 0.0
    %3214 = vmatpush2.msra.mxu0 0.0
    %3215 = vmatprep.subr.mxu0 0.0
    %3216 = vmatpush2.msra.mxu0 0.0
    %3217 = vmatprep.subr.mxu0 0.0
    %3218 = vmatpush2.msra.mxu0 0.0
    %3219 = vmatprep.subr.mxu0 0.0
    %3220 = vmatpush2.msra.mxu0 0.0
    %3221 = vmatprep.subr.mxu0 0.0
    %3222 = vmatpush2.msra.mxu0 0.0
    %3223 = vmatprep.subr.mxu0 0.0
    %3224 = vmatpush2.msra.mxu0 0.0
    %3225 = vmatprep.subr.mxu0 0.0
    %3226 = vmatpush2.msra.mxu0 0.0
    %3227 = vmatprep.subr.mxu0 0.0
    %3228 = vmatpush2.msra.mxu0 0.0
    %3229 = vmatprep.mubr.f32.mxu0 0.0
    %3230 = vmatmul.mubr.f32.gmra.mxu0 %v3163
    %v3231 = vpop.f32.mrf.mxu0
    %v3232 = vadd.f32 0.0, %v3231
    %v3233 = vpop.f32.mrf.mxu0
    %3234 = vdwg.mxu0
    %v3236 = vsel %vm224, %v3232, 0
    %3238 = vmatprep.subr.mxu0 0.0
    %3239 = vmatpush1.msra.mxu0 0.0
    %3240 = vmatprep.subr.mxu0 0.0
    %3241 = vmatpush1.msra.mxu0 0.0
    %3242 = vmatprep.subr.mxu0 0.0
    %3243 = vmatpush1.msra.mxu0 0.0
    %3244 = vmatprep.subr.mxu0 0.0
    %3245 = vmatpush1.msra.mxu0 0.0
    %3246 = vmatprep.subr.mxu0 0.0
    %3247 = vmatpush1.msra.mxu0 0.0
    %3248 = vmatprep.subr.mxu0 0.0
    %3249 = vmatpush1.msra.mxu0 0.0
    %3250 = vmatprep.subr.mxu0 0.0
    %3251 = vmatpush1.msra.mxu0 0.0
    %3252 = vmatprep.subr.mxu0 0.0
    %3253 = vmatpush1.msra.mxu0 0.0
    %3254 = vmatprep.subr.mxu0 0.0
    %3255 = vmatpush1.msra.mxu0 0.0
    %3256 = vmatprep.subr.mxu0 0.0
    %3257 = vmatpush1.msra.mxu0 0.0
    %3258 = vmatprep.subr.mxu0 0.0
    %3259 = vmatpush1.msra.mxu0 0.0
    %3260 = vmatprep.subr.mxu0 0.0
    %3261 = vmatpush1.msra.mxu0 0.0
    %3262 = vmatprep.subr.mxu0 0.0
    %3263 = vmatpush1.msra.mxu0 0.0
    %3264 = vmatprep.subr.mxu0 0.0
    %3265 = vmatpush1.msra.mxu0 0.0
    %3266 = vmatprep.subr.mxu0 0.0
    %3267 = vmatpush1.msra.mxu0 0.0
    %3268 = vmatprep.subr.mxu0 0.0
    %3269 = vmatpush1.msra.mxu0 %v2356
    %3270 = vmatprep.subr.mxu0 0.0
    %3271 = vmatpush2.msra.mxu0 0.0
    %3272 = vmatprep.subr.mxu0 0.0
    %3273 = vmatpush2.msra.mxu0 0.0
    %3274 = vmatprep.subr.mxu0 0.0
    %3275 = vmatpush2.msra.mxu0 0.0
    %3276 = vmatprep.subr.mxu0 0.0
    %3277 = vmatpush2.msra.mxu0 0.0
    %3278 = vmatprep.subr.mxu0 0.0
    %3279 = vmatpush2.msra.mxu0 0.0
    %3280 = vmatprep.subr.mxu0 0.0
    %3281 = vmatpush2.msra.mxu0 0.0
    %3282 = vmatprep.subr.mxu0 0.0
    %3283 = vmatpush2.msra.mxu0 0.0
    %3284 = vmatprep.subr.mxu0 0.0
    %3285 = vmatpush2.msra.mxu0 0.0
    %3286 = vmatprep.subr.mxu0 0.0
    %3287 = vmatpush2.msra.mxu0 0.0
    %3288 = vmatprep.subr.mxu0 0.0
    %3289 = vmatpush2.msra.mxu0 0.0
    %3290 = vmatprep.subr.mxu0 0.0
    %3291 = vmatpush2.msra.mxu0 0.0
    %3292 = vmatprep.subr.mxu0 0.0
    %3293 = vmatpush2.msra.mxu0 0.0
    %3294 = vmatprep.subr.mxu0 0.0
    %3295 = vmatpush2.msra.mxu0 0.0
    %3296 = vmatprep.subr.mxu0 0.0
    %3297 = vmatpush2.msra.mxu0 0.0
    %3298 = vmatprep.subr.mxu0 0.0
    %3299 = vmatpush2.msra.mxu0 0.0
    %3300 = vmatprep.subr.mxu0 0.0
    %3301 = vmatpush2.msra.mxu0 0.0
    %3302 = vmatprep.mubr.f32.mxu0 0.0
    %3303 = vmatmul.mubr.f32.gmra.mxu0 %v3236
    %v3304 = vpop.f32.mrf.mxu0
    %v3305 = vadd.f32 0.0, %v3304
    %v3306 = vpop.f32.mrf.mxu0
    %3307 = vdwg.mxu0
    %v3308 = vadd.f32 %v3069, %v3305
    %v3310 = vsel %vm224, %v2261, 0
    %v3313 = vsel %vm224, %v2350, 0
    %3315 = vmatprep.subr.mxu0 0.0
    %3316 = vmatpush1.xpose.msra.mxu0 0.0
    %3317 = vmatprep.subr.mxu0 0.0
    %3318 = vmatpush1.xpose.msra.mxu0 0.0
    %3319 = vmatprep.subr.mxu0 0.0
    %3320 = vmatpush1.xpose.msra.mxu0 0.0
    %3321 = vmatprep.subr.mxu0 0.0
    %3322 = vmatpush1.xpose.msra.mxu0 0.0
    %3323 = vmatprep.subr.mxu0 0.0
    %3324 = vmatpush1.xpose.msra.mxu0 0.0
    %3325 = vmatprep.subr.mxu0 0.0
    %3326 = vmatpush1.xpose.msra.mxu0 0.0
    %3327 = vmatprep.subr.mxu0 0.0
    %3328 = vmatpush1.xpose.msra.mxu0 0.0
    %3329 = vmatprep.subr.mxu0 0.0
    %3330 = vmatpush1.xpose.msra.mxu0 0.0
    %3331 = vmatprep.subr.mxu0 0.0
    %3332 = vmatpush1.xpose.msra.mxu0 0.0
    %3333 = vmatprep.subr.mxu0 0.0
    %3334 = vmatpush1.xpose.msra.mxu0 0.0
    %3335 = vmatprep.subr.mxu0 0.0
    %3336 = vmatpush1.xpose.msra.mxu0 0.0
    %3337 = vmatprep.subr.mxu0 0.0
    %3338 = vmatpush1.xpose.msra.mxu0 0.0
    %3339 = vmatprep.subr.mxu0 0.0
    %3340 = vmatpush1.xpose.msra.mxu0 0.0
    %3341 = vmatprep.subr.mxu0 0.0
    %3342 = vmatpush1.xpose.msra.mxu0 0.0
    %3343 = vmatprep.subr.mxu0 0.0
    %3344 = vmatpush1.xpose.msra.mxu0 0.0
    %3345 = vmatprep.subr.mxu0 0.0
    %3346 = vmatpush1.xpose.msra.mxu0 %v3313
    %3347 = vmatprep.subr.mxu0 0.0
    %3348 = vmatpush2.xpose.msra.mxu0 0.0
    %3349 = vmatprep.subr.mxu0 0.0
    %3350 = vmatpush2.xpose.msra.mxu0 0.0
    %3351 = vmatprep.subr.mxu0 0.0
    %3352 = vmatpush2.xpose.msra.mxu0 0.0
    %3353 = vmatprep.subr.mxu0 0.0
    %3354 = vmatpush2.xpose.msra.mxu0 0.0
    %3355 = vmatprep.subr.mxu0 0.0
    %3356 = vmatpush2.xpose.msra.mxu0 0.0
    %3357 = vmatprep.subr.mxu0 0.0
    %3358 = vmatpush2.xpose.msra.mxu0 0.0
    %3359 = vmatprep.subr.mxu0 0.0
    %3360 = vmatpush2.xpose.msra.mxu0 0.0
    %3361 = vmatprep.subr.mxu0 0.0
    %3362 = vmatpush2.xpose.msra.mxu0 0.0
    %3363 = vmatprep.subr.mxu0 0.0
    %3364 = vmatpush2.xpose.msra.mxu0 0.0
    %3365 = vmatprep.subr.mxu0 0.0
    %3366 = vmatpush2.xpose.msra.mxu0 0.0
    %3367 = vmatprep.subr.mxu0 0.0
    %3368 = vmatpush2.xpose.msra.mxu0 0.0
    %3369 = vmatprep.subr.mxu0 0.0
    %3370 = vmatpush2.xpose.msra.mxu0 0.0
    %3371 = vmatprep.subr.mxu0 0.0
    %3372 = vmatpush2.xpose.msra.mxu0 0.0
    %3373 = vmatprep.subr.mxu0 0.0
    %3374 = vmatpush2.xpose.msra.mxu0 0.0
    %3375 = vmatprep.subr.mxu0 0.0
    %3376 = vmatpush2.xpose.msra.mxu0 0.0
    %3377 = vmatprep.subr.mxu0 0.0
    %3378 = vmatpush2.xpose.msra.mxu0 0.0
    %3379 = vmatprep.mubr.f32.mxu0 0.0
    %3380 = vmatmul.mubr.f32.gmra.mxu0 %v3310
    %v3381 = vpop.f32.mrf.mxu0
    %v3382 = vadd.f32 0.0, %v3381
    %v3383 = vpop.f32.mrf.mxu0
    %3384 = vdwg.mxu0
    %v3385 = vsel %vm224, %v3382, -inf
    %3386 = vmax.xlane.f32.xlu0 %v3385
    %v3387 = vpop.xlane.xlu0 %3386
    %v3388 = vsub.f32 %v3382, %v3387
    %v3389 = vmul.f32 %v3388, 1.442695
    %v3390 = vpow.pop %v3389
    %v3391 = vsel %vm224, %v3390, 0.0
    %3392 = vadd.xlane.f32.xlu0 %v3391
    %v3393 = vpop.xlane.xlu0 %3392
    %v3394 = vrcp.pop %v3393
    %v3395 = vmul.f32 %v3390, %v3394
    %3396 = vrot.lane.b32.xlu0 %v2350, 96
    %v3397 = vpop.permute.xlu0 %3396
    %v3400 = vsel %vm224, %v3395, 0
    %3402 = vmatprep.subr.mxu0 0.0
    %3403 = vmatpush1.msra.mxu0 0.0
    %3404 = vmatprep.subr.mxu0 0.0
    %3405 = vmatpush1.msra.mxu0 0.0
    %3406 = vmatprep.subr.mxu0 0.0
    %3407 = vmatpush1.msra.mxu0 0.0
    %3408 = vmatprep.subr.mxu0 0.0
    %3409 = vmatpush1.msra.mxu0 0.0
    %3410 = vmatprep.subr.mxu0 0.0
    %3411 = vmatpush1.msra.mxu0 0.0
    %3412 = vmatprep.subr.mxu0 0.0
    %3413 = vmatpush1.msra.mxu0 0.0
    %3414 = vmatprep.subr.mxu0 0.0
    %3415 = vmatpush1.msra.mxu0 0.0
    %3416 = vmatprep.subr.mxu0 0.0
    %3417 = vmatpush1.msra.mxu0 0.0
    %3418 = vmatprep.subr.mxu0 0.0
    %3419 = vmatpush1.msra.mxu0 0.0
    %3420 = vmatprep.subr.mxu0 0.0
    %3421 = vmatpush1.msra.mxu0 0.0
    %3422 = vmatprep.subr.mxu0 0.0
    %3423 = vmatpush1.msra.mxu0 0.0
    %3424 = vmatprep.subr.mxu0 0.0
    %3425 = vmatpush1.msra.mxu0 0.0
    %3426 = vmatprep.subr.mxu0 0.0
    %3427 = vmatpush1.msra.mxu0 0.0
    %3428 = vmatprep.subr.mxu0 0.0
    %3429 = vmatpush1.msra.mxu0 0.0
    %3430 = vmatprep.subr.mxu0 0.0
    %3431 = vmatpush1.msra.mxu0 0.0
    %3432 = vmatprep.subr.mxu0 0.0
    %3433 = vmatpush1.msra.mxu0 %v3397
    %3434 = vmatprep.subr.mxu0 0.0
    %3435 = vmatpush2.msra.mxu0 0.0
    %3436 = vmatprep.subr.mxu0 0.0
    %3437 = vmatpush2.msra.mxu0 0.0
    %3438 = vmatprep.subr.mxu0 0.0
    %3439 = vmatpush2.msra.mxu0 0.0
    %3440 = vmatprep.subr.mxu0 0.0
    %3441 = vmatpush2.msra.mxu0 0.0
    %3442 = vmatprep.subr.mxu0 0.0
    %3443 = vmatpush2.msra.mxu0 0.0
    %3444 = vmatprep.subr.mxu0 0.0
    %3445 = vmatpush2.msra.mxu0 0.0
    %3446 = vmatprep.subr.mxu0 0.0
    %3447 = vmatpush2.msra.mxu0 0.0
    %3448 = vmatprep.subr.mxu0 0.0
    %3449 = vmatpush2.msra.mxu0 0.0
    %3450 = vmatprep.subr.mxu0 0.0
    %3451 = vmatpush2.msra.mxu0 0.0
    %3452 = vmatprep.subr.mxu0 0.0
    %3453 = vmatpush2.msra.mxu0 0.0
    %3454 = vmatprep.subr.mxu0 0.0
    %3455 = vmatpush2.msra.mxu0 0.0
    %3456 = vmatprep.subr.mxu0 0.0
    %3457 = vmatpush2.msra.mxu0 0.0
    %3458 = vmatprep.subr.mxu0 0.0
    %3459 = vmatpush2.msra.mxu0 0.0
    %3460 = vmatprep.subr.mxu0 0.0
    %3461 = vmatpush2.msra.mxu0 0.0
    %3462 = vmatprep.subr.mxu0 0.0
    %3463 = vmatpush2.msra.mxu0 0.0
    %3464 = vmatprep.subr.mxu0 0.0
    %3465 = vmatpush2.msra.mxu0 0.0
    %3466 = vmatprep.mubr.f32.mxu0 0.0
    %3467 = vmatmul.mubr.f32.gmra.mxu0 %v3400
    %v3468 = vpop.f32.mrf.mxu0
    %v3469 = vadd.f32 0.0, %v3468
    %v3470 = vpop.f32.mrf.mxu0
    %3471 = vdwg.mxu0
    %3472 = vrot.lane.b32.xlu0 %v2261, 120
    %v3473 = vpop.permute.xlu0 %3472
    %3474 = vrot.lane.b32.xlu0 %v2350, 120
    %v3475 = vpop.permute.xlu0 %3474
    %v3476 = vsel %vm224, %v3473, 0
    %v3478 = vsel %vm224, %v3475, 0
    %3480 = vmatprep.subr.mxu0 0.0
    %3481 = vmatpush1.xpose.msra.mxu0 0.0
    %3482 = vmatprep.subr.mxu0 0.0
    %3483 = vmatpush1.xpose.msra.mxu0 0.0
    %3484 = vmatprep.subr.mxu0 0.0
    %3485 = vmatpush1.xpose.msra.mxu0 0.0
    %3486 = vmatprep.subr.mxu0 0.0
    %3487 = vmatpush1.xpose.msra.mxu0 0.0
    %3488 = vmatprep.subr.mxu0 0.0
    %3489 = vmatpush1.xpose.msra.mxu0 0.0
    %3490 = vmatprep.subr.mxu0 0.0
    %3491 = vmatpush1.xpose.msra.mxu0 0.0
    %3492 = vmatprep.subr.mxu0 0.0
    %3493 = vmatpush1.xpose.msra.mxu0 0.0
    %3494 = vmatprep.subr.mxu0 0.0
    %3495 = vmatpush1.xpose.msra.mxu0 0.0
    %3496 = vmatprep.subr.mxu0 0.0
    %3497 = vmatpush1.xpose.msra.mxu0 0.0
    %3498 = vmatprep.subr.mxu0 0.0
    %3499 = vmatpush1.xpose.msra.mxu0 0.0
    %3500 = vmatprep.subr.mxu0 0.0
    %3501 = vmatpush1.xpose.msra.mxu0 0.0
    %3502 = vmatprep.subr.mxu0 0.0
    %3503 = vmatpush1.xpose.msra.mxu0 0.0
    %3504 = vmatprep.subr.mxu0 0.0
    %3505 = vmatpush1.xpose.msra.mxu0 0.0
    %3506 = vmatprep.subr.mxu0 0.0
    %3507 = vmatpush1.xpose.msra.mxu0 0.0
    %3508 = vmatprep.subr.mxu0 0.0
    %3509 = vmatpush1.xpose.msra.mxu0 0.0
    %3510 = vmatprep.subr.mxu0 0.0
    %3511 = vmatpush1.xpose.msra.mxu0 %v3478
    %3512 = vmatprep.subr.mxu0 0.0
    %3513 = vmatpush2.xpose.msra.mxu0 0.0
    %3514 = vmatprep.subr.mxu0 0.0
    %3515 = vmatpush2.xpose.msra.mxu0 0.0
    %3516 = vmatprep.subr.mxu0 0.0
    %3517 = vmatpush2.xpose.msra.mxu0 0.0
    %3518 = vmatprep.subr.mxu0 0.0
    %3519 = vmatpush2.xpose.msra.mxu0 0.0
    %3520 = vmatprep.subr.mxu0 0.0
    %3521 = vmatpush2.xpose.msra.mxu0 0.0
    %3522 = vmatprep.subr.mxu0 0.0
    %3523 = vmatpush2.xpose.msra.mxu0 0.0
    %3524 = vmatprep.subr.mxu0 0.0
    %3525 = vmatpush2.xpose.msra.mxu0 0.0
    %3526 = vmatprep.subr.mxu0 0.0
    %3527 = vmatpush2.xpose.msra.mxu0 0.0
    %3528 = vmatprep.subr.mxu0 0.0
    %3529 = vmatpush2.xpose.msra.mxu0 0.0
    %3530 = vmatprep.subr.mxu0 0.0
    %3531 = vmatpush2.xpose.msra.mxu0 0.0
    %3532 = vmatprep.subr.mxu0 0.0
    %3533 = vmatpush2.xpose.msra.mxu0 0.0
    %3534 = vmatprep.subr.mxu0 0.0
    %3535 = vmatpush2.xpose.msra.mxu0 0.0
    %3536 = vmatprep.subr.mxu0 0.0
    %3537 = vmatpush2.xpose.msra.mxu0 0.0
    %3538 = vmatprep.subr.mxu0 0.0
    %3539 = vmatpush2.xpose.msra.mxu0 0.0
    %3540 = vmatprep.subr.mxu0 0.0
    %3541 = vmatpush2.xpose.msra.mxu0 0.0
    %3542 = vmatprep.subr.mxu0 0.0
    %3543 = vmatpush2.xpose.msra.mxu0 0.0
    %3544 = vmatprep.mubr.f32.mxu0 0.0
    %3545 = vmatmul.mubr.f32.gmra.mxu0 %v3476
    %v3546 = vpop.f32.mrf.mxu0
    %v3547 = vadd.f32 0.0, %v3546
    %v3548 = vpop.f32.mrf.mxu0
    %3549 = vdwg.mxu0
    %v3550 = vsel %vm224, %v3547, -inf
    %3551 = vmax.xlane.f32.xlu0 %v3550
    %v3552 = vpop.xlane.xlu0 %3551
    %v3553 = vsub.f32 %v3547, %v3552
    %v3554 = vmul.f32 %v3553, 1.442695
    %v3555 = vpow.pop %v3554
    %v3556 = vsel %vm224, %v3555, 0.0
    %3557 = vadd.xlane.f32.xlu0 %v3556
    %v3558 = vpop.xlane.xlu0 %3557
    %v3559 = vrcp.pop %v3558
    %v3560 = vmul.f32 %v3555, %v3559
    %3561 = vrot.lane.b32.xlu0 %v2350, 88
    %v3562 = vpop.permute.xlu0 %3561
    %v3565 = vsel %vm224, %v3560, 0
    %3567 = vmatprep.subr.mxu0 0.0
    %3568 = vmatpush1.msra.mxu0 0.0
    %3569 = vmatprep.subr.mxu0 0.0
    %3570 = vmatpush1.msra.mxu0 0.0
    %3571 = vmatprep.subr.mxu0 0.0
    %3572 = vmatpush1.msra.mxu0 0.0
    %3573 = vmatprep.subr.mxu0 0.0
    %3574 = vmatpush1.msra.mxu0 0.0
    %3575 = vmatprep.subr.mxu0 0.0
    %3576 = vmatpush1.msra.mxu0 0.0
    %3577 = vmatprep.subr.mxu0 0.0
    %3578 = vmatpush1.msra.mxu0 0.0
    %3579 = vmatprep.subr.mxu0 0.0
    %3580 = vmatpush1.msra.mxu0 0.0
    %3581 = vmatprep.subr.mxu0 0.0
    %3582 = vmatpush1.msra.mxu0 0.0
    %3583 = vmatprep.subr.mxu0 0.0
    %3584 = vmatpush1.msra.mxu0 0.0
    %3585 = vmatprep.subr.mxu0 0.0
    %3586 = vmatpush1.msra.mxu0 0.0
    %3587 = vmatprep.subr.mxu0 0.0
    %3588 = vmatpush1.msra.mxu0 0.0
    %3589 = vmatprep.subr.mxu0 0.0
    %3590 = vmatpush1.msra.mxu0 0.0
    %3591 = vmatprep.subr.mxu0 0.0
    %3592 = vmatpush1.msra.mxu0 0.0
    %3593 = vmatprep.subr.mxu0 0.0
    %3594 = vmatpush1.msra.mxu0 0.0
    %3595 = vmatprep.subr.mxu0 0.0
    %3596 = vmatpush1.msra.mxu0 0.0
    %3597 = vmatprep.subr.mxu0 0.0
    %3598 = vmatpush1.msra.mxu0 %v3562
    %3599 = vmatprep.subr.mxu0 0.0
    %3600 = vmatpush2.msra.mxu0 0.0
    %3601 = vmatprep.subr.mxu0 0.0
    %3602 = vmatpush2.msra.mxu0 0.0
    %3603 = vmatprep.subr.mxu0 0.0
    %3604 = vmatpush2.msra.mxu0 0.0
    %3605 = vmatprep.subr.mxu0 0.0
    %3606 = vmatpush2.msra.mxu0 0.0
    %3607 = vmatprep.subr.mxu0 0.0
    %3608 = vmatpush2.msra.mxu0 0.0
    %3609 = vmatprep.subr.mxu0 0.0
    %3610 = vmatpush2.msra.mxu0 0.0
    %3611 = vmatprep.subr.mxu0 0.0
    %3612 = vmatpush2.msra.mxu0 0.0
    %3613 = vmatprep.subr.mxu0 0.0
    %3614 = vmatpush2.msra.mxu0 0.0
    %3615 = vmatprep.subr.mxu0 0.0
    %3616 = vmatpush2.msra.mxu0 0.0
    %3617 = vmatprep.subr.mxu0 0.0
    %3618 = vmatpush2.msra.mxu0 0.0
    %3619 = vmatprep.subr.mxu0 0.0
    %3620 = vmatpush2.msra.mxu0 0.0
    %3621 = vmatprep.subr.mxu0 0.0
    %3622 = vmatpush2.msra.mxu0 0.0
    %3623 = vmatprep.subr.mxu0 0.0
    %3624 = vmatpush2.msra.mxu0 0.0
    %3625 = vmatprep.subr.mxu0 0.0
    %3626 = vmatpush2.msra.mxu0 0.0
    %3627 = vmatprep.subr.mxu0 0.0
    %3628 = vmatpush2.msra.mxu0 0.0
    %3629 = vmatprep.subr.mxu0 0.0
    %3630 = vmatpush2.msra.mxu0 0.0
    %3631 = vmatprep.mubr.f32.mxu0 0.0
    %3632 = vmatmul.mubr.f32.gmra.mxu0 %v3565
    %v3633 = vpop.f32.mrf.mxu0
    %v3634 = vadd.f32 0.0, %v3633
    %v3635 = vpop.f32.mrf.mxu0
    %3636 = vdwg.mxu0
    %v3638 = vsel %vm224, %v3634, 0
    %3640 = vmatprep.subr.mxu0 0.0
    %3641 = vmatpush1.msra.mxu0 0.0
    %3642 = vmatprep.subr.mxu0 0.0
    %3643 = vmatpush1.msra.mxu0 0.0
    %3644 = vmatprep.subr.mxu0 0.0
    %3645 = vmatpush1.msra.mxu0 0.0
    %3646 = vmatprep.subr.mxu0 0.0
    %3647 = vmatpush1.msra.mxu0 0.0
    %3648 = vmatprep.subr.mxu0 0.0
    %3649 = vmatpush1.msra.mxu0 0.0
    %3650 = vmatprep.subr.mxu0 0.0
    %3651 = vmatpush1.msra.mxu0 0.0
    %3652 = vmatprep.subr.mxu0 0.0
    %3653 = vmatpush1.msra.mxu0 0.0
    %3654 = vmatprep.subr.mxu0 0.0
    %3655 = vmatpush1.msra.mxu0 0.0
    %3656 = vmatprep.subr.mxu0 0.0
    %3657 = vmatpush1.msra.mxu0 0.0
    %3658 = vmatprep.subr.mxu0 0.0
    %3659 = vmatpush1.msra.mxu0 0.0
    %3660 = vmatprep.subr.mxu0 0.0
    %3661 = vmatpush1.msra.mxu0 0.0
    %3662 = vmatprep.subr.mxu0 0.0
    %3663 = vmatpush1.msra.mxu0 0.0
    %3664 = vmatprep.subr.mxu0 0.0
    %3665 = vmatpush1.msra.mxu0 0.0
    %3666 = vmatprep.subr.mxu0 0.0
    %3667 = vmatpush1.msra.mxu0 0.0
    %3668 = vmatprep.subr.mxu0 0.0
    %3669 = vmatpush1.msra.mxu0 0.0
    %3670 = vmatprep.subr.mxu0 0.0
    %3671 = vmatpush1.msra.mxu0 %v2354
    %3672 = vmatprep.subr.mxu0 0.0
    %3673 = vmatpush2.msra.mxu0 0.0
    %3674 = vmatprep.subr.mxu0 0.0
    %3675 = vmatpush2.msra.mxu0 0.0
    %3676 = vmatprep.subr.mxu0 0.0
    %3677 = vmatpush2.msra.mxu0 0.0
    %3678 = vmatprep.subr.mxu0 0.0
    %3679 = vmatpush2.msra.mxu0 0.0
    %3680 = vmatprep.subr.mxu0 0.0
    %3681 = vmatpush2.msra.mxu0 0.0
    %3682 = vmatprep.subr.mxu0 0.0
    %3683 = vmatpush2.msra.mxu0 0.0
    %3684 = vmatprep.subr.mxu0 0.0
    %3685 = vmatpush2.msra.mxu0 0.0
    %3686 = vmatprep.subr.mxu0 0.0
    %3687 = vmatpush2.msra.mxu0 0.0
    %3688 = vmatprep.subr.mxu0 0.0
    %3689 = vmatpush2.msra.mxu0 0.0
    %3690 = vmatprep.subr.mxu0 0.0
    %3691 = vmatpush2.msra.mxu0 0.0
    %3692 = vmatprep.subr.mxu0 0.0
    %3693 = vmatpush2.msra.mxu0 0.0
    %3694 = vmatprep.subr.mxu0 0.0
    %3695 = vmatpush2.msra.mxu0 0.0
    %3696 = vmatprep.subr.mxu0 0.0
    %3697 = vmatpush2.msra.mxu0 0.0
    %3698 = vmatprep.subr.mxu0 0.0
    %3699 = vmatpush2.msra.mxu0 0.0
    %3700 = vmatprep.subr.mxu0 0.0
    %3701 = vmatpush2.msra.mxu0 0.0
    %3702 = vmatprep.subr.mxu0 0.0
    %3703 = vmatpush2.msra.mxu0 0.0
    %3704 = vmatprep.mubr.f32.mxu0 0.0
    %3705 = vmatmul.mubr.f32.gmra.mxu0 %v3638
    %v3706 = vpop.f32.mrf.mxu0
    %v3707 = vadd.f32 0.0, %v3706
    %v3708 = vpop.f32.mrf.mxu0
    %3709 = vdwg.mxu0
    %v3711 = vsel %vm224, %v3469, 0
    %3713 = vmatprep.subr.mxu0 0.0
    %3714 = vmatpush1.msra.mxu0 0.0
    %3715 = vmatprep.subr.mxu0 0.0
    %3716 = vmatpush1.msra.mxu0 0.0
    %3717 = vmatprep.subr.mxu0 0.0
    %3718 = vmatpush1.msra.mxu0 0.0
    %3719 = vmatprep.subr.mxu0 0.0
    %3720 = vmatpush1.msra.mxu0 0.0
    %3721 = vmatprep.subr.mxu0 0.0
    %3722 = vmatpush1.msra.mxu0 0.0
    %3723 = vmatprep.subr.mxu0 0.0
    %3724 = vmatpush1.msra.mxu0 0.0
    %3725 = vmatprep.subr.mxu0 0.0
    %3726 = vmatpush1.msra.mxu0 0.0
    %3727 = vmatprep.subr.mxu0 0.0
    %3728 = vmatpush1.msra.mxu0 0.0
    %3729 = vmatprep.subr.mxu0 0.0
    %3730 = vmatpush1.msra.mxu0 0.0
    %3731 = vmatprep.subr.mxu0 0.0
    %3732 = vmatpush1.msra.mxu0 0.0
    %3733 = vmatprep.subr.mxu0 0.0
    %3734 = vmatpush1.msra.mxu0 0.0
    %3735 = vmatprep.subr.mxu0 0.0
    %3736 = vmatpush1.msra.mxu0 0.0
    %3737 = vmatprep.subr.mxu0 0.0
    %3738 = vmatpush1.msra.mxu0 0.0
    %3739 = vmatprep.subr.mxu0 0.0
    %3740 = vmatpush1.msra.mxu0 0.0
    %3741 = vmatprep.subr.mxu0 0.0
    %3742 = vmatpush1.msra.mxu0 0.0
    %3743 = vmatprep.subr.mxu0 0.0
    %3744 = vmatpush1.msra.mxu0 %v2353
    %3745 = vmatprep.subr.mxu0 0.0
    %3746 = vmatpush2.msra.mxu0 0.0
    %3747 = vmatprep.subr.mxu0 0.0
    %3748 = vmatpush2.msra.mxu0 0.0
    %3749 = vmatprep.subr.mxu0 0.0
    %3750 = vmatpush2.msra.mxu0 0.0
    %3751 = vmatprep.subr.mxu0 0.0
    %3752 = vmatpush2.msra.mxu0 0.0
    %3753 = vmatprep.subr.mxu0 0.0
    %3754 = vmatpush2.msra.mxu0 0.0
    %3755 = vmatprep.subr.mxu0 0.0
    %3756 = vmatpush2.msra.mxu0 0.0
    %3757 = vmatprep.subr.mxu0 0.0
    %3758 = vmatpush2.msra.mxu0 0.0
    %3759 = vmatprep.subr.mxu0 0.0
    %3760 = vmatpush2.msra.mxu0 0.0
    %3761 = vmatprep.subr.mxu0 0.0
    %3762 = vmatpush2.msra.mxu0 0.0
    %3763 = vmatprep.subr.mxu0 0.0
    %3764 = vmatpush2.msra.mxu0 0.0
    %3765 = vmatprep.subr.mxu0 0.0
    %3766 = vmatpush2.msra.mxu0 0.0
    %3767 = vmatprep.subr.mxu0 0.0
    %3768 = vmatpush2.msra.mxu0 0.0
    %3769 = vmatprep.subr.mxu0 0.0
    %3770 = vmatpush2.msra.mxu0 0.0
    %3771 = vmatprep.subr.mxu0 0.0
    %3772 = vmatpush2.msra.mxu0 0.0
    %3773 = vmatprep.subr.mxu0 0.0
    %3774 = vmatpush2.msra.mxu0 0.0
    %3775 = vmatprep.subr.mxu0 0.0
    %3776 = vmatpush2.msra.mxu0 0.0
    %3777 = vmatprep.mubr.f32.mxu0 0.0
    %3778 = vmatmul.mubr.f32.gmra.mxu0 %v3711
    %v3779 = vpop.f32.mrf.mxu0
    %v3780 = vadd.f32 %v3707, %v3779
    %v3781 = vpop.f32.mrf.mxu0
    %3782 = vdwg.mxu0
    %3783 = vrot.lane.b32.xlu0 %v2261, 112
    %v3784 = vpop.permute.xlu0 %3783
    %3785 = vrot.lane.b32.xlu0 %v2350, 112
    %v3786 = vpop.permute.xlu0 %3785
    %v3787 = vsel %vm224, %v3784, 0
    %v3789 = vsel %vm224, %v3786, 0
    %3791 = vmatprep.subr.mxu0 0.0
    %3792 = vmatpush1.xpose.msra.mxu0 0.0
    %3793 = vmatprep.subr.mxu0 0.0
    %3794 = vmatpush1.xpose.msra.mxu0 0.0
    %3795 = vmatprep.subr.mxu0 0.0
    %3796 = vmatpush1.xpose.msra.mxu0 0.0
    %3797 = vmatprep.subr.mxu0 0.0
    %3798 = vmatpush1.xpose.msra.mxu0 0.0
    %3799 = vmatprep.subr.mxu0 0.0
    %3800 = vmatpush1.xpose.msra.mxu0 0.0
    %3801 = vmatprep.subr.mxu0 0.0
    %3802 = vmatpush1.xpose.msra.mxu0 0.0
    %3803 = vmatprep.subr.mxu0 0.0
    %3804 = vmatpush1.xpose.msra.mxu0 0.0
    %3805 = vmatprep.subr.mxu0 0.0
    %3806 = vmatpush1.xpose.msra.mxu0 0.0
    %3807 = vmatprep.subr.mxu0 0.0
    %3808 = vmatpush1.xpose.msra.mxu0 0.0
    %3809 = vmatprep.subr.mxu0 0.0
    %3810 = vmatpush1.xpose.msra.mxu0 0.0
    %3811 = vmatprep.subr.mxu0 0.0
    %3812 = vmatpush1.xpose.msra.mxu0 0.0
    %3813 = vmatprep.subr.mxu0 0.0
    %3814 = vmatpush1.xpose.msra.mxu0 0.0
    %3815 = vmatprep.subr.mxu0 0.0
    %3816 = vmatpush1.xpose.msra.mxu0 0.0
    %3817 = vmatprep.subr.mxu0 0.0
    %3818 = vmatpush1.xpose.msra.mxu0 0.0
    %3819 = vmatprep.subr.mxu0 0.0
    %3820 = vmatpush1.xpose.msra.mxu0 0.0
    %3821 = vmatprep.subr.mxu0 0.0
    %3822 = vmatpush1.xpose.msra.mxu0 %v3789
    %3823 = vmatprep.subr.mxu0 0.0
    %3824 = vmatpush2.xpose.msra.mxu0 0.0
    %3825 = vmatprep.subr.mxu0 0.0
    %3826 = vmatpush2.xpose.msra.mxu0 0.0
    %3827 = vmatprep.subr.mxu0 0.0
    %3828 = vmatpush2.xpose.msra.mxu0 0.0
    %3829 = vmatprep.subr.mxu0 0.0
    %3830 = vmatpush2.xpose.msra.mxu0 0.0
    %3831 = vmatprep.subr.mxu0 0.0
    %3832 = vmatpush2.xpose.msra.mxu0 0.0
    %3833 = vmatprep.subr.mxu0 0.0
    %3834 = vmatpush2.xpose.msra.mxu0 0.0
    %3835 = vmatprep.subr.mxu0 0.0
    %3836 = vmatpush2.xpose.msra.mxu0 0.0
    %3837 = vmatprep.subr.mxu0 0.0
    %3838 = vmatpush2.xpose.msra.mxu0 0.0
    %3839 = vmatprep.subr.mxu0 0.0
    %3840 = vmatpush2.xpose.msra.mxu0 0.0
    %3841 = vmatprep.subr.mxu0 0.0
    %3842 = vmatpush2.xpose.msra.mxu0 0.0
    %3843 = vmatprep.subr.mxu0 0.0
    %3844 = vmatpush2.xpose.msra.mxu0 0.0
    %3845 = vmatprep.subr.mxu0 0.0
    %3846 = vmatpush2.xpose.msra.mxu0 0.0
    %3847 = vmatprep.subr.mxu0 0.0
    %3848 = vmatpush2.xpose.msra.mxu0 0.0
    %3849 = vmatprep.subr.mxu0 0.0
    %3850 = vmatpush2.xpose.msra.mxu0 0.0
    %3851 = vmatprep.subr.mxu0 0.0
    %3852 = vmatpush2.xpose.msra.mxu0 0.0
    %3853 = vmatprep.subr.mxu0 0.0
    %3854 = vmatpush2.xpose.msra.mxu0 0.0
    %3855 = vmatprep.mubr.f32.mxu0 0.0
    %3856 = vmatmul.mubr.f32.gmra.mxu0 %v3787
    %v3857 = vpop.f32.mrf.mxu0
    %v3858 = vadd.f32 0.0, %v3857
    %v3859 = vpop.f32.mrf.mxu0
    %3860 = vdwg.mxu0
    %v3861 = vsel %vm224, %v3858, -inf
    %3862 = vmax.xlane.f32.xlu0 %v3861
    %v3863 = vpop.xlane.xlu0 %3862
    %v3864 = vsub.f32 %v3858, %v3863
    %v3865 = vmul.f32 %v3864, 1.442695
    %v3866 = vpow.pop %v3865
    %v3867 = vsel %vm224, %v3866, 0.0
    %3868 = vadd.xlane.f32.xlu0 %v3867
    %v3869 = vpop.xlane.xlu0 %3868
    %v3870 = vrcp.pop %v3869
    %v3871 = vmul.f32 %v3866, %v3870
    %3872 = vrot.lane.b32.xlu0 %v2350, 80
    %v3873 = vpop.permute.xlu0 %3872
    %v3876 = vsel %vm224, %v3871, 0
    %3878 = vmatprep.subr.mxu0 0.0
    %3879 = vmatpush1.msra.mxu0 0.0
    %3880 = vmatprep.subr.mxu0 0.0
    %3881 = vmatpush1.msra.mxu0 0.0
    %3882 = vmatprep.subr.mxu0 0.0
    %3883 = vmatpush1.msra.mxu0 0.0
    %3884 = vmatprep.subr.mxu0 0.0
    %3885 = vmatpush1.msra.mxu0 0.0
    %3886 = vmatprep.subr.mxu0 0.0
    %3887 = vmatpush1.msra.mxu0 0.0
    %3888 = vmatprep.subr.mxu0 0.0
    %3889 = vmatpush1.msra.mxu0 0.0
    %3890 = vmatprep.subr.mxu0 0.0
    %3891 = vmatpush1.msra.mxu0 0.0
    %3892 = vmatprep.subr.mxu0 0.0
    %3893 = vmatpush1.msra.mxu0 0.0
    %3894 = vmatprep.subr.mxu0 0.0
    %3895 = vmatpush1.msra.mxu0 0.0
    %3896 = vmatprep.subr.mxu0 0.0
    %3897 = vmatpush1.msra.mxu0 0.0
    %3898 = vmatprep.subr.mxu0 0.0
    %3899 = vmatpush1.msra.mxu0 0.0
    %3900 = vmatprep.subr.mxu0 0.0
    %3901 = vmatpush1.msra.mxu0 0.0
    %3902 = vmatprep.subr.mxu0 0.0
    %3903 = vmatpush1.msra.mxu0 0.0
    %3904 = vmatprep.subr.mxu0 0.0
    %3905 = vmatpush1.msra.mxu0 0.0
    %3906 = vmatprep.subr.mxu0 0.0
    %3907 = vmatpush1.msra.mxu0 0.0
    %3908 = vmatprep.subr.mxu0 0.0
    %3909 = vmatpush1.msra.mxu0 %v3873
    %3910 = vmatprep.subr.mxu0 0.0
    %3911 = vmatpush2.msra.mxu0 0.0
    %3912 = vmatprep.subr.mxu0 0.0
    %3913 = vmatpush2.msra.mxu0 0.0
    %3914 = vmatprep.subr.mxu0 0.0
    %3915 = vmatpush2.msra.mxu0 0.0
    %3916 = vmatprep.subr.mxu0 0.0
    %3917 = vmatpush2.msra.mxu0 0.0
    %3918 = vmatprep.subr.mxu0 0.0
    %3919 = vmatpush2.msra.mxu0 0.0
    %3920 = vmatprep.subr.mxu0 0.0
    %3921 = vmatpush2.msra.mxu0 0.0
    %3922 = vmatprep.subr.mxu0 0.0
    %3923 = vmatpush2.msra.mxu0 0.0
    %3924 = vmatprep.subr.mxu0 0.0
    %3925 = vmatpush2.msra.mxu0 0.0
    %3926 = vmatprep.subr.mxu0 0.0
    %3927 = vmatpush2.msra.mxu0 0.0
    %3928 = vmatprep.subr.mxu0 0.0
    %3929 = vmatpush2.msra.mxu0 0.0
    %3930 = vmatprep.subr.mxu0 0.0
    %3931 = vmatpush2.msra.mxu0 0.0
    %3932 = vmatprep.subr.mxu0 0.0
    %3933 = vmatpush2.msra.mxu0 0.0
    %3934 = vmatprep.subr.mxu0 0.0
    %3935 = vmatpush2.msra.mxu0 0.0
    %3936 = vmatprep.subr.mxu0 0.0
    %3937 = vmatpush2.msra.mxu0 0.0
    %3938 = vmatprep.subr.mxu0 0.0
    %3939 = vmatpush2.msra.mxu0 0.0
    %3940 = vmatprep.subr.mxu0 0.0
    %3941 = vmatpush2.msra.mxu0 0.0
    %3942 = vmatprep.mubr.f32.mxu0 0.0
    %3943 = vmatmul.mubr.f32.gmra.mxu0 %v3876
    %v3944 = vpop.f32.mrf.mxu0
    %v3945 = vadd.f32 0.0, %v3944
    %v3946 = vpop.f32.mrf.mxu0
    %3947 = vdwg.mxu0
    %v3949 = vsel %vm224, %v3945, 0
    %3951 = vmatprep.subr.mxu0 0.0
    %3952 = vmatpush1.msra.mxu0 0.0
    %3953 = vmatprep.subr.mxu0 0.0
    %3954 = vmatpush1.msra.mxu0 0.0
    %3955 = vmatprep.subr.mxu0 0.0
    %3956 = vmatpush1.msra.mxu0 0.0
    %3957 = vmatprep.subr.mxu0 0.0
    %3958 = vmatpush1.msra.mxu0 0.0
    %3959 = vmatprep.subr.mxu0 0.0
    %3960 = vmatpush1.msra.mxu0 0.0
    %3961 = vmatprep.subr.mxu0 0.0
    %3962 = vmatpush1.msra.mxu0 0.0
    %3963 = vmatprep.subr.mxu0 0.0
    %3964 = vmatpush1.msra.mxu0 0.0
    %3965 = vmatprep.subr.mxu0 0.0
    %3966 = vmatpush1.msra.mxu0 0.0
    %3967 = vmatprep.subr.mxu0 0.0
    %3968 = vmatpush1.msra.mxu0 0.0
    %3969 = vmatprep.subr.mxu0 0.0
    %3970 = vmatpush1.msra.mxu0 0.0
    %3971 = vmatprep.subr.mxu0 0.0
    %3972 = vmatpush1.msra.mxu0 0.0
    %3973 = vmatprep.subr.mxu0 0.0
    %3974 = vmatpush1.msra.mxu0 0.0
    %3975 = vmatprep.subr.mxu0 0.0
    %3976 = vmatpush1.msra.mxu0 0.0
    %3977 = vmatprep.subr.mxu0 0.0
    %3978 = vmatpush1.msra.mxu0 0.0
    %3979 = vmatprep.subr.mxu0 0.0
    %3980 = vmatpush1.msra.mxu0 0.0
    %3981 = vmatprep.subr.mxu0 0.0
    %3982 = vmatpush1.msra.mxu0 %v2355
    %3983 = vmatprep.subr.mxu0 0.0
    %3984 = vmatpush2.msra.mxu0 0.0
    %3985 = vmatprep.subr.mxu0 0.0
    %3986 = vmatpush2.msra.mxu0 0.0
    %3987 = vmatprep.subr.mxu0 0.0
    %3988 = vmatpush2.msra.mxu0 0.0
    %3989 = vmatprep.subr.mxu0 0.0
    %3990 = vmatpush2.msra.mxu0 0.0
    %3991 = vmatprep.subr.mxu0 0.0
    %3992 = vmatpush2.msra.mxu0 0.0
    %3993 = vmatprep.subr.mxu0 0.0
    %3994 = vmatpush2.msra.mxu0 0.0
    %3995 = vmatprep.subr.mxu0 0.0
    %3996 = vmatpush2.msra.mxu0 0.0
    %3997 = vmatprep.subr.mxu0 0.0
    %3998 = vmatpush2.msra.mxu0 0.0
    %3999 = vmatprep.subr.mxu0 0.0
    %4000 = vmatpush2.msra.mxu0 0.0
    %4001 = vmatprep.subr.mxu0 0.0
    %4002 = vmatpush2.msra.mxu0 0.0
    %4003 = vmatprep.subr.mxu0 0.0
    %4004 = vmatpush2.msra.mxu0 0.0
    %4005 = vmatprep.subr.mxu0 0.0
    %4006 = vmatpush2.msra.mxu0 0.0
    %4007 = vmatprep.subr.mxu0 0.0
    %4008 = vmatpush2.msra.mxu0 0.0
    %4009 = vmatprep.subr.mxu0 0.0
    %4010 = vmatpush2.msra.mxu0 0.0
    %4011 = vmatprep.subr.mxu0 0.0
    %4012 = vmatpush2.msra.mxu0 0.0
    %4013 = vmatprep.subr.mxu0 0.0
    %4014 = vmatpush2.msra.mxu0 0.0
    %4015 = vmatprep.mubr.f32.mxu0 0.0
    %4016 = vmatmul.mubr.f32.gmra.mxu0 %v3949
    %v4017 = vpop.f32.mrf.mxu0
    %v4018 = vadd.f32 0.0, %v4017
    %v4019 = vpop.f32.mrf.mxu0
    %4020 = vdwg.mxu0
    %v4021 = vadd.f32 %v3780, %v4018
    %4022 = vrot.lane.b32.xlu0 %v2261, 104
    %v4023 = vpop.permute.xlu0 %4022
    %4024 = vrot.lane.b32.xlu0 %v2350, 104
    %v4025 = vpop.permute.xlu0 %4024
    %v4026 = vsel %vm224, %v4023, 0
    %v4028 = vsel %vm224, %v4025, 0
    %4030 = vmatprep.subr.mxu0 0.0
    %4031 = vmatpush1.xpose.msra.mxu0 0.0
    %4032 = vmatprep.subr.mxu0 0.0
    %4033 = vmatpush1.xpose.msra.mxu0 0.0
    %4034 = vmatprep.subr.mxu0 0.0
    %4035 = vmatpush1.xpose.msra.mxu0 0.0
    %4036 = vmatprep.subr.mxu0 0.0
    %4037 = vmatpush1.xpose.msra.mxu0 0.0
    %4038 = vmatprep.subr.mxu0 0.0
    %4039 = vmatpush1.xpose.msra.mxu0 0.0
    %4040 = vmatprep.subr.mxu0 0.0
    %4041 = vmatpush1.xpose.msra.mxu0 0.0
    %4042 = vmatprep.subr.mxu0 0.0
    %4043 = vmatpush1.xpose.msra.mxu0 0.0
    %4044 = vmatprep.subr.mxu0 0.0
    %4045 = vmatpush1.xpose.msra.mxu0 0.0
    %4046 = vmatprep.subr.mxu0 0.0
    %4047 = vmatpush1.xpose.msra.mxu0 0.0
    %4048 = vmatprep.subr.mxu0 0.0
    %4049 = vmatpush1.xpose.msra.mxu0 0.0
    %4050 = vmatprep.subr.mxu0 0.0
    %4051 = vmatpush1.xpose.msra.mxu0 0.0
    %4052 = vmatprep.subr.mxu0 0.0
    %4053 = vmatpush1.xpose.msra.mxu0 0.0
    %4054 = vmatprep.subr.mxu0 0.0
    %4055 = vmatpush1.xpose.msra.mxu0 0.0
    %4056 = vmatprep.subr.mxu0 0.0
    %4057 = vmatpush1.xpose.msra.mxu0 0.0
    %4058 = vmatprep.subr.mxu0 0.0
    %4059 = vmatpush1.xpose.msra.mxu0 0.0
    %4060 = vmatprep.subr.mxu0 0.0
    %4061 = vmatpush1.xpose.msra.mxu0 %v4028
    %4062 = vmatprep.subr.mxu0 0.0
    %4063 = vmatpush2.xpose.msra.mxu0 0.0
    %4064 = vmatprep.subr.mxu0 0.0
    %4065 = vmatpush2.xpose.msra.mxu0 0.0
    %4066 = vmatprep.subr.mxu0 0.0
    %4067 = vmatpush2.xpose.msra.mxu0 0.0
    %4068 = vmatprep.subr.mxu0 0.0
    %4069 = vmatpush2.xpose.msra.mxu0 0.0
    %4070 = vmatprep.subr.mxu0 0.0
    %4071 = vmatpush2.xpose.msra.mxu0 0.0
    %4072 = vmatprep.subr.mxu0 0.0
    %4073 = vmatpush2.xpose.msra.mxu0 0.0
    %4074 = vmatprep.subr.mxu0 0.0
    %4075 = vmatpush2.xpose.msra.mxu0 0.0
    %4076 = vmatprep.subr.mxu0 0.0
    %4077 = vmatpush2.xpose.msra.mxu0 0.0
    %4078 = vmatprep.subr.mxu0 0.0
    %4079 = vmatpush2.xpose.msra.mxu0 0.0
    %4080 = vmatprep.subr.mxu0 0.0
    %4081 = vmatpush2.xpose.msra.mxu0 0.0
    %4082 = vmatprep.subr.mxu0 0.0
    %4083 = vmatpush2.xpose.msra.mxu0 0.0
    %4084 = vmatprep.subr.mxu0 0.0
    %4085 = vmatpush2.xpose.msra.mxu0 0.0
    %4086 = vmatprep.subr.mxu0 0.0
    %4087 = vmatpush2.xpose.msra.mxu0 0.0
    %4088 = vmatprep.subr.mxu0 0.0
    %4089 = vmatpush2.xpose.msra.mxu0 0.0
    %4090 = vmatprep.subr.mxu0 0.0
    %4091 = vmatpush2.xpose.msra.mxu0 0.0
    %4092 = vmatprep.subr.mxu0 0.0
    %4093 = vmatpush2.xpose.msra.mxu0 0.0
    %4094 = vmatprep.mubr.f32.mxu0 0.0
    %4095 = vmatmul.mubr.f32.gmra.mxu0 %v4026
    %v4096 = vpop.f32.mrf.mxu0
    %v4097 = vadd.f32 0.0, %v4096
    %v4098 = vpop.f32.mrf.mxu0
    %4099 = vdwg.mxu0
    %v4100 = vsel %vm224, %v4097, -inf
    %4101 = vmax.xlane.f32.xlu0 %v4100
    %v4102 = vpop.xlane.xlu0 %4101
    %v4103 = vsub.f32 %v4097, %v4102
    %v4104 = vmul.f32 %v4103, 1.442695
    %v4105 = vpow.pop %v4104
    %v4106 = vsel %vm224, %v4105, 0.0
    %4107 = vadd.xlane.f32.xlu0 %v4106
    %v4108 = vpop.xlane.xlu0 %4107
    %v4109 = vrcp.pop %v4108
    %v4110 = vmul.f32 %v4105, %v4109
    %4111 = vrot.lane.b32.xlu0 %v2350, 72
    %v4112 = vpop.permute.xlu0 %4111
    %v4115 = vsel %vm224, %v4110, 0
    %4117 = vmatprep.subr.mxu0 0.0
    %4118 = vmatpush1.msra.mxu0 0.0
    %4119 = vmatprep.subr.mxu0 0.0
    %4120 = vmatpush1.msra.mxu0 0.0
    %4121 = vmatprep.subr.mxu0 0.0
    %4122 = vmatpush1.msra.mxu0 0.0
    %4123 = vmatprep.subr.mxu0 0.0
    %4124 = vmatpush1.msra.mxu0 0.0
    %4125 = vmatprep.subr.mxu0 0.0
    %4126 = vmatpush1.msra.mxu0 0.0
    %4127 = vmatprep.subr.mxu0 0.0
    %4128 = vmatpush1.msra.mxu0 0.0
    %4129 = vmatprep.subr.mxu0 0.0
    %4130 = vmatpush1.msra.mxu0 0.0
    %4131 = vmatprep.subr.mxu0 0.0
    %4132 = vmatpush1.msra.mxu0 0.0
    %4133 = vmatprep.subr.mxu0 0.0
    %4134 = vmatpush1.msra.mxu0 0.0
    %4135 = vmatprep.subr.mxu0 0.0
    %4136 = vmatpush1.msra.mxu0 0.0
    %4137 = vmatprep.subr.mxu0 0.0
    %4138 = vmatpush1.msra.mxu0 0.0
    %4139 = vmatprep.subr.mxu0 0.0
    %4140 = vmatpush1.msra.mxu0 0.0
    %4141 = vmatprep.subr.mxu0 0.0
    %4142 = vmatpush1.msra.mxu0 0.0
    %4143 = vmatprep.subr.mxu0 0.0
    %4144 = vmatpush1.msra.mxu0 0.0
    %4145 = vmatprep.subr.mxu0 0.0
    %4146 = vmatpush1.msra.mxu0 0.0
    %4147 = vmatprep.subr.mxu0 0.0
    %4148 = vmatpush1.msra.mxu0 %v4112
    %4149 = vmatprep.subr.mxu0 0.0
    %4150 = vmatpush2.msra.mxu0 0.0
    %4151 = vmatprep.subr.mxu0 0.0
    %4152 = vmatpush2.msra.mxu0 0.0
    %4153 = vmatprep.subr.mxu0 0.0
    %4154 = vmatpush2.msra.mxu0 0.0
    %4155 = vmatprep.subr.mxu0 0.0
    %4156 = vmatpush2.msra.mxu0 0.0
    %4157 = vmatprep.subr.mxu0 0.0
    %4158 = vmatpush2.msra.mxu0 0.0
    %4159 = vmatprep.subr.mxu0 0.0
    %4160 = vmatpush2.msra.mxu0 0.0
    %4161 = vmatprep.subr.mxu0 0.0
    %4162 = vmatpush2.msra.mxu0 0.0
    %4163 = vmatprep.subr.mxu0 0.0
    %4164 = vmatpush2.msra.mxu0 0.0
    %4165 = vmatprep.subr.mxu0 0.0
    %4166 = vmatpush2.msra.mxu0 0.0
    %4167 = vmatprep.subr.mxu0 0.0
    %4168 = vmatpush2.msra.mxu0 0.0
    %4169 = vmatprep.subr.mxu0 0.0
    %4170 = vmatpush2.msra.mxu0 0.0
    %4171 = vmatprep.subr.mxu0 0.0
    %4172 = vmatpush2.msra.mxu0 0.0
    %4173 = vmatprep.subr.mxu0 0.0
    %4174 = vmatpush2.msra.mxu0 0.0
    %4175 = vmatprep.subr.mxu0 0.0
    %4176 = vmatpush2.msra.mxu0 0.0
    %4177 = vmatprep.subr.mxu0 0.0
    %4178 = vmatpush2.msra.mxu0 0.0
    %4179 = vmatprep.subr.mxu0 0.0
    %4180 = vmatpush2.msra.mxu0 0.0
    %4181 = vmatprep.mubr.f32.mxu0 0.0
    %4182 = vmatmul.mubr.f32.gmra.mxu0 %v4115
    %v4183 = vpop.f32.mrf.mxu0
    %v4184 = vadd.f32 0.0, %v4183
    %v4185 = vpop.f32.mrf.mxu0
    %4186 = vdwg.mxu0
    %v4188 = vsel %vm224, %v4184, 0
    %4190 = vmatprep.subr.mxu0 0.0
    %4191 = vmatpush1.msra.mxu0 0.0
    %4192 = vmatprep.subr.mxu0 0.0
    %4193 = vmatpush1.msra.mxu0 0.0
    %4194 = vmatprep.subr.mxu0 0.0
    %4195 = vmatpush1.msra.mxu0 0.0
    %4196 = vmatprep.subr.mxu0 0.0
    %4197 = vmatpush1.msra.mxu0 0.0
    %4198 = vmatprep.subr.mxu0 0.0
    %4199 = vmatpush1.msra.mxu0 0.0
    %4200 = vmatprep.subr.mxu0 0.0
    %4201 = vmatpush1.msra.mxu0 0.0
    %4202 = vmatprep.subr.mxu0 0.0
    %4203 = vmatpush1.msra.mxu0 0.0
    %4204 = vmatprep.subr.mxu0 0.0
    %4205 = vmatpush1.msra.mxu0 0.0
    %4206 = vmatprep.subr.mxu0 0.0
    %4207 = vmatpush1.msra.mxu0 0.0
    %4208 = vmatprep.subr.mxu0 0.0
    %4209 = vmatpush1.msra.mxu0 0.0
    %4210 = vmatprep.subr.mxu0 0.0
    %4211 = vmatpush1.msra.mxu0 0.0
    %4212 = vmatprep.subr.mxu0 0.0
    %4213 = vmatpush1.msra.mxu0 0.0
    %4214 = vmatprep.subr.mxu0 0.0
    %4215 = vmatpush1.msra.mxu0 0.0
    %4216 = vmatprep.subr.mxu0 0.0
    %4217 = vmatpush1.msra.mxu0 0.0
    %4218 = vmatprep.subr.mxu0 0.0
    %4219 = vmatpush1.msra.mxu0 0.0
    %4220 = vmatprep.subr.mxu0 0.0
    %4221 = vmatpush1.msra.mxu0 %v2356
    %4222 = vmatprep.subr.mxu0 0.0
    %4223 = vmatpush2.msra.mxu0 0.0
    %4224 = vmatprep.subr.mxu0 0.0
    %4225 = vmatpush2.msra.mxu0 0.0
    %4226 = vmatprep.subr.mxu0 0.0
    %4227 = vmatpush2.msra.mxu0 0.0
    %4228 = vmatprep.subr.mxu0 0.0
    %4229 = vmatpush2.msra.mxu0 0.0
    %4230 = vmatprep.subr.mxu0 0.0
    %4231 = vmatpush2.msra.mxu0 0.0
    %4232 = vmatprep.subr.mxu0 0.0
    %4233 = vmatpush2.msra.mxu0 0.0
    %4234 = vmatprep.subr.mxu0 0.0
    %4235 = vmatpush2.msra.mxu0 0.0
    %4236 = vmatprep.subr.mxu0 0.0
    %4237 = vmatpush2.msra.mxu0 0.0
    %4238 = vmatprep.subr.mxu0 0.0
    %4239 = vmatpush2.msra.mxu0 0.0
    %4240 = vmatprep.subr.mxu0 0.0
    %4241 = vmatpush2.msra.mxu0 0.0
    %4242 = vmatprep.subr.mxu0 0.0
    %4243 = vmatpush2.msra.mxu0 0.0
    %4244 = vmatprep.subr.mxu0 0.0
    %4245 = vmatpush2.msra.mxu0 0.0
    %4246 = vmatprep.subr.mxu0 0.0
    %4247 = vmatpush2.msra.mxu0 0.0
    %4248 = vmatprep.subr.mxu0 0.0
    %4249 = vmatpush2.msra.mxu0 0.0
    %4250 = vmatprep.subr.mxu0 0.0
    %4251 = vmatpush2.msra.mxu0 0.0
    %4252 = vmatprep.subr.mxu0 0.0
    %4253 = vmatpush2.msra.mxu0 0.0
    %4254 = vmatprep.mubr.f32.mxu0 0.0
    %4255 = vmatmul.mubr.f32.gmra.mxu0 %v4188
    %v4256 = vpop.f32.mrf.mxu0
    %v4257 = vadd.f32 0.0, %v4256
    %v4258 = vpop.f32.mrf.mxu0
    %4259 = vdwg.mxu0
    %v4260 = vadd.f32 %v4021, %v4257
    %v4261 = vlaneseq
    %v4262 = vshrl.u32 %v4261, 7
    %v4263 = vsub.s32 0, %v4262
    %v4264 = vrot.slane %v112, %v4263
    %v4265 = vadd.f32 %v3308, %v4264
    %v4266 = vadd.f32 %v4260, %v4264
    %v4267 = vadd.f32 %v4265, %v2173
    %v4268 = vadd.f32 %v4266, %v2174
    %v4269 = vsel %vm135, %v4267, 0.0
    %4270 = vadd.xlane.f32.xlu0 %v4269
    %v4271 = vpop.xlane.xlu0 %4270
    %v4272 = vsel %vm135, %v4268, 0.0
    %4273 = vadd.xlane.f32.xlu0 %v4272
    %v4274 = vpop.xlane.xlu0 %4273
    %v4275 = vmul.f32 %v4271, %v2142
    %v4276 = vmul.f32 %v4274, %v2142
    %v4277 = vsub.f32 %v4267, %v4275
    %v4278 = vsub.f32 %v4268, %v4276
    %v4279 = vmul.f32 %v4277, %v4277
    %v4280 = vmul.f32 %v4278, %v4278
    %v4281 = vsel %vm135, %v4279, 0.0
    %4282 = vadd.xlane.f32.xlu0 %v4281
    %v4283 = vpop.xlane.xlu0 %4282
    %v4284 = vsel %vm135, %v4280, 0.0
    %4285 = vadd.xlane.f32.xlu0 %v4284
    %v4286 = vpop.xlane.xlu0 %4285
    %v4287 = vmul.f32 %v4283, %v2142
    %v4288 = vmul.f32 %v4286, %v2142
    %v4289 = vadd.f32 %v4287, 1e-05
    %v4290 = vadd.f32 %v4288, 1e-05
    %v4291 = vrsqrt.pop %v4289
    %v4292 = vrsqrt.pop %v4290
    %v4293 = vmul.f32 %v4277, %v4291
    %v4294 = vmul.f32 %v4278, %v4292
    %v4295 = vlaneseq
    %v4296 = vshrl.u32 %v4295, 7
    %v4297 = vsub.s32 0, %v4296
    %v4298 = vrot.slane %v117, %v4297
    %v4299 = vmul.f32 %v4293, %v4298
    %v4300 = vmul.f32 %v4294, %v4298
    %v4301 = vlaneseq
    %v4302 = vshrl.u32 %v4301, 7
    %v4303 = vsub.s32 0, %v4302
    %v4304 = vrot.slane %v118, %v4303
    %v4305 = vadd.f32 %v4299, %v4304
    %v4306 = vadd.f32 %v4300, %v4304
    %v4307 = vld [vmem:[#allocation10] sm:$0xff]
    %v4308 = vld [vmem:[#allocation10 + $0x8] sm:$0xff]
    %v4309 = vld [vmem:[#allocation10 + $0x10] sm:$0xff]
    %v4310 = vld [vmem:[#allocation10 + $0x18] sm:$0xff]
    %v4311 = vlaneseq
    %v4312 = vshrl.u32 %v4311, 7
    %v4313 = vsub.s32 0, %v4312
    %v4314 = vrot.slane %v113, %v4313
    %v4316 = vsel %vm135, %v4305, 0
    %v4319 = vsel %vm135, %v4306, 0
    %4321 = vmatprep.subr.mxu0 0.0
    %4322 = vmatpush1.msra.mxu0 0.0
    %4323 = vmatprep.subr.mxu0 0.0
    %4324 = vmatpush1.msra.mxu0 0.0
    %4325 = vmatprep.subr.mxu0 0.0
    %4326 = vmatpush1.msra.mxu0 0.0
    %4327 = vmatprep.subr.mxu0 0.0
    %4328 = vmatpush1.msra.mxu0 0.0
    %4329 = vmatprep.subr.mxu0 0.0
    %4330 = vmatpush1.msra.mxu0 0.0
    %4331 = vmatprep.subr.mxu0 0.0
    %4332 = vmatpush1.msra.mxu0 0.0
    %4333 = vmatprep.subr.mxu0 0.0
    %4334 = vmatpush1.msra.mxu0 0.0
    %4335 = vmatprep.subr.mxu0 0.0
    %4336 = vmatpush1.msra.mxu0 0.0
    %4337 = vmatprep.subr.mxu0 0.0
    %4338 = vmatpush1.msra.mxu0 0.0
    %4339 = vmatprep.subr.mxu0 0.0
    %4340 = vmatpush1.msra.mxu0 0.0
    %4341 = vmatprep.subr.mxu0 0.0
    %4342 = vmatpush1.msra.mxu0 0.0
    %4343 = vmatprep.subr.mxu0 0.0
    %4344 = vmatpush1.msra.mxu0 0.0
    %4345 = vmatprep.subr.mxu0 0.0
    %4346 = vmatpush1.msra.mxu0 %v4310
    %4347 = vmatprep.subr.mxu0 0.0
    %4348 = vmatpush1.msra.mxu0 %v4309
    %4349 = vmatprep.subr.mxu0 0.0
    %4350 = vmatpush1.msra.mxu0 %v4308
    %4351 = vmatprep.subr.mxu0 0.0
    %4352 = vmatpush1.msra.mxu0 %v4307
    %4353 = vmatprep.subr.mxu0 0.0
    %4354 = vmatpush2.msra.mxu0 0.0
    %4355 = vmatprep.subr.mxu0 0.0
    %4356 = vmatpush2.msra.mxu0 0.0
    %4357 = vmatprep.subr.mxu0 0.0
    %4358 = vmatpush2.msra.mxu0 0.0
    %4359 = vmatprep.subr.mxu0 0.0
    %4360 = vmatpush2.msra.mxu0 0.0
    %4361 = vmatprep.subr.mxu0 0.0
    %4362 = vmatpush2.msra.mxu0 0.0
    %4363 = vmatprep.subr.mxu0 0.0
    %4364 = vmatpush2.msra.mxu0 0.0
    %4365 = vmatprep.subr.mxu0 0.0
    %4366 = vmatpush2.msra.mxu0 0.0
    %4367 = vmatprep.subr.mxu0 0.0
    %4368 = vmatpush2.msra.mxu0 0.0
    %4369 = vmatprep.subr.mxu0 0.0
    %4370 = vmatpush2.msra.mxu0 0.0
    %4371 = vmatprep.subr.mxu0 0.0
    %4372 = vmatpush2.msra.mxu0 0.0
    %4373 = vmatprep.subr.mxu0 0.0
    %4374 = vmatpush2.msra.mxu0 0.0
    %4375 = vmatprep.subr.mxu0 0.0
    %4376 = vmatpush2.msra.mxu0 0.0
    %4377 = vmatprep.subr.mxu0 0.0
    %4378 = vmatpush2.msra.mxu0 0.0
    %4379 = vmatprep.subr.mxu0 0.0
    %4380 = vmatpush2.msra.mxu0 0.0
    %4381 = vmatprep.subr.mxu0 0.0
    %4382 = vmatpush2.msra.mxu0 0.0
    %4383 = vmatprep.subr.mxu0 0.0
    %4384 = vmatpush2.msra.mxu0 0.0
    %4385 = vmatprep.mubr.f32.mxu0 0.0
    %4386 = vmatmul.mubr.f32.gmra.mxu0 %v4316
    %v4387 = vpop.f32.mrf.mxu0
    %v4388 = vadd.f32 %v4314, %v4387
    %v4389 = vpop.f32.mrf.mxu0
    %4390 = vmatprep.mubr.f32.mxu0 0.0
    %4391 = vmatmul.mubr.f32.gmra.mxu0 %v4319
    %v4392 = vpop.f32.mrf.mxu0
    %v4393 = vadd.f32 %v4314, %v4392
    %v4394 = vpop.f32.mrf.mxu0
    %4395 = vdwg.mxu0
    %v4396 = vmax.f32 %v4388, 0.0
    %v4397 = vmax.f32 %v4393, 0.0
    %v4398 = vld [vmem:[%s8] sm:$0xff]
    %v4399 = vld [vmem:[%s8 + $0x8] sm:$0xff]
    %v4400 = vld [vmem:[%s8 + $0x10] sm:$0xff]
    %v4401 = vld [vmem:[%s8 + $0x18] sm:$0xff]
    %v4402 = vld [vmem:[%s8 + $0x20] sm:$0xff]
    %v4403 = vld [vmem:[%s8 + $0x28] sm:$0xff]
    %v4404 = vld [vmem:[%s8 + $0x30] sm:$0xff]
    %v4405 = vld [vmem:[%s8 + $0x38] sm:$0xff]
    %v4406 = vlaneseq
    %v4407 = vshrl.u32 %v4406, 7
    %v4408 = vsub.s32 0, %v4407
    %v4409 = vrot.slane %v114, %v4408
    %vm4410 = vcmask 523264
    %v4412 = vsel %vm4410, %v4396, 0
    %v4415 = vsel %vm4410, %v4397, 0
    %4417 = vmatprep.subr.mxu0 0.0
    %4418 = vmatpush1.msra.mxu0 0.0
    %4419 = vmatprep.subr.mxu0 0.0
    %4420 = vmatpush1.msra.mxu0 0.0
    %4421 = vmatprep.subr.mxu0 0.0
    %4422 = vmatpush1.msra.mxu0 0.0
    %4423 = vmatprep.subr.mxu0 0.0
    %4424 = vmatpush1.msra.mxu0 0.0
    %4425 = vmatprep.subr.mxu0 0.0
    %4426 = vmatpush1.msra.mxu0 0.0
    %4427 = vmatprep.subr.mxu0 0.0
    %4428 = vmatpush1.msra.mxu0 0.0
    %4429 = vmatprep.subr.mxu0 0.0
    %4430 = vmatpush1.msra.mxu0 0.0
    %4431 = vmatprep.subr.mxu0 0.0
    %4432 = vmatpush1.msra.mxu0 0.0
    %4433 = vmatprep.subr.mxu0 0.0
    %4434 = vmatpush1.msra.mxu0 %v4405
    %4435 = vmatprep.subr.mxu0 0.0
    %4436 = vmatpush1.msra.mxu0 %v4404
    %4437 = vmatprep.subr.mxu0 0.0
    %4438 = vmatpush1.msra.mxu0 %v4403
    %4439 = vmatprep.subr.mxu0 0.0
    %4440 = vmatpush1.msra.mxu0 %v4402
    %4441 = vmatprep.subr.mxu0 0.0
    %4442 = vmatpush1.msra.mxu0 %v4401
    %4443 = vmatprep.subr.mxu0 0.0
    %4444 = vmatpush1.msra.mxu0 %v4400
    %4445 = vmatprep.subr.mxu0 0.0
    %4446 = vmatpush1.msra.mxu0 %v4399
    %4447 = vmatprep.subr.mxu0 0.0
    %4448 = vmatpush1.msra.mxu0 %v4398
    %4449 = vmatprep.subr.mxu0 0.0
    %4450 = vmatpush2.msra.mxu0 0.0
    %4451 = vmatprep.subr.mxu0 0.0
    %4452 = vmatpush2.msra.mxu0 0.0
    %4453 = vmatprep.subr.mxu0 0.0
    %4454 = vmatpush2.msra.mxu0 0.0
    %4455 = vmatprep.subr.mxu0 0.0
    %4456 = vmatpush2.msra.mxu0 0.0
    %4457 = vmatprep.subr.mxu0 0.0
    %4458 = vmatpush2.msra.mxu0 0.0
    %4459 = vmatprep.subr.mxu0 0.0
    %4460 = vmatpush2.msra.mxu0 0.0
    %4461 = vmatprep.subr.mxu0 0.0
    %4462 = vmatpush2.msra.mxu0 0.0
    %4463 = vmatprep.subr.mxu0 0.0
    %4464 = vmatpush2.msra.mxu0 0.0
    %4465 = vmatprep.subr.mxu0 0.0
    %4466 = vmatpush2.msra.mxu0 0.0
    %4467 = vmatprep.subr.mxu0 0.0
    %4468 = vmatpush2.msra.mxu0 0.0
    %4469 = vmatprep.subr.mxu0 0.0
    %4470 = vmatpush2.msra.mxu0 0.0
    %4471 = vmatprep.subr.mxu0 0.0
    %4472 = vmatpush2.msra.mxu0 0.0
    %4473 = vmatprep.subr.mxu0 0.0
    %4474 = vmatpush2.msra.mxu0 0.0
    %4475 = vmatprep.subr.mxu0 0.0
    %4476 = vmatpush2.msra.mxu0 0.0
    %4477 = vmatprep.subr.mxu0 0.0
    %4478 = vmatpush2.msra.mxu0 0.0
    %4479 = vmatprep.subr.mxu0 0.0
    %4480 = vmatpush2.msra.mxu0 0.0
    %4481 = vmatprep.mubr.f32.mxu0 0.0
    %4482 = vmatmul.mubr.f32.gmra.mxu0 %v4412
    %v4483 = vpop.f32.mrf.mxu0
    %v4484 = vadd.f32 %v4409, %v4483
    %v4485 = vpop.f32.mrf.mxu0
    %4486 = vmatprep.mubr.f32.mxu0 0.0
    %4487 = vmatmul.mubr.f32.gmra.mxu0 %v4415
    %v4488 = vpop.f32.mrf.mxu0
    %v4489 = vadd.f32 %v4409, %v4488
    %v4490 = vpop.f32.mrf.mxu0
    %4491 = vdwg.mxu0
    %v4492 = vadd.f32 %v4484, %v4305
    %v4493 = vadd.f32 %v4489, %v4306
    %v4494 = vsel %vm135, %v4492, 0.0
    %4495 = vadd.xlane.f32.xlu0 %v4494
    %v4496 = vpop.xlane.xlu0 %4495
    %v4497 = vsel %vm135, %v4493, 0.0
    %4498 = vadd.xlane.f32.xlu0 %v4497
    %v4499 = vpop.xlane.xlu0 %4498
    %v4500 = vmul.f32 %v4496, %v2142
    %v4501 = vmul.f32 %v4499, %v2142
    %v4502 = vsub.f32 %v4492, %v4500
    %v4503 = vsub.f32 %v4493, %v4501
    %v4504 = vmul.f32 %v4502, %v4502
    %v4505 = vmul.f32 %v4503, %v4503
    %v4506 = vsel %vm135, %v4504, 0.0
    %4507 = vadd.xlane.f32.xlu0 %v4506
    %v4508 = vpop.xlane.xlu0 %4507
    %v4509 = vsel %vm135, %v4505, 0.0
    %4510 = vadd.xlane.f32.xlu0 %v4509
    %v4511 = vpop.xlane.xlu0 %4510
    %v4512 = vmul.f32 %v4508, %v2142
    %v4513 = vmul.f32 %v4511, %v2142
    %v4514 = vadd.f32 %v4512, 1e-05
    %v4515 = vadd.f32 %v4513, 1e-05
    %v4516 = vrsqrt.pop %v4514
    %v4517 = vrsqrt.pop %v4515
    %v4518 = vmul.f32 %v4502, %v4516
    %v4519 = vmul.f32 %v4503, %v4517
    %v4520 = vlaneseq
    %v4521 = vshrl.u32 %v4520, 7
    %v4522 = vsub.s32 0, %v4521
    %v4523 = vrot.slane %v119, %v4522
    %v4524 = vmul.f32 %v4518, %v4523
    %v4525 = vmul.f32 %v4519, %v4523
    %v4526 = vlaneseq
    %v4527 = vshrl.u32 %v4526, 7
    %v4528 = vsub.s32 0, %v4527
    %v4529 = vrot.slane %v120, %v4528
    %v4530 = vadd.f32 %v4524, %v4529
    %v4531 = vadd.f32 %v4525, %v4529
    %4532 = vst.msk [vmem:[#allocation11] sm:$0xff] %vm135, %v4530
    %4533 = vst.msk [vmem:[#allocation11 + $0x8] sm:$0xff] %vm135, %v4531
    // Predicated region
    $region62: #{tpu_custom_call.1} parent=1 // pred_check
      _
    $region63: #{tpu_custom_call.1} parent=1 // pred_check_branch
      %4535 = sbr.rel (0) target = $region65
    $region64: #{tpu_custom_call.1} parent=1 // pred_region
      %s4537 = ssub.s32 256, 256
      %4538 = vsyncadd [#allocation4], %s4537
      %s4539 = sshll.u32 [#allocation11], 4
      %s4540 = int_to_ptr.vmem [resolvable:$true] %s4539
      %4545 = dma.vmem_to_hbm [thread:$0]  %s4540, 256, %s10, [#allocation4], 128, 128, 8
    $region65: #{tpu_custom_call.1} parent=1 // pred_fallthru
      _
    // Predicated region
    $region66: #{tpu_custom_call.1} parent=1 // pred_check
      _
    $region67: #{tpu_custom_call.1} parent=1 // pred_check_branch
      %4547 = sbr.rel (0) target = $region69
    $region68: #{tpu_custom_call.1} parent=1 // pred_region
      %4548 = dma.done [#allocation4], 256
    $region69: #{tpu_custom_call.1} parent=1 // pred_fallthru
      _
    %4549 = vsyncpa [#allocation3], 1
    %4550 = vsyncpa [#allocation6], 1
    %4551 = vsyncpa [#allocation9], 1
    %4552 = vsyncpa [#allocation4], 1

</llo_original>
